<compile_context>
chip_gen: v6e
topology: v6e:2x2x1
jax: 0.10.0
libtpu: 0.0.40
codegen_flags: <defaults>
</compile_context>

<pallas_src>
import math
from functools import partial

import numpy as np
import jax
import jax.numpy as jnp
from jax import lax
from jax.experimental import pallas as pl
from jax.experimental.pallas import tpu as pltpu

# ----------------------------- config (small, synthetic) -----------------------------
SEQ = 8
BATCH = 2
HIDDEN = 32
NUM_HEADS = 4
HEAD_DIM = HIDDEN // NUM_HEADS          # 8 = hidden_size_per_attention_head
ENHANCE = {"domain": 1}                 # domain_att_enhance: name -> number of extra heads
ADD_HEADS = sum(ENHANCE.values())       # 1
TOTAL_HEADS = NUM_HEADS + ADD_HEADS     # 5
LAYER_ID = 1                            # query_key_layer_scaling_coeff = layer_id + 1 = 2
ROT_DIM = HEAD_DIM // 2                 # position_encoding_2d => rotary dim = head_dim // 2

GROUP = TOTAL_HEADS * HEAD_DIM          # 40 columns per logical group (all heads)
GROUP_PAD = 128                         # each group padded to its own full lane tile
N_GROUPS = 5                            # q | k | v | qR | kR
N_PROJ = N_GROUPS * GROUP_PAD           # 640 fused projection width
OUT_PAD = 128                           # lane-dense output slab width (hidden=32 padded)
ROTARY_TABLE_LEN = SEQ                  # static table length (jit-traceable)


# ----------------------------- rotary helpers (tiny glue) -----------------------------
def rotary_cos_sin(dim, seq_len, base=10000.0):
    inv_freq = 1.0 / (base ** (jnp.arange(0, dim, 2, dtype=jnp.float32) / dim))
    t = jnp.arange(seq_len, dtype=jnp.float32)
    freqs = jnp.outer(t, inv_freq)                     # [T, dim/2]
    emb = jnp.concatenate([freqs, freqs], axis=-1)     # [T, dim]
    return jnp.cos(emb), jnp.sin(emb)


def build_rotate_half_matrix():
    """R such that x @ R == per-head [rotate_half(x1), rotate_half(x2)] (2D rotary layout)."""
    R = np.zeros((GROUP, GROUP), dtype=np.float32)
    half = HEAD_DIM // 2        # split into x1 | x2 for 2D rotary
    quarter = half // 2         # rotate_half split inside each half
    for h in range(TOTAL_HEADS):
        o = h * HEAD_DIM
        for base in (o, o + half):
            for j in range(quarter):
                R[base + quarter + j, base + j] = -1.0   # out[base+j]         = -in[base+quarter+j]
                R[base + j, base + quarter + j] = 1.0    # out[base+quarter+j] = +in[base+j]
    return jnp.asarray(R)


# ----------------------------- one-time weight packing (offline) -----------------------------
def prepare_params(params):
    """Regroup fused-QKV columns into lane-aligned 128-wide groups [q | k | v | qR | kR],
    fold 1/sqrt(head_dim) into the q columns and the rotate-half permutation R into the
    qR/kR groups, and pad the output projection to a lane-dense 128-wide slab."""
    H = HIDDEN
    w = params["w_qkv"].reshape(H, TOTAL_HEADS, 3, HEAD_DIM)
    b = params["b_qkv"].reshape(TOTAL_HEADS, 3, HEAD_DIM)
    inv_sqrt = 1.0 / math.sqrt(HEAD_DIM)

    Wq = w[:, :, 0, :].reshape(H, GROUP) * inv_sqrt      # scale folded into q columns
    Wk = w[:, :, 1, :].reshape(H, GROUP)
    Wv = w[:, :, 2, :].reshape(H, GROUP)
    bq = b[:, 0, :].reshape(GROUP) * inv_sqrt
    bk = b[:, 1, :].reshape(GROUP)
    bv = b[:, 2, :].reshape(GROUP)

    R = build_rotate_half_matrix()                       # rotary is linear -> fold R offline
    WqR, WkR = Wq @ R, Wk @ R
    bqR, bkR = bq @ R, bk @ R

    padw = lambda m: jnp.pad(m, ((0, 0), (0, GROUP_PAD - GROUP)))  # zero-pad (padding lanes stay 0)
    padb = lambda v: jnp.pad(v, (0, GROUP_PAD - GROUP))
    w_big = jnp.concatenate([padw(Wq), padw(Wk), padw(Wv), padw(WqR), padw(WkR)], axis=1)  # [H, 640]
    b_big = jnp.concatenate([padb(bq), padb(bk), padb(bv), padb(bqR), padb(bkR)]).reshape(1, N_PROJ)

    w_out = jnp.pad(params["w_out"], ((0, 0), (0, OUT_PAD - HIDDEN)))   # [GROUP, 128]
    b_out = jnp.pad(params["b_out"], (0, OUT_PAD - HIDDEN)).reshape(1, OUT_PAD)
    return {"w_big": w_big, "b_big": b_big, "w_out": w_out, "b_out": b_out}


# ----------------------------- fused Pallas kernel -----------------------------
def _fused_kernel(x_ref, w_ref, b_ref, cos_ref, sin_ref, maskb_ref,
                  wout_ref, bout_ref, o_ref, *, batch, seq):
    x = x_ref[...]                                                   # [B*S, H]

    # fused projection: all batch rows at once, 5 lane-aligned 128-wide column groups
    mixed = jnp.dot(x, w_ref[...], preferred_element_type=jnp.float32) + b_ref[...]  # [B*S, 640]

    cos = cos_ref[...]                                               # [B*S, 128]
    sin = sin_ref[...]
    # rotary: q*cos + qR*sin (R already folded into the weights); 128-aligned group slices
    q_rot = mixed[:, 0 * GROUP_PAD:1 * GROUP_PAD] * cos + mixed[:, 3 * GROUP_PAD:4 * GROUP_PAD] * sin
    k_rot = mixed[:, 1 * GROUP_PAD:2 * GROUP_PAD] * cos + mixed[:, 4 * GROUP_PAD:5 * GROUP_PAD] * sin
    v_all = mixed[:, 2 * GROUP_PAD:3 * GROUP_PAD]

    bout = bout_ref[...]                                             # [1, 128]

    for b in range(batch):                                           # B=2, unrolled
        r0 = b * seq
        bias_b = maskb_ref[b]                                        # [S, S] additive bias
        acc = None
        for h in range(TOTAL_HEADS):                                 # 5 heads, unrolled
            c0 = h * HEAD_DIM
            q_h = q_rot[r0:r0 + seq, c0:c0 + HEAD_DIM]               # [S, hd]
            k_h = k_rot[r0:r0 + seq, c0:c0 + HEAD_DIM]
            v_h = v_all[r0:r0 + seq, c0:c0 + HEAD_DIM]
            # scores via dot_general (contract dim 1 of both) -- no materialized k_h.T
            s = lax.dot_general(q_h, k_h, (((1,), (1,)), ((), ())),
                                preferred_element_type=jnp.float32)  # [S, S]
            s = s + bias_b
            m = jnp.max(s, axis=-1, keepdims=True)
            e = jnp.exp(s - m)
            p = e * pl.reciprocal(jnp.sum(e, axis=-1, keepdims=True), approx=True)
            ctx_h = jnp.dot(p, v_h, preferred_element_type=jnp.float32)            # [S, hd]
            # per-head output-projection accumulation (sublane-aligned w_out row slice)
            part = jnp.dot(ctx_h, wout_ref[c0:c0 + HEAD_DIM, :],
                           preferred_element_type=jnp.float32)                     # [S, 128]
            acc = part if acc is None else acc + part
        o_ref[r0:r0 + seq, :] = acc + bout                           # lane-dense full-width store


# ----------------------------- forward pass -----------------------------
@partial(jax.jit, static_argnums=(4,))
def chatglm_attention_forward(hidden_states, position_ids, attention_mask, packed, layer_id):
    S, B, H = hidden_states.shape
    coeff = float(layer_id + 1)

    # rotary tables gathered per (batch, seq) and tiled over heads (tiny glue)
    cos_tab, sin_tab = rotary_cos_sin(ROT_DIM, ROTARY_TABLE_LEN)
    pos = position_ids[:, 0, :]                                      # [B, S]
    blk = position_ids[:, 1, :]
    cos_full = jnp.concatenate([cos_tab[pos], cos_tab[blk]], axis=-1)    # [B, S, hd]
    sin_full = jnp.concatenate([sin_tab[pos], sin_tab[blk]], axis=-1)
    cos_t = jnp.tile(cos_full, (1, 1, TOTAL_HEADS)).reshape(B * S, GROUP)
    sin_t = jnp.tile(sin_full, (1, 1, TOTAL_HEADS)).reshape(B * S, GROUP)
    cos_t = jnp.pad(cos_t, ((0, 0), (0, GROUP_PAD - GROUP)))             # [B*S, 128]
    sin_t = jnp.pad(sin_t, ((0, 0), (0, GROUP_PAD - GROUP)))

    # batch-major flattened activations; additive mask bias (masked_fill + *coeff folded)
    x_flat = jnp.transpose(hidden_states, (1, 0, 2)).reshape(B * S, H)
    mask_bias = attention_mask[:, 0].astype(jnp.float32) * (-10000.0 * coeff)   # [B, S, S]

    out_flat = pl.pallas_call(
        partial(_fused_kernel, batch=B, seq=S),
        out_shape=jax.ShapeDtypeStruct((B * S, OUT_PAD), jnp.float32),
        grid=(1,),                                                    # single fused step
        in_specs=[
            pl.BlockSpec((B * S, H), lambda i: (0, 0)),               # x (flattened batch)
            pl.BlockSpec((H, N_PROJ), lambda i: (0, 0)),              # fused projection weight
            pl.BlockSpec((1, N_PROJ), lambda i: (0, 0)),              # fused projection bias
            pl.BlockSpec((B * S, GROUP_PAD), lambda i: (0, 0)),       # cos (lane-padded)
            pl.BlockSpec((B * S, GROUP_PAD), lambda i: (0, 0)),       # sin (lane-padded)
            pl.BlockSpec((B, S, S), lambda i: (0, 0, 0)),             # additive mask bias
            pl.BlockSpec((GROUP, OUT_PAD), lambda i: (0, 0)),         # output weight (lane-padded)
            pl.BlockSpec((1, OUT_PAD), lambda i: (0, 0)),             # output bias  (lane-padded)
        ],
        out_specs=pl.BlockSpec((B * S, OUT_PAD), lambda i: (0, 0)),
        compiler_params=pltpu.CompilerParams(dimension_semantics=("arbitrary",)),
    )(x_flat, packed["w_big"], packed["b_big"], cos_t, sin_t, mask_bias,
      packed["w_out"], packed["b_out"])

    out = out_flat[:, :H].reshape(B, S, H)
    return jnp.transpose(out, (1, 0, 2))                              # [S, B, H]


# ----------------------------- pure-JAX reference (for verification) -----------------------------
def rotate_half(x):
    d = x.shape[-1] // 2
    return jnp.concatenate([-x[..., d:], x[..., :d]], axis=-1)


def apply_rotary_pos_emb_index(q, k, cos, sin, position_id):
    c = cos[position_id][:, :, None, :]                # [S, B, 1, rot_dim]
    s = sin[position_id][:, :, None, :]
    return q * c + rotate_half(q) * s, k * c + rotate_half(k) * s


def reference_forward(hidden_states, position_ids, attention_mask, params, layer_id):
    S, B, H = hidden_states.shape
    coeff = float(layer_id + 1)
    hp = jax.lax.Precision.HIGHEST

    mixed = (
        jnp.einsum("sbh,hn->sbn", hidden_states, params["w_qkv"], precision=hp)
        + params["b_qkv"]
    ).reshape(S, B, TOTAL_HEADS, 3 * HEAD_DIM)
    q, k, v = jnp.split(mixed, 3, axis=-1)

    half = HEAD_DIM // 2
    q1, q2 = q[..., :half], q[..., half:]
    k1, k2 = k[..., :half], k[..., half:]
    cos, sin = rotary_cos_sin(ROT_DIM, ROTARY_TABLE_LEN)
    pos = position_ids[:, 0, :].T
    block_pos = position_ids[:, 1, :].T
    q1, k1 = apply_rotary_pos_emb_index(q1, k1, cos, sin, pos)
    q2, k2 = apply_rotary_pos_emb_index(q2, k2, cos, sin, block_pos)
    q = jnp.concatenate([q1, q2], axis=-1)
    k = jnp.concatenate([k1, k2], axis=-1)

    q = q / (math.sqrt(HEAD_DIM) * coeff)
    scores = jnp.einsum("sbhd,tbhd->bhst", q, k, precision=hp)          # [B, TH, S, S]
    scores = jnp.where(attention_mask, -10000.0, scores)
    probs = jax.nn.softmax(scores * coeff, axis=-1)
    ctx = jnp.einsum("bhst,tbhd->sbhd", probs, v, precision=hp)         # [S, B, TH, hd]
    ctx = ctx.reshape(S, B, TOTAL_HEADS * HEAD_DIM)
    out = (
        jnp.einsum("sbk,kh->sbh", ctx, params["w_out"], precision=hp) + params["b_out"]
    )
    return out


# ----------------------------- main -----------------------------
if __name__ == "__main__":
    # TODO(synk): layer_past / use_cache KV-cache path and output_attentions return are not
    # implemented (single self-attention forward only, matching the default call).
    key = jax.random.PRNGKey(0)
    k1, k2, k3, k4, k5 = jax.random.split(key, 5)

    # synthetic parameters (same shapes as the module's fused linears)
    params = {
        "w_qkv": 0.02 * jax.random.normal(k1, (HIDDEN, TOTAL_HEADS * 3 * HEAD_DIM), jnp.float32),
        "b_qkv": 0.02 * jax.random.normal(k2, (TOTAL_HEADS * 3 * HEAD_DIM,), jnp.float32),
        "w_out": 0.02 * jax.random.normal(k3, (TOTAL_HEADS * HEAD_DIM, HIDDEN), jnp.float32),
        "b_out": 0.02 * jax.random.normal(k4, (HIDDEN,), jnp.float32),
    }
    packed = jax.tree_util.tree_map(jax.block_until_ready, prepare_params(params))

    hidden_states = jax.random.normal(k5, (SEQ, BATCH, HIDDEN), jnp.float32)

    # ChatGLM-style 2D position ids: [batch, 2, seq]
    pos = jnp.arange(SEQ, dtype=jnp.int32)
    block = jnp.zeros((SEQ,), dtype=jnp.int32).at[-1].set(1)
    position_ids = jnp.broadcast_to(jnp.stack([pos, block])[None], (BATCH, 2, SEQ))

    # causal mask: True above diagonal (masked)
    attention_mask = (jnp.triu(jnp.ones((SEQ, SEQ), jnp.int32), k=1) > 0)[None, None]
    attention_mask = jnp.broadcast_to(attention_mask, (BATCH, 1, SEQ, SEQ))

    out = chatglm_attention_forward(
        hidden_states, position_ids, attention_mask, packed, LAYER_ID
    )
    out = jax.block_until_ready(out)

    ref = jax.block_until_ready(
        reference_forward(hidden_states, position_ids, attention_mask, params, LAYER_ID)
    )
    assert out.shape == (SEQ, BATCH, HIDDEN)
    assert jnp.allclose(out, ref, atol=1e-3, rtol=1e-2), "mismatch vs reference"

    print("KERNEL_OK")
</pallas_src>

<mosaic_0001>
module attributes {stable_mosaic.version = 11 : i64} {
  func.func @_fused_kernel(%arg0: i32, %arg1: memref<16x32xf32, #tpu.memory_space<vmem>>, %arg2: memref<32x640xf32, #tpu.memory_space<vmem>>, %arg3: memref<1x640xf32, #tpu.memory_space<vmem>>, %arg4: memref<16x128xf32, #tpu.memory_space<vmem>>, %arg5: memref<16x128xf32, #tpu.memory_space<vmem>>, %arg6: memref<2x8x8xf32, #tpu.memory_space<vmem>>, %arg7: memref<40x128xf32, #tpu.memory_space<vmem>>, %arg8: memref<1x128xf32, #tpu.memory_space<vmem>>, %arg9: memref<16x128xf32, #tpu.memory_space<vmem>>) attributes {dimension_semantics = [#tpu.dimension_semantics<arbitrary>], iteration_bounds = array<i64: 1>, scalar_prefetch = 0 : i64, scratch_operands = 0 : i64, tpu.core_type = #tpu.core_type<tc>, window_params = [{pipeline_mode = #tpu.pipeline_mode<synchronous>, transform_indices = @transform_0, window_bounds = array<i64: 16, 32>}, {pipeline_mode = #tpu.pipeline_mode<synchronous>, transform_indices = @transform_1, window_bounds = array<i64: 32, 640>}, {pipeline_mode = #tpu.pipeline_mode<synchronous>, transform_indices = @transform_2, window_bounds = array<i64: 1, 640>}, {pipeline_mode = #tpu.pipeline_mode<synchronous>, transform_indices = @transform_3, window_bounds = array<i64: 16, 128>}, {pipeline_mode = #tpu.pipeline_mode<synchronous>, transform_indices = @transform_4, window_bounds = array<i64: 16, 128>}, {pipeline_mode = #tpu.pipeline_mode<synchronous>, transform_indices = @transform_5, window_bounds = array<i64: 2, 8, 8>}, {pipeline_mode = #tpu.pipeline_mode<synchronous>, transform_indices = @transform_6, window_bounds = array<i64: 40, 128>}, {pipeline_mode = #tpu.pipeline_mode<synchronous>, transform_indices = @transform_7, window_bounds = array<i64: 1, 128>}, {pipeline_mode = #tpu.pipeline_mode<synchronous>, transform_indices = @transform_8, window_bounds = array<i64: 16, 128>}]} {
    %c0 = arith.constant 0 : index
    %c0_0 = arith.constant 0 : index
    %0 = vector.load %arg1[%c0, %c0_0] : memref<16x32xf32, #tpu.memory_space<vmem>>, vector<16x32xf32>
    %c0_1 = arith.constant 0 : index
    %c0_2 = arith.constant 0 : index
    %1 = vector.load %arg2[%c0_1, %c0_2] : memref<32x640xf32, #tpu.memory_space<vmem>>, vector<32x640xf32>
    %cst = arith.constant dense<0.000000e+00> : vector<16x640xf32>
    %2 = tpu.matmul %0, %1, %cst {dimension_numbers = #tpu.dot_dimension_numbers<[1], [0], [0], [1], [0, 0, 1, 1], [], []>} : vector<16x32xf32>, vector<32x640xf32>, vector<16x640xf32> -> vector<16x640xf32>
    %c0_3 = arith.constant 0 : index
    %c0_4 = arith.constant 0 : index
    %3 = vector.load %arg3[%c0_3, %c0_4] : memref<1x640xf32, #tpu.memory_space<vmem>>, vector<1x640xf32>
    %4 = vector.broadcast %3 : vector<1x640xf32> to vector<16x640xf32>
    %5 = arith.addf %2, %4 : vector<16x640xf32>
    %c0_5 = arith.constant 0 : index
    %c0_6 = arith.constant 0 : index
    %6 = vector.load %arg4[%c0_5, %c0_6] : memref<16x128xf32, #tpu.memory_space<vmem>>, vector<16x128xf32>
    %c0_7 = arith.constant 0 : index
    %c0_8 = arith.constant 0 : index
    %7 = vector.load %arg5[%c0_7, %c0_8] : memref<16x128xf32, #tpu.memory_space<vmem>>, vector<16x128xf32>
    %8 = vector.extract_strided_slice %5 {offsets = [0, 0], sizes = [16, 128], strides = [1, 1]} : vector<16x640xf32> to vector<16x128xf32>
    %9 = arith.mulf %8, %6 : vector<16x128xf32>
    %10 = vector.extract_strided_slice %5 {offsets = [0, 384], sizes = [16, 128], strides = [1, 1]} : vector<16x640xf32> to vector<16x128xf32>
    %11 = arith.mulf %10, %7 : vector<16x128xf32>
    %12 = arith.addf %9, %11 : vector<16x128xf32>
    %13 = vector.extract_strided_slice %5 {offsets = [0, 128], sizes = [16, 128], strides = [1, 1]} : vector<16x640xf32> to vector<16x128xf32>
    %14 = arith.mulf %13, %6 : vector<16x128xf32>
    %15 = vector.extract_strided_slice %5 {offsets = [0, 512], sizes = [16, 128], strides = [1, 1]} : vector<16x640xf32> to vector<16x128xf32>
    %16 = arith.mulf %15, %7 : vector<16x128xf32>
    %17 = arith.addf %14, %16 : vector<16x128xf32>
    %18 = vector.extract_strided_slice %5 {offsets = [0, 256], sizes = [16, 128], strides = [1, 1]} : vector<16x640xf32> to vector<16x128xf32>
    %c0_9 = arith.constant 0 : index
    %c0_10 = arith.constant 0 : index
    %19 = vector.load %arg8[%c0_9, %c0_10] : memref<1x128xf32, #tpu.memory_space<vmem>>, vector<1x128xf32>
    %c0_11 = arith.constant 0 : index
    %c0_12 = arith.constant 0 : index
    %c0_13 = arith.constant 0 : index
    %20 = vector.load %arg6[%c0_11, %c0_12, %c0_13] : memref<2x8x8xf32, #tpu.memory_space<vmem>>, vector<1x8x8xf32>
    %21 = vector.shape_cast %20 : vector<1x8x8xf32> to vector<8x8xf32>
    %22 = vector.extract_strided_slice %12 {offsets = [0, 0], sizes = [8, 8], strides = [1, 1]} : vector<16x128xf32> to vector<8x8xf32>
    %23 = vector.extract_strided_slice %17 {offsets = [0, 0], sizes = [8, 8], strides = [1, 1]} : vector<16x128xf32> to vector<8x8xf32>
    %24 = vector.extract_strided_slice %18 {offsets = [0, 0], sizes = [8, 8], strides = [1, 1]} : vector<16x128xf32> to vector<8x8xf32>
    %cst_14 = arith.constant dense<0.000000e+00> : vector<8x8xf32>
    %25 = tpu.matmul %22, %23, %cst_14 {dimension_numbers = #tpu.dot_dimension_numbers<[1], [1], [0], [0], [0, 0, 1, 0], [], []>} : vector<8x8xf32>, vector<8x8xf32>, vector<8x8xf32> -> vector<8x8xf32>
    %26 = arith.addf %25, %21 : vector<8x8xf32>
    %cst_15 = arith.constant dense<0xFF800000> : vector<8xf32>
    %27 = vector.multi_reduction <maximumf>, %26, %cst_15 [1] : vector<8x8xf32> to vector<8xf32>
    %28 = vector.shape_cast %27 : vector<8xf32> to vector<8x1xf32>
    %29 = vector.broadcast %28 : vector<8x1xf32> to vector<8x8xf32>
    %30 = arith.subf %26, %29 : vector<8x8xf32>
    %31 = math.exp %30 : vector<8x8xf32>
    %cst_16 = arith.constant dense<0.000000e+00> : vector<8xf32>
    %32 = vector.multi_reduction <add>, %31, %cst_16 [1] : vector<8x8xf32> to vector<8xf32>
    %33 = vector.shape_cast %32 : vector<8xf32> to vector<8x1xf32>
    %34 = tpu.reciprocal %33 {approx = true} : vector<8x1xf32> -> vector<8x1xf32>
    %35 = vector.broadcast %34 : vector<8x1xf32> to vector<8x8xf32>
    %36 = arith.mulf %31, %35 : vector<8x8xf32>
    %cst_17 = arith.constant dense<0.000000e+00> : vector<8x8xf32>
    %37 = tpu.matmul %36, %24, %cst_17 {dimension_numbers = #tpu.dot_dimension_numbers<[1], [0], [0], [1], [0, 0, 1, 1], [], []>} : vector<8x8xf32>, vector<8x8xf32>, vector<8x8xf32> -> vector<8x8xf32>
    %c0_18 = arith.constant 0 : index
    %c0_19 = arith.constant 0 : index
    %38 = vector.load %arg7[%c0_18, %c0_19] : memref<40x128xf32, #tpu.memory_space<vmem>>, vector<8x128xf32>
    %cst_20 = arith.constant dense<0.000000e+00> : vector<8x128xf32>
    %39 = tpu.matmul %37, %38, %cst_20 {dimension_numbers = #tpu.dot_dimension_numbers<[1], [0], [0], [1], [0, 0, 1, 1], [], []>} : vector<8x8xf32>, vector<8x128xf32>, vector<8x128xf32> -> vector<8x128xf32>
    %40 = vector.extract_strided_slice %12 {offsets = [0, 8], sizes = [8, 8], strides = [1, 1]} : vector<16x128xf32> to vector<8x8xf32>
    %41 = vector.extract_strided_slice %17 {offsets = [0, 8], sizes = [8, 8], strides = [1, 1]} : vector<16x128xf32> to vector<8x8xf32>
    %42 = vector.extract_strided_slice %18 {offsets = [0, 8], sizes = [8, 8], strides = [1, 1]} : vector<16x128xf32> to vector<8x8xf32>
    %cst_21 = arith.constant dense<0.000000e+00> : vector<8x8xf32>
    %43 = tpu.matmul %40, %41, %cst_21 {dimension_numbers = #tpu.dot_dimension_numbers<[1], [1], [0], [0], [0, 0, 1, 0], [], []>} : vector<8x8xf32>, vector<8x8xf32>, vector<8x8xf32> -> vector<8x8xf32>
    %44 = arith.addf %43, %21 : vector<8x8xf32>
    %cst_22 = arith.constant dense<0xFF800000> : vector<8xf32>
    %45 = vector.multi_reduction <maximumf>, %44, %cst_22 [1] : vector<8x8xf32> to vector<8xf32>
    %46 = vector.shape_cast %45 : vector<8xf32> to vector<8x1xf32>
    %47 = vector.broadcast %46 : vector<8x1xf32> to vector<8x8xf32>
    %48 = arith.subf %44, %47 : vector<8x8xf32>
    %49 = math.exp %48 : vector<8x8xf32>
    %cst_23 = arith.constant dense<0.000000e+00> : vector<8xf32>
    %50 = vector.multi_reduction <add>, %49, %cst_23 [1] : vector<8x8xf32> to vector<8xf32>
    %51 = vector.shape_cast %50 : vector<8xf32> to vector<8x1xf32>
    %52 = tpu.reciprocal %51 {approx = true} : vector<8x1xf32> -> vector<8x1xf32>
    %53 = vector.broadcast %52 : vector<8x1xf32> to vector<8x8xf32>
    %54 = arith.mulf %49, %53 : vector<8x8xf32>
    %cst_24 = arith.constant dense<0.000000e+00> : vector<8x8xf32>
    %55 = tpu.matmul %54, %42, %cst_24 {dimension_numbers = #tpu.dot_dimension_numbers<[1], [0], [0], [1], [0, 0, 1, 1], [], []>} : vector<8x8xf32>, vector<8x8xf32>, vector<8x8xf32> -> vector<8x8xf32>
    %c8 = arith.constant 8 : index
    %c0_25 = arith.constant 0 : index
    %56 = vector.load %arg7[%c8, %c0_25] : memref<40x128xf32, #tpu.memory_space<vmem>>, vector<8x128xf32>
    %cst_26 = arith.constant dense<0.000000e+00> : vector<8x128xf32>
    %57 = tpu.matmul %55, %56, %cst_26 {dimension_numbers = #tpu.dot_dimension_numbers<[1], [0], [0], [1], [0, 0, 1, 1], [], []>} : vector<8x8xf32>, vector<8x128xf32>, vector<8x128xf32> -> vector<8x128xf32>
    %58 = arith.addf %39, %57 : vector<8x128xf32>
    %59 = vector.extract_strided_slice %12 {offsets = [0, 16], sizes = [8, 8], strides = [1, 1]} : vector<16x128xf32> to vector<8x8xf32>
    %60 = vector.extract_strided_slice %17 {offsets = [0, 16], sizes = [8, 8], strides = [1, 1]} : vector<16x128xf32> to vector<8x8xf32>
    %61 = vector.extract_strided_slice %18 {offsets = [0, 16], sizes = [8, 8], strides = [1, 1]} : vector<16x128xf32> to vector<8x8xf32>
    %cst_27 = arith.constant dense<0.000000e+00> : vector<8x8xf32>
    %62 = tpu.matmul %59, %60, %cst_27 {dimension_numbers = #tpu.dot_dimension_numbers<[1], [1], [0], [0], [0, 0, 1, 0], [], []>} : vector<8x8xf32>, vector<8x8xf32>, vector<8x8xf32> -> vector<8x8xf32>
    %63 = arith.addf %62, %21 : vector<8x8xf32>
    %cst_28 = arith.constant dense<0xFF800000> : vector<8xf32>
    %64 = vector.multi_reduction <maximumf>, %63, %cst_28 [1] : vector<8x8xf32> to vector<8xf32>
    %65 = vector.shape_cast %64 : vector<8xf32> to vector<8x1xf32>
    %66 = vector.broadcast %65 : vector<8x1xf32> to vector<8x8xf32>
    %67 = arith.subf %63, %66 : vector<8x8xf32>
    %68 = math.exp %67 : vector<8x8xf32>
    %cst_29 = arith.constant dense<0.000000e+00> : vector<8xf32>
    %69 = vector.multi_reduction <add>, %68, %cst_29 [1] : vector<8x8xf32> to vector<8xf32>
    %70 = vector.shape_cast %69 : vector<8xf32> to vector<8x1xf32>
    %71 = tpu.reciprocal %70 {approx = true} : vector<8x1xf32> -> vector<8x1xf32>
    %72 = vector.broadcast %71 : vector<8x1xf32> to vector<8x8xf32>
    %73 = arith.mulf %68, %72 : vector<8x8xf32>
    %cst_30 = arith.constant dense<0.000000e+00> : vector<8x8xf32>
    %74 = tpu.matmul %73, %61, %cst_30 {dimension_numbers = #tpu.dot_dimension_numbers<[1], [0], [0], [1], [0, 0, 1, 1], [], []>} : vector<8x8xf32>, vector<8x8xf32>, vector<8x8xf32> -> vector<8x8xf32>
    %c16 = arith.constant 16 : index
    %c0_31 = arith.constant 0 : index
    %75 = vector.load %arg7[%c16, %c0_31] : memref<40x128xf32, #tpu.memory_space<vmem>>, vector<8x128xf32>
    %cst_32 = arith.constant dense<0.000000e+00> : vector<8x128xf32>
    %76 = tpu.matmul %74, %75, %cst_32 {dimension_numbers = #tpu.dot_dimension_numbers<[1], [0], [0], [1], [0, 0, 1, 1], [], []>} : vector<8x8xf32>, vector<8x128xf32>, vector<8x128xf32> -> vector<8x128xf32>
    %77 = arith.addf %58, %76 : vector<8x128xf32>
    %78 = vector.extract_strided_slice %12 {offsets = [0, 24], sizes = [8, 8], strides = [1, 1]} : vector<16x128xf32> to vector<8x8xf32>
    %79 = vector.extract_strided_slice %17 {offsets = [0, 24], sizes = [8, 8], strides = [1, 1]} : vector<16x128xf32> to vector<8x8xf32>
    %80 = vector.extract_strided_slice %18 {offsets = [0, 24], sizes = [8, 8], strides = [1, 1]} : vector<16x128xf32> to vector<8x8xf32>
    %cst_33 = arith.constant dense<0.000000e+00> : vector<8x8xf32>
    %81 = tpu.matmul %78, %79, %cst_33 {dimension_numbers = #tpu.dot_dimension_numbers<[1], [1], [0], [0], [0, 0, 1, 0], [], []>} : vector<8x8xf32>, vector<8x8xf32>, vector<8x8xf32> -> vector<8x8xf32>
    %82 = arith.addf %81, %21 : vector<8x8xf32>
    %cst_34 = arith.constant dense<0xFF800000> : vector<8xf32>
    %83 = vector.multi_reduction <maximumf>, %82, %cst_34 [1] : vector<8x8xf32> to vector<8xf32>
    %84 = vector.shape_cast %83 : vector<8xf32> to vector<8x1xf32>
    %85 = vector.broadcast %84 : vector<8x1xf32> to vector<8x8xf32>
    %86 = arith.subf %82, %85 : vector<8x8xf32>
    %87 = math.exp %86 : vector<8x8xf32>
    %cst_35 = arith.constant dense<0.000000e+00> : vector<8xf32>
    %88 = vector.multi_reduction <add>, %87, %cst_35 [1] : vector<8x8xf32> to vector<8xf32>
    %89 = vector.shape_cast %88 : vector<8xf32> to vector<8x1xf32>
    %90 = tpu.reciprocal %89 {approx = true} : vector<8x1xf32> -> vector<8x1xf32>
    %91 = vector.broadcast %90 : vector<8x1xf32> to vector<8x8xf32>
    %92 = arith.mulf %87, %91 : vector<8x8xf32>
    %cst_36 = arith.constant dense<0.000000e+00> : vector<8x8xf32>
    %93 = tpu.matmul %92, %80, %cst_36 {dimension_numbers = #tpu.dot_dimension_numbers<[1], [0], [0], [1], [0, 0, 1, 1], [], []>} : vector<8x8xf32>, vector<8x8xf32>, vector<8x8xf32> -> vector<8x8xf32>
    %c24 = arith.constant 24 : index
    %c0_37 = arith.constant 0 : index
    %94 = vector.load %arg7[%c24, %c0_37] : memref<40x128xf32, #tpu.memory_space<vmem>>, vector<8x128xf32>
    %cst_38 = arith.constant dense<0.000000e+00> : vector<8x128xf32>
    %95 = tpu.matmul %93, %94, %cst_38 {dimension_numbers = #tpu.dot_dimension_numbers<[1], [0], [0], [1], [0, 0, 1, 1], [], []>} : vector<8x8xf32>, vector<8x128xf32>, vector<8x128xf32> -> vector<8x128xf32>
    %96 = arith.addf %77, %95 : vector<8x128xf32>
    %97 = vector.extract_strided_slice %12 {offsets = [0, 32], sizes = [8, 8], strides = [1, 1]} : vector<16x128xf32> to vector<8x8xf32>
    %98 = vector.extract_strided_slice %17 {offsets = [0, 32], sizes = [8, 8], strides = [1, 1]} : vector<16x128xf32> to vector<8x8xf32>
    %99 = vector.extract_strided_slice %18 {offsets = [0, 32], sizes = [8, 8], strides = [1, 1]} : vector<16x128xf32> to vector<8x8xf32>
    %cst_39 = arith.constant dense<0.000000e+00> : vector<8x8xf32>
    %100 = tpu.matmul %97, %98, %cst_39 {dimension_numbers = #tpu.dot_dimension_numbers<[1], [1], [0], [0], [0, 0, 1, 0], [], []>} : vector<8x8xf32>, vector<8x8xf32>, vector<8x8xf32> -> vector<8x8xf32>
    %101 = arith.addf %100, %21 : vector<8x8xf32>
    %cst_40 = arith.constant dense<0xFF800000> : vector<8xf32>
    %102 = vector.multi_reduction <maximumf>, %101, %cst_40 [1] : vector<8x8xf32> to vector<8xf32>
    %103 = vector.shape_cast %102 : vector<8xf32> to vector<8x1xf32>
    %104 = vector.broadcast %103 : vector<8x1xf32> to vector<8x8xf32>
    %105 = arith.subf %101, %104 : vector<8x8xf32>
    %106 = math.exp %105 : vector<8x8xf32>
    %cst_41 = arith.constant dense<0.000000e+00> : vector<8xf32>
    %107 = vector.multi_reduction <add>, %106, %cst_41 [1] : vector<8x8xf32> to vector<8xf32>
    %108 = vector.shape_cast %107 : vector<8xf32> to vector<8x1xf32>
    %109 = tpu.reciprocal %108 {approx = true} : vector<8x1xf32> -> vector<8x1xf32>
    %110 = vector.broadcast %109 : vector<8x1xf32> to vector<8x8xf32>
    %111 = arith.mulf %106, %110 : vector<8x8xf32>
    %cst_42 = arith.constant dense<0.000000e+00> : vector<8x8xf32>
    %112 = tpu.matmul %111, %99, %cst_42 {dimension_numbers = #tpu.dot_dimension_numbers<[1], [0], [0], [1], [0, 0, 1, 1], [], []>} : vector<8x8xf32>, vector<8x8xf32>, vector<8x8xf32> -> vector<8x8xf32>
    %c32 = arith.constant 32 : index
    %c0_43 = arith.constant 0 : index
    %113 = vector.load %arg7[%c32, %c0_43] : memref<40x128xf32, #tpu.memory_space<vmem>>, vector<8x128xf32>
    %cst_44 = arith.constant dense<0.000000e+00> : vector<8x128xf32>
    %114 = tpu.matmul %112, %113, %cst_44 {dimension_numbers = #tpu.dot_dimension_numbers<[1], [0], [0], [1], [0, 0, 1, 1], [], []>} : vector<8x8xf32>, vector<8x128xf32>, vector<8x128xf32> -> vector<8x128xf32>
    %115 = arith.addf %96, %114 : vector<8x128xf32>
    %116 = vector.broadcast %19 : vector<1x128xf32> to vector<8x128xf32>
    %117 = arith.addf %115, %116 : vector<8x128xf32>
    %c0_45 = arith.constant 0 : index
    %c0_46 = arith.constant 0 : index
    %118 = vector.load %arg9[%c0_45, %c0_46] : memref<16x128xf32, #tpu.memory_space<vmem>>, vector<8x128xf32>
    tpu.vector_store %arg9[%c0_45, %c0_46], %117 {strides = array<i32>} : memref<16x128xf32, #tpu.memory_space<vmem>>, vector<8x128xf32>,
    %c1 = arith.constant 1 : index
    %c0_47 = arith.constant 0 : index
    %c0_48 = arith.constant 0 : index
    %119 = vector.load %arg6[%c1, %c0_47, %c0_48] : memref<2x8x8xf32, #tpu.memory_space<vmem>>, vector<1x8x8xf32>
    %120 = vector.shape_cast %119 : vector<1x8x8xf32> to vector<8x8xf32>
    %121 = vector.extract_strided_slice %12 {offsets = [8, 0], sizes = [8, 8], strides = [1, 1]} : vector<16x128xf32> to vector<8x8xf32>
    %122 = vector.extract_strided_slice %17 {offsets = [8, 0], sizes = [8, 8], strides = [1, 1]} : vector<16x128xf32> to vector<8x8xf32>
    %123 = vector.extract_strided_slice %18 {offsets = [8, 0], sizes = [8, 8], strides = [1, 1]} : vector<16x128xf32> to vector<8x8xf32>
    %cst_49 = arith.constant dense<0.000000e+00> : vector<8x8xf32>
    %124 = tpu.matmul %121, %122, %cst_49 {dimension_numbers = #tpu.dot_dimension_numbers<[1], [1], [0], [0], [0, 0, 1, 0], [], []>} : vector<8x8xf32>, vector<8x8xf32>, vector<8x8xf32> -> vector<8x8xf32>
    %125 = arith.addf %124, %120 : vector<8x8xf32>
    %cst_50 = arith.constant dense<0xFF800000> : vector<8xf32>
    %126 = vector.multi_reduction <maximumf>, %125, %cst_50 [1] : vector<8x8xf32> to vector<8xf32>
    %127 = vector.shape_cast %126 : vector<8xf32> to vector<8x1xf32>
    %128 = vector.broadcast %127 : vector<8x1xf32> to vector<8x8xf32>
    %129 = arith.subf %125, %128 : vector<8x8xf32>
    %130 = math.exp %129 : vector<8x8xf32>
    %cst_51 = arith.constant dense<0.000000e+00> : vector<8xf32>
    %131 = vector.multi_reduction <add>, %130, %cst_51 [1] : vector<8x8xf32> to vector<8xf32>
    %132 = vector.shape_cast %131 : vector<8xf32> to vector<8x1xf32>
    %133 = tpu.reciprocal %132 {approx = true} : vector<8x1xf32> -> vector<8x1xf32>
    %134 = vector.broadcast %133 : vector<8x1xf32> to vector<8x8xf32>
    %135 = arith.mulf %130, %134 : vector<8x8xf32>
    %cst_52 = arith.constant dense<0.000000e+00> : vector<8x8xf32>
    %136 = tpu.matmul %135, %123, %cst_52 {dimension_numbers = #tpu.dot_dimension_numbers<[1], [0], [0], [1], [0, 0, 1, 1], [], []>} : vector<8x8xf32>, vector<8x8xf32>, vector<8x8xf32> -> vector<8x8xf32>
    %c0_53 = arith.constant 0 : index
    %c0_54 = arith.constant 0 : index
    %137 = vector.load %arg7[%c0_53, %c0_54] : memref<40x128xf32, #tpu.memory_space<vmem>>, vector<8x128xf32>
    %cst_55 = arith.constant dense<0.000000e+00> : vector<8x128xf32>
    %138 = tpu.matmul %136, %137, %cst_55 {dimension_numbers = #tpu.dot_dimension_numbers<[1], [0], [0], [1], [0, 0, 1, 1], [], []>} : vector<8x8xf32>, vector<8x128xf32>, vector<8x128xf32> -> vector<8x128xf32>
    %139 = vector.extract_strided_slice %12 {offsets = [8, 8], sizes = [8, 8], strides = [1, 1]} : vector<16x128xf32> to vector<8x8xf32>
    %140 = vector.extract_strided_slice %17 {offsets = [8, 8], sizes = [8, 8], strides = [1, 1]} : vector<16x128xf32> to vector<8x8xf32>
    %141 = vector.extract_strided_slice %18 {offsets = [8, 8], sizes = [8, 8], strides = [1, 1]} : vector<16x128xf32> to vector<8x8xf32>
    %cst_56 = arith.constant dense<0.000000e+00> : vector<8x8xf32>
    %142 = tpu.matmul %139, %140, %cst_56 {dimension_numbers = #tpu.dot_dimension_numbers<[1], [1], [0], [0], [0, 0, 1, 0], [], []>} : vector<8x8xf32>, vector<8x8xf32>, vector<8x8xf32> -> vector<8x8xf32>
    %143 = arith.addf %142, %120 : vector<8x8xf32>
    %cst_57 = arith.constant dense<0xFF800000> : vector<8xf32>
    %144 = vector.multi_reduction <maximumf>, %143, %cst_57 [1] : vector<8x8xf32> to vector<8xf32>
    %145 = vector.shape_cast %144 : vector<8xf32> to vector<8x1xf32>
    %146 = vector.broadcast %145 : vector<8x1xf32> to vector<8x8xf32>
    %147 = arith.subf %143, %146 : vector<8x8xf32>
    %148 = math.exp %147 : vector<8x8xf32>
    %cst_58 = arith.constant dense<0.000000e+00> : vector<8xf32>
    %149 = vector.multi_reduction <add>, %148, %cst_58 [1] : vector<8x8xf32> to vector<8xf32>
    %150 = vector.shape_cast %149 : vector<8xf32> to vector<8x1xf32>
    %151 = tpu.reciprocal %150 {approx = true} : vector<8x1xf32> -> vector<8x1xf32>
    %152 = vector.broadcast %151 : vector<8x1xf32> to vector<8x8xf32>
    %153 = arith.mulf %148, %152 : vector<8x8xf32>
    %cst_59 = arith.constant dense<0.000000e+00> : vector<8x8xf32>
    %154 = tpu.matmul %153, %141, %cst_59 {dimension_numbers = #tpu.dot_dimension_numbers<[1], [0], [0], [1], [0, 0, 1, 1], [], []>} : vector<8x8xf32>, vector<8x8xf32>, vector<8x8xf32> -> vector<8x8xf32>
    %c8_60 = arith.constant 8 : index
    %c0_61 = arith.constant 0 : index
    %155 = vector.load %arg7[%c8_60, %c0_61] : memref<40x128xf32, #tpu.memory_space<vmem>>, vector<8x128xf32>
    %cst_62 = arith.constant dense<0.000000e+00> : vector<8x128xf32>
    %156 = tpu.matmul %154, %155, %cst_62 {dimension_numbers = #tpu.dot_dimension_numbers<[1], [0], [0], [1], [0, 0, 1, 1], [], []>} : vector<8x8xf32>, vector<8x128xf32>, vector<8x128xf32> -> vector<8x128xf32>
    %157 = arith.addf %138, %156 : vector<8x128xf32>
    %158 = vector.extract_strided_slice %12 {offsets = [8, 16], sizes = [8, 8], strides = [1, 1]} : vector<16x128xf32> to vector<8x8xf32>
    %159 = vector.extract_strided_slice %17 {offsets = [8, 16], sizes = [8, 8], strides = [1, 1]} : vector<16x128xf32> to vector<8x8xf32>
    %160 = vector.extract_strided_slice %18 {offsets = [8, 16], sizes = [8, 8], strides = [1, 1]} : vector<16x128xf32> to vector<8x8xf32>
    %cst_63 = arith.constant dense<0.000000e+00> : vector<8x8xf32>
    %161 = tpu.matmul %158, %159, %cst_63 {dimension_numbers = #tpu.dot_dimension_numbers<[1], [1], [0], [0], [0, 0, 1, 0], [], []>} : vector<8x8xf32>, vector<8x8xf32>, vector<8x8xf32> -> vector<8x8xf32>
    %162 = arith.addf %161, %120 : vector<8x8xf32>
    %cst_64 = arith.constant dense<0xFF800000> : vector<8xf32>
    %163 = vector.multi_reduction <maximumf>, %162, %cst_64 [1] : vector<8x8xf32> to vector<8xf32>
    %164 = vector.shape_cast %163 : vector<8xf32> to vector<8x1xf32>
    %165 = vector.broadcast %164 : vector<8x1xf32> to vector<8x8xf32>
    %166 = arith.subf %162, %165 : vector<8x8xf32>
    %167 = math.exp %166 : vector<8x8xf32>
    %cst_65 = arith.constant dense<0.000000e+00> : vector<8xf32>
    %168 = vector.multi_reduction <add>, %167, %cst_65 [1] : vector<8x8xf32> to vector<8xf32>
    %169 = vector.shape_cast %168 : vector<8xf32> to vector<8x1xf32>
    %170 = tpu.reciprocal %169 {approx = true} : vector<8x1xf32> -> vector<8x1xf32>
    %171 = vector.broadcast %170 : vector<8x1xf32> to vector<8x8xf32>
    %172 = arith.mulf %167, %171 : vector<8x8xf32>
    %cst_66 = arith.constant dense<0.000000e+00> : vector<8x8xf32>
    %173 = tpu.matmul %172, %160, %cst_66 {dimension_numbers = #tpu.dot_dimension_numbers<[1], [0], [0], [1], [0, 0, 1, 1], [], []>} : vector<8x8xf32>, vector<8x8xf32>, vector<8x8xf32> -> vector<8x8xf32>
    %c16_67 = arith.constant 16 : index
    %c0_68 = arith.constant 0 : index
    %174 = vector.load %arg7[%c16_67, %c0_68] : memref<40x128xf32, #tpu.memory_space<vmem>>, vector<8x128xf32>
    %cst_69 = arith.constant dense<0.000000e+00> : vector<8x128xf32>
    %175 = tpu.matmul %173, %174, %cst_69 {dimension_numbers = #tpu.dot_dimension_numbers<[1], [0], [0], [1], [0, 0, 1, 1], [], []>} : vector<8x8xf32>, vector<8x128xf32>, vector<8x128xf32> -> vector<8x128xf32>
    %176 = arith.addf %157, %175 : vector<8x128xf32>
    %177 = vector.extract_strided_slice %12 {offsets = [8, 24], sizes = [8, 8], strides = [1, 1]} : vector<16x128xf32> to vector<8x8xf32>
    %178 = vector.extract_strided_slice %17 {offsets = [8, 24], sizes = [8, 8], strides = [1, 1]} : vector<16x128xf32> to vector<8x8xf32>
    %179 = vector.extract_strided_slice %18 {offsets = [8, 24], sizes = [8, 8], strides = [1, 1]} : vector<16x128xf32> to vector<8x8xf32>
    %cst_70 = arith.constant dense<0.000000e+00> : vector<8x8xf32>
    %180 = tpu.matmul %177, %178, %cst_70 {dimension_numbers = #tpu.dot_dimension_numbers<[1], [1], [0], [0], [0, 0, 1, 0], [], []>} : vector<8x8xf32>, vector<8x8xf32>, vector<8x8xf32> -> vector<8x8xf32>
    %181 = arith.addf %180, %120 : vector<8x8xf32>
    %cst_71 = arith.constant dense<0xFF800000> : vector<8xf32>
    %182 = vector.multi_reduction <maximumf>, %181, %cst_71 [1] : vector<8x8xf32> to vector<8xf32>
    %183 = vector.shape_cast %182 : vector<8xf32> to vector<8x1xf32>
    %184 = vector.broadcast %183 : vector<8x1xf32> to vector<8x8xf32>
    %185 = arith.subf %181, %184 : vector<8x8xf32>
    %186 = math.exp %185 : vector<8x8xf32>
    %cst_72 = arith.constant dense<0.000000e+00> : vector<8xf32>
    %187 = vector.multi_reduction <add>, %186, %cst_72 [1] : vector<8x8xf32> to vector<8xf32>
    %188 = vector.shape_cast %187 : vector<8xf32> to vector<8x1xf32>
    %189 = tpu.reciprocal %188 {approx = true} : vector<8x1xf32> -> vector<8x1xf32>
    %190 = vector.broadcast %189 : vector<8x1xf32> to vector<8x8xf32>
    %191 = arith.mulf %186, %190 : vector<8x8xf32>
    %cst_73 = arith.constant dense<0.000000e+00> : vector<8x8xf32>
    %192 = tpu.matmul %191, %179, %cst_73 {dimension_numbers = #tpu.dot_dimension_numbers<[1], [0], [0], [1], [0, 0, 1, 1], [], []>} : vector<8x8xf32>, vector<8x8xf32>, vector<8x8xf32> -> vector<8x8xf32>
    %c24_74 = arith.constant 24 : index
    %c0_75 = arith.constant 0 : index
    %193 = vector.load %arg7[%c24_74, %c0_75] : memref<40x128xf32, #tpu.memory_space<vmem>>, vector<8x128xf32>
    %cst_76 = arith.constant dense<0.000000e+00> : vector<8x128xf32>
    %194 = tpu.matmul %192, %193, %cst_76 {dimension_numbers = #tpu.dot_dimension_numbers<[1], [0], [0], [1], [0, 0, 1, 1], [], []>} : vector<8x8xf32>, vector<8x128xf32>, vector<8x128xf32> -> vector<8x128xf32>
    %195 = arith.addf %176, %194 : vector<8x128xf32>
    %196 = vector.extract_strided_slice %12 {offsets = [8, 32], sizes = [8, 8], strides = [1, 1]} : vector<16x128xf32> to vector<8x8xf32>
    %197 = vector.extract_strided_slice %17 {offsets = [8, 32], sizes = [8, 8], strides = [1, 1]} : vector<16x128xf32> to vector<8x8xf32>
    %198 = vector.extract_strided_slice %18 {offsets = [8, 32], sizes = [8, 8], strides = [1, 1]} : vector<16x128xf32> to vector<8x8xf32>
    %cst_77 = arith.constant dense<0.000000e+00> : vector<8x8xf32>
    %199 = tpu.matmul %196, %197, %cst_77 {dimension_numbers = #tpu.dot_dimension_numbers<[1], [1], [0], [0], [0, 0, 1, 0], [], []>} : vector<8x8xf32>, vector<8x8xf32>, vector<8x8xf32> -> vector<8x8xf32>
    %200 = arith.addf %199, %120 : vector<8x8xf32>
    %cst_78 = arith.constant dense<0xFF800000> : vector<8xf32>
    %201 = vector.multi_reduction <maximumf>, %200, %cst_78 [1] : vector<8x8xf32> to vector<8xf32>
    %202 = vector.shape_cast %201 : vector<8xf32> to vector<8x1xf32>
    %203 = vector.broadcast %202 : vector<8x1xf32> to vector<8x8xf32>
    %204 = arith.subf %200, %203 : vector<8x8xf32>
    %205 = math.exp %204 : vector<8x8xf32>
    %cst_79 = arith.constant dense<0.000000e+00> : vector<8xf32>
    %206 = vector.multi_reduction <add>, %205, %cst_79 [1] : vector<8x8xf32> to vector<8xf32>
    %207 = vector.shape_cast %206 : vector<8xf32> to vector<8x1xf32>
    %208 = tpu.reciprocal %207 {approx = true} : vector<8x1xf32> -> vector<8x1xf32>
    %209 = vector.broadcast %208 : vector<8x1xf32> to vector<8x8xf32>
    %210 = arith.mulf %205, %209 : vector<8x8xf32>
    %cst_80 = arith.constant dense<0.000000e+00> : vector<8x8xf32>
    %211 = tpu.matmul %210, %198, %cst_80 {dimension_numbers = #tpu.dot_dimension_numbers<[1], [0], [0], [1], [0, 0, 1, 1], [], []>} : vector<8x8xf32>, vector<8x8xf32>, vector<8x8xf32> -> vector<8x8xf32>
    %c32_81 = arith.constant 32 : index
    %c0_82 = arith.constant 0 : index
    %212 = vector.load %arg7[%c32_81, %c0_82] : memref<40x128xf32, #tpu.memory_space<vmem>>, vector<8x128xf32>
    %cst_83 = arith.constant dense<0.000000e+00> : vector<8x128xf32>
    %213 = tpu.matmul %211, %212, %cst_83 {dimension_numbers = #tpu.dot_dimension_numbers<[1], [0], [0], [1], [0, 0, 1, 1], [], []>} : vector<8x8xf32>, vector<8x128xf32>, vector<8x128xf32> -> vector<8x128xf32>
    %214 = arith.addf %195, %213 : vector<8x128xf32>
    %215 = vector.broadcast %19 : vector<1x128xf32> to vector<8x128xf32>
    %216 = arith.addf %214, %215 : vector<8x128xf32>
    %c8_84 = arith.constant 8 : index
    %c0_85 = arith.constant 0 : index
    %217 = vector.load %arg9[%c8_84, %c0_85] : memref<16x128xf32, #tpu.memory_space<vmem>>, vector<8x128xf32>
    tpu.vector_store %arg9[%c8_84, %c0_85], %216 {strides = array<i32>} : memref<16x128xf32, #tpu.memory_space<vmem>>, vector<8x128xf32>,
    return
  }
  func.func @transform_0(%arg0: i32) -> (i32, i32) {
    %c0_i32 = arith.constant 0 : i32
    %c0_i32_0 = arith.constant 0 : i32
    %c0_i32_1 = arith.constant 0 : i32
    return %c0_i32, %c0_i32_0 : i32, i32
  }
  func.func @transform_1(%arg0: i32) -> (i32, i32) {
    %c0_i32 = arith.constant 0 : i32
    %c0_i32_0 = arith.constant 0 : i32
    %c0_i32_1 = arith.constant 0 : i32
    return %c0_i32, %c0_i32_0 : i32, i32
  }
  func.func @transform_2(%arg0: i32) -> (i32, i32) {
    %c0_i32 = arith.constant 0 : i32
    %c0_i32_0 = arith.constant 0 : i32
    %c0_i32_1 = arith.constant 0 : i32
    return %c0_i32, %c0_i32_0 : i32, i32
  }
  func.func @transform_3(%arg0: i32) -> (i32, i32) {
    %c0_i32 = arith.constant 0 : i32
    %c0_i32_0 = arith.constant 0 : i32
    %c0_i32_1 = arith.constant 0 : i32
    return %c0_i32, %c0_i32_0 : i32, i32
  }
  func.func @transform_4(%arg0: i32) -> (i32, i32) {
    %c0_i32 = arith.constant 0 : i32
    %c0_i32_0 = arith.constant 0 : i32
    %c0_i32_1 = arith.constant 0 : i32
    return %c0_i32, %c0_i32_0 : i32, i32
  }
  func.func @transform_5(%arg0: i32) -> (i32, i32, i32) {
    %c0_i32 = arith.constant 0 : i32
    %c0_i32_0 = arith.constant 0 : i32
    %c0_i32_1 = arith.constant 0 : i32
    %c0_i32_2 = arith.constant 0 : i32
    return %c0_i32, %c0_i32_0, %c0_i32_1 : i32, i32, i32
  }
  func.func @transform_6(%arg0: i32) -> (i32, i32) {
    %c0_i32 = arith.constant 0 : i32
    %c0_i32_0 = arith.constant 0 : i32
    %c0_i32_1 = arith.constant 0 : i32
    return %c0_i32, %c0_i32_0 : i32, i32
  }
  func.func @transform_7(%arg0: i32) -> (i32, i32) {
    %c0_i32 = arith.constant 0 : i32
    %c0_i32_0 = arith.constant 0 : i32
    %c0_i32_1 = arith.constant 0 : i32
    return %c0_i32, %c0_i32_0 : i32, i32
  }
  func.func @transform_8(%arg0: i32) -> (i32, i32) {
    %c0_i32 = arith.constant 0 : i32
    %c0_i32_0 = arith.constant 0 : i32
    %c0_i32_1 = arith.constant 0 : i32
    return %c0_i32, %c0_i32_0 : i32, i32
  }
}

</mosaic_0001>

<llo_original>
// kernel: tile.19
$region0: #{tile.19}
  %s0 = inlined_call_operand.vmem [shape: f32[2,1,8,5,8], index: 0, kind: input, shape index: {}]
  %s1 = inlined_call_operand.vmem [shape: f32[16,40], index: 1, kind: output, shape index: {}]
  $region1: #{tile.19} parent=0
    #allocation0 [shape = 'u8[163840]{0}', space=vmem, size = 0x28000, scoped, tag = 'scoped mem for input reshape']
    %s3 = sshll.u32 1, 2
    %s4 = ssub.s32 %s3, 1
    %s5 = smul.addr 2, 39
    %s6 = scalar_lea.vmem %s0, %s5
    %v7 = vld [vmem:[%s6] sm:%s4]
    %s8 = scalar_lea.vmem [#allocation0], 312
    %9 = vst [vmem:[%s8] sm:%s4] %v7
    %s10 = smul.addr 2, 38
    %s11 = scalar_lea.vmem %s0, %s10
    %v12 = vld [vmem:[%s11] sm:%s4]
    %s13 = scalar_lea.vmem [#allocation0], 304
    %14 = vst [vmem:[%s13] sm:%s4] %v12
    %s15 = smul.addr 2, 37
    %s16 = scalar_lea.vmem %s0, %s15
    %v17 = vld [vmem:[%s16] sm:%s4]
    %s18 = scalar_lea.vmem [#allocation0], 296
    %19 = vst [vmem:[%s18] sm:%s4] %v17
    %s20 = smul.addr 2, 36
    %s21 = scalar_lea.vmem %s0, %s20
    %v22 = vld [vmem:[%s21] sm:%s4]
    %s23 = scalar_lea.vmem [#allocation0], 288
    %24 = vst [vmem:[%s23] sm:%s4] %v22
    %s25 = smul.addr 2, 35
    %s26 = scalar_lea.vmem %s0, %s25
    %v27 = vld [vmem:[%s26] sm:%s4]
    %s28 = scalar_lea.vmem [#allocation0], 280
    %29 = vst [vmem:[%s28] sm:%s4] %v27
    %s30 = smul.addr 2, 34
    %s31 = scalar_lea.vmem %s0, %s30
    %v32 = vld [vmem:[%s31] sm:%s4]
    %s33 = scalar_lea.vmem [#allocation0], 272
    %34 = vst [vmem:[%s33] sm:%s4] %v32
    %s35 = smul.addr 2, 33
    %s36 = scalar_lea.vmem %s0, %s35
    %v37 = vld [vmem:[%s36] sm:%s4]
    %s38 = scalar_lea.vmem [#allocation0], 264
    %39 = vst [vmem:[%s38] sm:%s4] %v37
    %s40 = smul.addr 2, 32
    %s41 = scalar_lea.vmem %s0, %s40
    %v42 = vld [vmem:[%s41] sm:%s4]
    %s43 = scalar_lea.vmem [#allocation0], 256
    %44 = vst [vmem:[%s43] sm:%s4] %v42
    %s45 = smul.addr 2, 31
    %s46 = scalar_lea.vmem %s0, %s45
    %v47 = vld [vmem:[%s46] sm:%s4]
    %s48 = scalar_lea.vmem [#allocation0], 248
    %49 = vst [vmem:[%s48] sm:%s4] %v47
    %s50 = smul.addr 2, 30
    %s51 = scalar_lea.vmem %s0, %s50
    %v52 = vld [vmem:[%s51] sm:%s4]
    %s53 = scalar_lea.vmem [#allocation0], 240
    %54 = vst [vmem:[%s53] sm:%s4] %v52
    %s55 = smul.addr 2, 29
    %s56 = scalar_lea.vmem %s0, %s55
    %v57 = vld [vmem:[%s56] sm:%s4]
    %s58 = scalar_lea.vmem [#allocation0], 232
    %59 = vst [vmem:[%s58] sm:%s4] %v57
    %s60 = smul.addr 2, 28
    %s61 = scalar_lea.vmem %s0, %s60
    %v62 = vld [vmem:[%s61] sm:%s4]
    %s63 = scalar_lea.vmem [#allocation0], 224
    %64 = vst [vmem:[%s63] sm:%s4] %v62
    %s65 = smul.addr 2, 27
    %s66 = scalar_lea.vmem %s0, %s65
    %v67 = vld [vmem:[%s66] sm:%s4]
    %s68 = scalar_lea.vmem [#allocation0], 216
    %69 = vst [vmem:[%s68] sm:%s4] %v67
    %s70 = smul.addr 2, 26
    %s71 = scalar_lea.vmem %s0, %s70
    %v72 = vld [vmem:[%s71] sm:%s4]
    %s73 = scalar_lea.vmem [#allocation0], 208
    %74 = vst [vmem:[%s73] sm:%s4] %v72
    %s75 = smul.addr 2, 25
    %s76 = scalar_lea.vmem %s0, %s75
    %v77 = vld [vmem:[%s76] sm:%s4]
    %s78 = scalar_lea.vmem [#allocation0], 200
    %79 = vst [vmem:[%s78] sm:%s4] %v77
    %s80 = smul.addr 2, 24
    %s81 = scalar_lea.vmem %s0, %s80
    %v82 = vld [vmem:[%s81] sm:%s4]
    %s83 = scalar_lea.vmem [#allocation0], 192
    %84 = vst [vmem:[%s83] sm:%s4] %v82
    %s85 = smul.addr 2, 23
    %s86 = scalar_lea.vmem %s0, %s85
    %v87 = vld [vmem:[%s86] sm:%s4]
    %s88 = scalar_lea.vmem [#allocation0], 184
    %89 = vst [vmem:[%s88] sm:%s4] %v87
    %s90 = smul.addr 2, 22
    %s91 = scalar_lea.vmem %s0, %s90
    %v92 = vld [vmem:[%s91] sm:%s4]
    %s93 = scalar_lea.vmem [#allocation0], 176
    %94 = vst [vmem:[%s93] sm:%s4] %v92
    %s95 = smul.addr 2, 21
    %s96 = scalar_lea.vmem %s0, %s95
    %v97 = vld [vmem:[%s96] sm:%s4]
    %s98 = scalar_lea.vmem [#allocation0], 168
    %99 = vst [vmem:[%s98] sm:%s4] %v97
    %s100 = smul.addr 2, 20
    %s101 = scalar_lea.vmem %s0, %s100
    %v102 = vld [vmem:[%s101] sm:%s4]
    %s103 = scalar_lea.vmem [#allocation0], 160
    %104 = vst [vmem:[%s103] sm:%s4] %v102
    %s105 = smul.addr 2, 19
    %s106 = scalar_lea.vmem %s0, %s105
    %v107 = vld [vmem:[%s106] sm:%s4]
    %s108 = scalar_lea.vmem [#allocation0], 152
    %109 = vst [vmem:[%s108] sm:%s4] %v107
    %s110 = smul.addr 2, 18
    %s111 = scalar_lea.vmem %s0, %s110
    %v112 = vld [vmem:[%s111] sm:%s4]
    %s113 = scalar_lea.vmem [#allocation0], 144
    %114 = vst [vmem:[%s113] sm:%s4] %v112
    %s115 = smul.addr 2, 17
    %s116 = scalar_lea.vmem %s0, %s115
    %v117 = vld [vmem:[%s116] sm:%s4]
    %s118 = scalar_lea.vmem [#allocation0], 136
    %119 = vst [vmem:[%s118] sm:%s4] %v117
    %s120 = smul.addr 2, 16
    %s121 = scalar_lea.vmem %s0, %s120
    %v122 = vld [vmem:[%s121] sm:%s4]
    %s123 = scalar_lea.vmem [#allocation0], 128
    %124 = vst [vmem:[%s123] sm:%s4] %v122
    %s125 = smul.addr 2, 15
    %s126 = scalar_lea.vmem %s0, %s125
    %v127 = vld [vmem:[%s126] sm:%s4]
    %s128 = scalar_lea.vmem [#allocation0], 120
    %129 = vst [vmem:[%s128] sm:%s4] %v127
    %s130 = smul.addr 2, 14
    %s131 = scalar_lea.vmem %s0, %s130
    %v132 = vld [vmem:[%s131] sm:%s4]
    %s133 = scalar_lea.vmem [#allocation0], 112
    %134 = vst [vmem:[%s133] sm:%s4] %v132
    %s135 = smul.addr 2, 13
    %s136 = scalar_lea.vmem %s0, %s135
    %v137 = vld [vmem:[%s136] sm:%s4]
    %s138 = scalar_lea.vmem [#allocation0], 104
    %139 = vst [vmem:[%s138] sm:%s4] %v137
    %s140 = smul.addr 2, 12
    %s141 = scalar_lea.vmem %s0, %s140
    %v142 = vld [vmem:[%s141] sm:%s4]
    %s143 = scalar_lea.vmem [#allocation0], 96
    %144 = vst [vmem:[%s143] sm:%s4] %v142
    %s145 = smul.addr 2, 11
    %s146 = scalar_lea.vmem %s0, %s145
    %v147 = vld [vmem:[%s146] sm:%s4]
    %s148 = scalar_lea.vmem [#allocation0], 88
    %149 = vst [vmem:[%s148] sm:%s4] %v147
    %s150 = smul.addr 2, 10
    %s151 = scalar_lea.vmem %s0, %s150
    %v152 = vld [vmem:[%s151] sm:%s4]
    %s153 = scalar_lea.vmem [#allocation0], 80
    %154 = vst [vmem:[%s153] sm:%s4] %v152
    %s155 = smul.addr 2, 9
    %s156 = scalar_lea.vmem %s0, %s155
    %v157 = vld [vmem:[%s156] sm:%s4]
    %s158 = scalar_lea.vmem [#allocation0], 72
    %159 = vst [vmem:[%s158] sm:%s4] %v157
    %s160 = smul.addr 2, 8
    %s161 = scalar_lea.vmem %s0, %s160
    %v162 = vld [vmem:[%s161] sm:%s4]
    %s163 = scalar_lea.vmem [#allocation0], 64
    %164 = vst [vmem:[%s163] sm:%s4] %v162
    %s165 = smul.addr 2, 7
    %s166 = scalar_lea.vmem %s0, %s165
    %v167 = vld [vmem:[%s166] sm:%s4]
    %s168 = scalar_lea.vmem [#allocation0], 56
    %169 = vst [vmem:[%s168] sm:%s4] %v167
    %s170 = smul.addr 2, 6
    %s171 = scalar_lea.vmem %s0, %s170
    %v172 = vld [vmem:[%s171] sm:%s4]
    %s173 = scalar_lea.vmem [#allocation0], 48
    %174 = vst [vmem:[%s173] sm:%s4] %v172
    %s175 = smul.addr 2, 5
    %s176 = scalar_lea.vmem %s0, %s175
    %v177 = vld [vmem:[%s176] sm:%s4]
    %s178 = scalar_lea.vmem [#allocation0], 40
    %179 = vst [vmem:[%s178] sm:%s4] %v177
    %s180 = smul.addr 2, 4
    %s181 = scalar_lea.vmem %s0, %s180
    %v182 = vld [vmem:[%s181] sm:%s4]
    %s183 = scalar_lea.vmem [#allocation0], 32
    %184 = vst [vmem:[%s183] sm:%s4] %v182
    %s185 = smul.addr 2, 3
    %s186 = scalar_lea.vmem %s0, %s185
    %v187 = vld [vmem:[%s186] sm:%s4]
    %s188 = scalar_lea.vmem [#allocation0], 24
    %189 = vst [vmem:[%s188] sm:%s4] %v187
    %s190 = smul.addr 2, 2
    %s191 = scalar_lea.vmem %s0, %s190
    %v192 = vld [vmem:[%s191] sm:%s4]
    %s193 = scalar_lea.vmem [#allocation0], 16
    %194 = vst [vmem:[%s193] sm:%s4] %v192
    %s195 = scalar_lea.vmem %s0, 2
    %v196 = vld [vmem:[%s195] sm:%s4]
    %s197 = scalar_lea.vmem [#allocation0], 8
    %198 = vst [vmem:[%s197] sm:%s4] %v196
    %v199 = vld [vmem:[%s0] sm:%s4]
    %200 = vst [vmem:[#allocation0] sm:%s4] %v199
    %v201 = vld [vmem:[#allocation0] ss:$8 sm:$0xf]
    %v202 = vld [vmem:[#allocation0] ss:$8 sm:$0xf0]
    %vm203 = vcmask 1047556
    %v204 = vsel %vm203, %v202, %v201
    %vm205 = vcmask 64512
    %206 = vst.msk [vmem:[%s1] sm:$0xff] %vm205, %v204
    %s207 = scalar_lea.vmem [#allocation0], 64
    %v208 = vld [vmem:[%s207] ss:$8 sm:$0xf]
    %s209 = scalar_lea.vmem [#allocation0], 64
    %v210 = vld [vmem:[%s209] ss:$8 sm:$0xf0]
    %vm211 = vcmask 1047556
    %v212 = vsel %vm211, %v210, %v208
    %vm213 = vcmask 64512
    %s214 = scalar_lea.vmem %s1, 8
    %215 = vst.msk [vmem:[%s214] sm:$0xff] %vm213, %v212
    %s216 = scalar_lea.vmem [#allocation0], 128
    %v217 = vld [vmem:[%s216] ss:$8 sm:$0xf]
    %s218 = scalar_lea.vmem [#allocation0], 128
    %v219 = vld [vmem:[%s218] ss:$8 sm:$0xf0]
    %vm220 = vcmask 1047556
    %v221 = vsel %vm220, %v219, %v217
    %vm222 = vcmask 64512
    %s223 = scalar_lea.vmem %s1, 16
    %224 = vst.msk [vmem:[%s223] sm:$0xff] %vm222, %v221
    %s225 = scalar_lea.vmem [#allocation0], 192
    %v226 = vld [vmem:[%s225] ss:$8 sm:$0xf]
    %s227 = scalar_lea.vmem [#allocation0], 192
    %v228 = vld [vmem:[%s227] ss:$8 sm:$0xf0]
    %vm229 = vcmask 1047556
    %v230 = vsel %vm229, %v228, %v226
    %vm231 = vcmask 64512
    %s232 = scalar_lea.vmem %s1, 24
    %233 = vst.msk [vmem:[%s232] sm:$0xff] %vm231, %v230
    %s234 = scalar_lea.vmem [#allocation0], 256
    %v235 = vld [vmem:[%s234] ss:$8 sm:$0xf]
    %s236 = scalar_lea.vmem [#allocation0], 256
    %v237 = vld [vmem:[%s236] ss:$8 sm:$0xf0]
    %vm238 = vcmask 1047556
    %v239 = vsel %vm238, %v237, %v235
    %vm240 = vcmask 64512
    %s241 = scalar_lea.vmem %s1, 32
    %242 = vst.msk [vmem:[%s241] sm:$0xff] %vm240, %v239
    %s243 = scalar_lea.vmem [#allocation0], 1
    %v244 = vld [vmem:[%s243] ss:$8 sm:$0xf]
    %s245 = scalar_lea.vmem [#allocation0], 1
    %v246 = vld [vmem:[%s245] ss:$8 sm:$0xf0]
    %vm247 = vcmask 1047556
    %v248 = vsel %vm247, %v246, %v244
    %249 = vrot.lane.b32.xlu0 %v248, 8
    %v250 = vpop.permute.xlu0 %249
    %vm251 = vcmask 130112
    %252 = vst.msk [vmem:[%s1] sm:$0xff] %vm251, %v250
    %s253 = scalar_lea.vmem [#allocation0], 257
    %v254 = vld [vmem:[%s253] ss:$8 sm:$0xf]
    %s255 = scalar_lea.vmem [#allocation0], 257
    %v256 = vld [vmem:[%s255] ss:$8 sm:$0xf0]
    %vm257 = vcmask 1047556
    %v258 = vsel %vm257, %v256, %v254
    %259 = vrot.lane.b32.xlu0 %v258, 8
    %v260 = vpop.permute.xlu0 %259
    %vm261 = vcmask 130112
    %s262 = scalar_lea.vmem %s1, 32
    %263 = vst.msk [vmem:[%s262] sm:$0xff] %vm261, %v260
    %s264 = scalar_lea.vmem [#allocation0], 65
    %v265 = vld [vmem:[%s264] ss:$8 sm:$0xf]
    %s266 = scalar_lea.vmem [#allocation0], 65
    %v267 = vld [vmem:[%s266] ss:$8 sm:$0xf0]
    %vm268 = vcmask 1047556
    %v269 = vsel %vm268, %v267, %v265
    %270 = vrot.lane.b32.xlu0 %v269, 8
    %v271 = vpop.permute.xlu0 %270
    %vm272 = vcmask 130112
    %s273 = scalar_lea.vmem %s1, 8
    %274 = vst.msk [vmem:[%s273] sm:$0xff] %vm272, %v271
    %s275 = scalar_lea.vmem [#allocation0], 129
    %v276 = vld [vmem:[%s275] ss:$8 sm:$0xf]
    %s277 = scalar_lea.vmem [#allocation0], 129
    %v278 = vld [vmem:[%s277] ss:$8 sm:$0xf0]
    %vm279 = vcmask 1047556
    %v280 = vsel %vm279, %v278, %v276
    %281 = vrot.lane.b32.xlu0 %v280, 8
    %v282 = vpop.permute.xlu0 %281
    %vm283 = vcmask 130112
    %s284 = scalar_lea.vmem %s1, 16
    %285 = vst.msk [vmem:[%s284] sm:$0xff] %vm283, %v282
    %s286 = scalar_lea.vmem [#allocation0], 193
    %v287 = vld [vmem:[%s286] ss:$8 sm:$0xf]
    %s288 = scalar_lea.vmem [#allocation0], 193
    %v289 = vld [vmem:[%s288] ss:$8 sm:$0xf0]
    %vm290 = vcmask 1047556
    %v291 = vsel %vm290, %v289, %v287
    %292 = vrot.lane.b32.xlu0 %v291, 8
    %v293 = vpop.permute.xlu0 %292
    %vm294 = vcmask 130112
    %s295 = scalar_lea.vmem %s1, 24
    %296 = vst.msk [vmem:[%s295] sm:$0xff] %vm294, %v293

// kernel: chatglm_attention_forward.1
$region0: #{chatglm_attention_forward.1}
  #allocation0 [shape = 'u32[]', space=smem, size = 0x4, offset = 0x4, fixed_abs, tag = 'smem constant byte address 0x4 - core index']
  #allocation1 [shape = 'u32[144,128]{1,0:T(1,128)}', space=vmem, size = 0x12000, scoped, tag = 'internal scratch']
  %s0 = inlined_call_operand.vmem [shape: f32[16,32], index: 0, kind: input, shape index: {}]
  %s1 = inlined_call_operand.vmem [shape: f32[32,640], index: 1, kind: input, shape index: {}]
  %s2 = inlined_call_operand.vmem [shape: f32[1,640], index: 2, kind: input, shape index: {}]
  %s3 = inlined_call_operand.vmem [shape: f32[16,128], index: 3, kind: input, shape index: {}]
  %s4 = inlined_call_operand.vmem [shape: f32[16,128], index: 4, kind: input, shape index: {}]
  %s5 = inlined_call_operand.vmem [shape: f32[2,8,8], index: 5, kind: input, shape index: {}]
  %s6 = inlined_call_operand.vmem [shape: f32[40,128], index: 6, kind: input, shape index: {}]
  %s7 = inlined_call_operand.vmem [shape: f32[1,128], index: 7, kind: input, shape index: {}]
  %s8 = inlined_call_operand.vmem [shape: f32[16,128], index: 8, kind: output, shape index: {}]
  %s9 = sld [smem:[#allocation0]]
  $region42: #{chatglm_attention_forward.1} parent=0
    _
  %s11 = ssub.s32 1, %s9
  %s12 = scalar_select 0, %s11, %s9
  // Predicated region
  $region2: #{chatglm_attention_forward.1} parent=0 // pred_check
    _
  $region3: #{chatglm_attention_forward.1} parent=0 // pred_check_branch
    %14 = sbr.rel (0) target = $region5
  $region4: #{chatglm_attention_forward.1} parent=0 // pred_region
    _
  $region5: #{chatglm_attention_forward.1} parent=0 // pred_fallthru
    _
  // Predicated region
  $region6: #{chatglm_attention_forward.1} parent=0 // pred_check
    _
  $region7: #{chatglm_attention_forward.1} parent=0 // pred_check_branch
    %16 = sbr.rel (0) target = $region9
  $region8: #{chatglm_attention_forward.1} parent=0 // pred_region
    _
  $region9: #{chatglm_attention_forward.1} parent=0 // pred_fallthru
    _
  // Predicated region
  $region10: #{chatglm_attention_forward.1} parent=0 // pred_check
    _
  $region11: #{chatglm_attention_forward.1} parent=0 // pred_check_branch
    %18 = sbr.rel (0) target = $region13
  $region12: #{chatglm_attention_forward.1} parent=0 // pred_region
    _
  $region13: #{chatglm_attention_forward.1} parent=0 // pred_fallthru
    _
  // Predicated region
  $region14: #{chatglm_attention_forward.1} parent=0 // pred_check
    _
  $region15: #{chatglm_attention_forward.1} parent=0 // pred_check_branch
    %20 = sbr.rel (0) target = $region17
  $region16: #{chatglm_attention_forward.1} parent=0 // pred_region
    _
  $region17: #{chatglm_attention_forward.1} parent=0 // pred_fallthru
    _
  // Predicated region
  $region18: #{chatglm_attention_forward.1} parent=0 // pred_check
    _
  $region19: #{chatglm_attention_forward.1} parent=0 // pred_check_branch
    %22 = sbr.rel (0) target = $region21
  $region20: #{chatglm_attention_forward.1} parent=0 // pred_region
    _
  $region21: #{chatglm_attention_forward.1} parent=0 // pred_fallthru
    _
  // Predicated region
  $region22: #{chatglm_attention_forward.1} parent=0 // pred_check
    _
  $region23: #{chatglm_attention_forward.1} parent=0 // pred_check_branch
    %24 = sbr.rel (0) target = $region25
  $region24: #{chatglm_attention_forward.1} parent=0 // pred_region
    _
  $region25: #{chatglm_attention_forward.1} parent=0 // pred_fallthru
    _
  // Predicated region
  $region26: #{chatglm_attention_forward.1} parent=0 // pred_check
    _
  $region27: #{chatglm_attention_forward.1} parent=0 // pred_check_branch
    %26 = sbr.rel (0) target = $region29
  $region28: #{chatglm_attention_forward.1} parent=0 // pred_region
    _
  $region29: #{chatglm_attention_forward.1} parent=0 // pred_fallthru
    _
  // Predicated region
  $region30: #{chatglm_attention_forward.1} parent=0 // pred_check
    _
  $region31: #{chatglm_attention_forward.1} parent=0 // pred_check_branch
    %28 = sbr.rel (0) target = $region33
  $region32: #{chatglm_attention_forward.1} parent=0 // pred_region
    _
  $region33: #{chatglm_attention_forward.1} parent=0 // pred_fallthru
    _
  %v29 = vld [vmem:[%s0] sm:$0xff]
  %v30 = vld [vmem:[%s0 + $0x8] sm:$0xff]
  %v31 = vld [vmem:[%s1] sm:$0xff]
  %v32 = vld [vmem:[%s1 + $0x8] sm:$0xff]
  %v33 = vld [vmem:[%s1 + $0x10] sm:$0xff]
  %v34 = vld [vmem:[%s1 + $0x18] sm:$0xff]
  %v35 = vld [vmem:[%s1 + $0x20] sm:$0xff]
  %v36 = vld [vmem:[%s1 + $0x28] sm:$0xff]
  %v37 = vld [vmem:[%s1 + $0x30] sm:$0xff]
  %v38 = vld [vmem:[%s1 + $0x38] sm:$0xff]
  %v39 = vld [vmem:[%s1 + $0x40] sm:$0xff]
  %v40 = vld [vmem:[%s1 + $0x48] sm:$0xff]
  %v41 = vld [vmem:[%s1 + $0x50] sm:$0xff]
  %v42 = vld [vmem:[%s1 + $0x58] sm:$0xff]
  %v43 = vld [vmem:[%s1 + $0x60] sm:$0xff]
  %v44 = vld [vmem:[%s1 + $0x68] sm:$0xff]
  %v45 = vld [vmem:[%s1 + $0x70] sm:$0xff]
  %v46 = vld [vmem:[%s1 + $0x78] sm:$0xff]
  %v47 = vld [vmem:[%s1 + $0x80] sm:$0xff]
  %v48 = vld [vmem:[%s1 + $0x88] sm:$0xff]
  %v49 = vld [vmem:[%s1 + $0x90] sm:$0xff]
  %v50 = vld [vmem:[%s1 + $0x98] sm:$0xff]
  %v51 = vld [vmem:[%s2] sm:$0x1f]
  %v53 = vlaneseq
  %v54 = vshrl.u32 %v53, 7
  %v55 = vsub.s32 0, %v54
  %v56 = vrot.slane %v51, %v55
  %v57 = vlaneseq
  %v58 = vshrl.u32 %v57, 7
  %v59 = vsub.s32 1, %v58
  %v60 = vrot.slane %v51, %v59
  %v61 = vlaneseq
  %v62 = vshrl.u32 %v61, 7
  %v63 = vsub.s32 2, %v62
  %v64 = vrot.slane %v51, %v63
  %v65 = vlaneseq
  %v66 = vshrl.u32 %v65, 7
  %v67 = vsub.s32 3, %v66
  %v68 = vrot.slane %v51, %v67
  %v69 = vlaneseq
  %v70 = vshrl.u32 %v69, 7
  %v71 = vsub.s32 4, %v70
  %v72 = vrot.slane %v51, %v71
  %vm78 = vcmask 261120
  %v80 = vsel %vm78, %v29, 0
  %v83 = vsel %vm78, %v30, 0
  %85 = vmatprep.subr.mxu0 0.0
  %86 = vmatpush1.msra.mxu0 0.0
  %87 = vmatprep.subr.mxu0 0.0
  %88 = vmatpush1.msra.mxu0 0.0
  %89 = vmatprep.subr.mxu0 0.0
  %90 = vmatpush1.msra.mxu0 0.0
  %91 = vmatprep.subr.mxu0 0.0
  %92 = vmatpush1.msra.mxu0 0.0
  %93 = vmatprep.subr.mxu0 0.0
  %94 = vmatpush1.msra.mxu0 0.0
  %95 = vmatprep.subr.mxu0 0.0
  %96 = vmatpush1.msra.mxu0 0.0
  %97 = vmatprep.subr.mxu0 0.0
  %98 = vmatpush1.msra.mxu0 0.0
  %99 = vmatprep.subr.mxu0 0.0
  %100 = vmatpush1.msra.mxu0 0.0
  %101 = vmatprep.subr.mxu0 0.0
  %102 = vmatpush1.msra.mxu0 0.0
  %103 = vmatprep.subr.mxu0 0.0
  %104 = vmatpush1.msra.mxu0 0.0
  %105 = vmatprep.subr.mxu0 0.0
  %106 = vmatpush1.msra.mxu0 0.0
  %107 = vmatprep.subr.mxu0 0.0
  %108 = vmatpush1.msra.mxu0 0.0
  %109 = vmatprep.subr.mxu0 %v47
  %110 = vmatpush1.msra.mxu0 %v46
  %111 = vmatprep.subr.mxu0 %v42
  %112 = vmatpush1.msra.mxu0 %v41
  %113 = vmatprep.subr.mxu0 %v37
  %114 = vmatpush1.msra.mxu0 %v36
  %115 = vmatprep.subr.mxu0 %v32
  %116 = vmatpush1.msra.mxu0 %v31
  %117 = vmatprep.subr.mxu0 0.0
  %118 = vmatpush2.msra.mxu0 0.0
  %119 = vmatprep.subr.mxu0 0.0
  %120 = vmatpush2.msra.mxu0 0.0
  %121 = vmatprep.subr.mxu0 0.0
  %122 = vmatpush2.msra.mxu0 0.0
  %123 = vmatprep.subr.mxu0 0.0
  %124 = vmatpush2.msra.mxu0 0.0
  %125 = vmatprep.subr.mxu0 0.0
  %126 = vmatpush2.msra.mxu0 0.0
  %127 = vmatprep.subr.mxu0 0.0
  %128 = vmatpush2.msra.mxu0 0.0
  %129 = vmatprep.subr.mxu0 0.0
  %130 = vmatpush2.msra.mxu0 0.0
  %131 = vmatprep.subr.mxu0 0.0
  %132 = vmatpush2.msra.mxu0 0.0
  %133 = vmatprep.subr.mxu0 0.0
  %134 = vmatpush2.msra.mxu0 0.0
  %135 = vmatprep.subr.mxu0 0.0
  %136 = vmatpush2.msra.mxu0 0.0
  %137 = vmatprep.subr.mxu0 0.0
  %138 = vmatpush2.msra.mxu0 0.0
  %139 = vmatprep.subr.mxu0 0.0
  %140 = vmatpush2.msra.mxu0 0.0
  %141 = vmatprep.subr.mxu0 0.0
  %142 = vmatpush2.msra.mxu0 0.0
  %143 = vmatprep.subr.mxu0 0.0
  %144 = vmatpush2.msra.mxu0 0.0
  %145 = vmatprep.subr.mxu0 0.0
  %146 = vmatpush2.msra.mxu0 0.0
  %147 = vmatprep.subr.mxu0 0.0
  %148 = vmatpush2.msra.mxu0 0.0
  %149 = vmatprep.mubr.f32.mxu0 0.0
  %150 = vmatmul.mubr.f32.gmra.mxu0 %v80
  %v151 = vpop.f32.mrf.mxu0
  %v152 = vadd.f32 %v56, %v151
  %v153 = vpop.f32.mrf.mxu0
  %v154 = vadd.f32 %v60, %v153
  %155 = vmatprep.mubr.f32.mxu0 0.0
  %156 = vmatmul.mubr.f32.gmra.mxu0 %v83
  %v157 = vpop.f32.mrf.mxu0
  %v158 = vadd.f32 %v56, %v157
  %v159 = vpop.f32.mrf.mxu0
  %v160 = vadd.f32 %v60, %v159
  %161 = vdwg.mxu0
  %162 = vmatprep.subr.mxu0 0.0
  %163 = vmatpush1.msra.mxu0 0.0
  %164 = vmatprep.subr.mxu0 0.0
  %165 = vmatpush1.msra.mxu0 0.0
  %166 = vmatprep.subr.mxu0 0.0
  %167 = vmatpush1.msra.mxu0 0.0
  %168 = vmatprep.subr.mxu0 0.0
  %169 = vmatpush1.msra.mxu0 0.0
  %170 = vmatprep.subr.mxu0 0.0
  %171 = vmatpush1.msra.mxu0 0.0
  %172 = vmatprep.subr.mxu0 0.0
  %173 = vmatpush1.msra.mxu0 0.0
  %174 = vmatprep.subr.mxu0 0.0
  %175 = vmatpush1.msra.mxu0 0.0
  %176 = vmatprep.subr.mxu0 0.0
  %177 = vmatpush1.msra.mxu0 0.0
  %178 = vmatprep.subr.mxu0 0.0
  %179 = vmatpush1.msra.mxu0 0.0
  %180 = vmatprep.subr.mxu0 0.0
  %181 = vmatpush1.msra.mxu0 0.0
  %182 = vmatprep.subr.mxu0 0.0
  %183 = vmatpush1.msra.mxu0 0.0
  %184 = vmatprep.subr.mxu0 0.0
  %185 = vmatpush1.msra.mxu0 0.0
  %186 = vmatprep.subr.mxu0 %v49
  %187 = vmatpush1.msra.mxu0 %v48
  %188 = vmatprep.subr.mxu0 %v44
  %189 = vmatpush1.msra.mxu0 %v43
  %190 = vmatprep.subr.mxu0 %v39
  %191 = vmatpush1.msra.mxu0 %v38
  %192 = vmatprep.subr.mxu0 %v34
  %193 = vmatpush1.msra.mxu0 %v33
  %194 = vmatprep.subr.mxu0 0.0
  %195 = vmatpush2.msra.mxu0 0.0
  %196 = vmatprep.subr.mxu0 0.0
  %197 = vmatpush2.msra.mxu0 0.0
  %198 = vmatprep.subr.mxu0 0.0
  %199 = vmatpush2.msra.mxu0 0.0
  %200 = vmatprep.subr.mxu0 0.0
  %201 = vmatpush2.msra.mxu0 0.0
  %202 = vmatprep.subr.mxu0 0.0
  %203 = vmatpush2.msra.mxu0 0.0
  %204 = vmatprep.subr.mxu0 0.0
  %205 = vmatpush2.msra.mxu0 0.0
  %206 = vmatprep.subr.mxu0 0.0
  %207 = vmatpush2.msra.mxu0 0.0
  %208 = vmatprep.subr.mxu0 0.0
  %209 = vmatpush2.msra.mxu0 0.0
  %210 = vmatprep.subr.mxu0 0.0
  %211 = vmatpush2.msra.mxu0 0.0
  %212 = vmatprep.subr.mxu0 0.0
  %213 = vmatpush2.msra.mxu0 0.0
  %214 = vmatprep.subr.mxu0 0.0
  %215 = vmatpush2.msra.mxu0 0.0
  %216 = vmatprep.subr.mxu0 0.0
  %217 = vmatpush2.msra.mxu0 0.0
  %218 = vmatprep.subr.mxu0 0.0
  %219 = vmatpush2.msra.mxu0 0.0
  %220 = vmatprep.subr.mxu0 0.0
  %221 = vmatpush2.msra.mxu0 0.0
  %222 = vmatprep.subr.mxu0 0.0
  %223 = vmatpush2.msra.mxu0 0.0
  %224 = vmatprep.subr.mxu0 0.0
  %225 = vmatpush2.msra.mxu0 0.0
  %226 = vmatprep.mubr.f32.mxu0 0.0
  %227 = vmatmul.mubr.f32.gmra.mxu0 %v80
  %v228 = vpop.f32.mrf.mxu0
  %v229 = vadd.f32 %v64, %v228
  %v230 = vpop.f32.mrf.mxu0
  %v231 = vadd.f32 %v68, %v230
  %232 = vmatprep.mubr.f32.mxu0 0.0
  %233 = vmatmul.mubr.f32.gmra.mxu0 %v83
  %v234 = vpop.f32.mrf.mxu0
  %v235 = vadd.f32 %v64, %v234
  %v236 = vpop.f32.mrf.mxu0
  %v237 = vadd.f32 %v68, %v236
  %238 = vdwg.mxu0
  %239 = vmatprep.subr.mxu0 0.0
  %240 = vmatpush1.msra.mxu0 0.0
  %241 = vmatprep.subr.mxu0 0.0
  %242 = vmatpush1.msra.mxu0 0.0
  %243 = vmatprep.subr.mxu0 0.0
  %244 = vmatpush1.msra.mxu0 0.0
  %245 = vmatprep.subr.mxu0 0.0
  %246 = vmatpush1.msra.mxu0 0.0
  %247 = vmatprep.subr.mxu0 0.0
  %248 = vmatpush1.msra.mxu0 0.0
  %249 = vmatprep.subr.mxu0 0.0
  %250 = vmatpush1.msra.mxu0 0.0
  %251 = vmatprep.subr.mxu0 0.0
  %252 = vmatpush1.msra.mxu0 0.0
  %253 = vmatprep.subr.mxu0 0.0
  %254 = vmatpush1.msra.mxu0 0.0
  %255 = vmatprep.subr.mxu0 0.0
  %256 = vmatpush1.msra.mxu0 0.0
  %257 = vmatprep.subr.mxu0 0.0
  %258 = vmatpush1.msra.mxu0 0.0
  %259 = vmatprep.subr.mxu0 0.0
  %260 = vmatpush1.msra.mxu0 0.0
  %261 = vmatprep.subr.mxu0 0.0
  %262 = vmatpush1.msra.mxu0 0.0
  %263 = vmatprep.subr.mxu0 0.0
  %264 = vmatpush1.msra.mxu0 %v50
  %265 = vmatprep.subr.mxu0 0.0
  %266 = vmatpush1.msra.mxu0 %v45
  %267 = vmatprep.subr.mxu0 0.0
  %268 = vmatpush1.msra.mxu0 %v40
  %269 = vmatprep.subr.mxu0 0.0
  %270 = vmatpush1.msra.mxu0 %v35
  %271 = vmatprep.subr.mxu0 0.0
  %272 = vmatpush2.msra.mxu0 0.0
  %273 = vmatprep.subr.mxu0 0.0
  %274 = vmatpush2.msra.mxu0 0.0
  %275 = vmatprep.subr.mxu0 0.0
  %276 = vmatpush2.msra.mxu0 0.0
  %277 = vmatprep.subr.mxu0 0.0
  %278 = vmatpush2.msra.mxu0 0.0
  %279 = vmatprep.subr.mxu0 0.0
  %280 = vmatpush2.msra.mxu0 0.0
  %281 = vmatprep.subr.mxu0 0.0
  %282 = vmatpush2.msra.mxu0 0.0
  %283 = vmatprep.subr.mxu0 0.0
  %284 = vmatpush2.msra.mxu0 0.0
  %285 = vmatprep.subr.mxu0 0.0
  %286 = vmatpush2.msra.mxu0 0.0
  %287 = vmatprep.subr.mxu0 0.0
  %288 = vmatpush2.msra.mxu0 0.0
  %289 = vmatprep.subr.mxu0 0.0
  %290 = vmatpush2.msra.mxu0 0.0
  %291 = vmatprep.subr.mxu0 0.0
  %292 = vmatpush2.msra.mxu0 0.0
  %293 = vmatprep.subr.mxu0 0.0
  %294 = vmatpush2.msra.mxu0 0.0
  %295 = vmatprep.subr.mxu0 0.0
  %296 = vmatpush2.msra.mxu0 0.0
  %297 = vmatprep.subr.mxu0 0.0
  %298 = vmatpush2.msra.mxu0 0.0
  %299 = vmatprep.subr.mxu0 0.0
  %300 = vmatpush2.msra.mxu0 0.0
  %301 = vmatprep.subr.mxu0 0.0
  %302 = vmatpush2.msra.mxu0 0.0
  %303 = vmatprep.mubr.f32.mxu0 0.0
  %304 = vmatmul.mubr.f32.gmra.mxu0 %v80
  %v305 = vpop.f32.mrf.mxu0
  %v306 = vadd.f32 %v72, %v305
  %v307 = vpop.f32.mrf.mxu0
  %308 = vmatprep.mubr.f32.mxu0 0.0
  %309 = vmatmul.mubr.f32.gmra.mxu0 %v83
  %v310 = vpop.f32.mrf.mxu0
  %v311 = vadd.f32 %v72, %v310
  %v312 = vpop.f32.mrf.mxu0
  %313 = vdwg.mxu0
  %v314 = vld [vmem:[%s3] sm:$0xff]
  %v315 = vld [vmem:[%s3 + $0x8] sm:$0xff]
  %v316 = vld [vmem:[%s4] sm:$0xff]
  %v317 = vld [vmem:[%s4 + $0x8] sm:$0xff]
  %v318 = vmul.f32 %v152, %v314
  %v319 = vmul.f32 %v158, %v315
  %v320 = vmul.f32 %v231, %v316
  %v321 = vmul.f32 %v237, %v317
  %v322 = vadd.f32 %v318, %v320
  %v323 = vadd.f32 %v319, %v321
  %v324 = vmul.f32 %v154, %v314
  %v325 = vmul.f32 %v160, %v315
  %v326 = vmul.f32 %v306, %v316
  %v327 = vmul.f32 %v311, %v317
  %v328 = vadd.f32 %v324, %v326
  %v329 = vadd.f32 %v325, %v327
  %v330 = vld [vmem:[%s7] sm:$0x1]
  %v331 = vld [vmem:[%s5] sm:$0xff]
  %vm332 = vcmask 64512
  %v334 = vsel %vm332, %v322, 0
  %v337 = vsel %vm332, %v328, 0
  %339 = vmatprep.subr.mxu0 0.0
  %340 = vmatpush1.xpose.msra.mxu0 0.0
  %341 = vmatprep.subr.mxu0 0.0
  %342 = vmatpush1.xpose.msra.mxu0 0.0
  %343 = vmatprep.subr.mxu0 0.0
  %344 = vmatpush1.xpose.msra.mxu0 0.0
  %345 = vmatprep.subr.mxu0 0.0
  %346 = vmatpush1.xpose.msra.mxu0 0.0
  %347 = vmatprep.subr.mxu0 0.0
  %348 = vmatpush1.xpose.msra.mxu0 0.0
  %349 = vmatprep.subr.mxu0 0.0
  %350 = vmatpush1.xpose.msra.mxu0 0.0
  %351 = vmatprep.subr.mxu0 0.0
  %352 = vmatpush1.xpose.msra.mxu0 0.0
  %353 = vmatprep.subr.mxu0 0.0
  %354 = vmatpush1.xpose.msra.mxu0 0.0
  %355 = vmatprep.subr.mxu0 0.0
  %356 = vmatpush1.xpose.msra.mxu0 0.0
  %357 = vmatprep.subr.mxu0 0.0
  %358 = vmatpush1.xpose.msra.mxu0 0.0
  %359 = vmatprep.subr.mxu0 0.0
  %360 = vmatpush1.xpose.msra.mxu0 0.0
  %361 = vmatprep.subr.mxu0 0.0
  %362 = vmatpush1.xpose.msra.mxu0 0.0
  %363 = vmatprep.subr.mxu0 0.0
  %364 = vmatpush1.xpose.msra.mxu0 0.0
  %365 = vmatprep.subr.mxu0 0.0
  %366 = vmatpush1.xpose.msra.mxu0 0.0
  %367 = vmatprep.subr.mxu0 0.0
  %368 = vmatpush1.xpose.msra.mxu0 0.0
  %369 = vmatprep.subr.mxu0 0.0
  %370 = vmatpush1.xpose.msra.mxu0 %v337
  %371 = vmatprep.subr.mxu0 0.0
  %372 = vmatpush2.xpose.msra.mxu0 0.0
  %373 = vmatprep.subr.mxu0 0.0
  %374 = vmatpush2.xpose.msra.mxu0 0.0
  %375 = vmatprep.subr.mxu0 0.0
  %376 = vmatpush2.xpose.msra.mxu0 0.0
  %377 = vmatprep.subr.mxu0 0.0
  %378 = vmatpush2.xpose.msra.mxu0 0.0
  %379 = vmatprep.subr.mxu0 0.0
  %380 = vmatpush2.xpose.msra.mxu0 0.0
  %381 = vmatprep.subr.mxu0 0.0
  %382 = vmatpush2.xpose.msra.mxu0 0.0
  %383 = vmatprep.subr.mxu0 0.0
  %384 = vmatpush2.xpose.msra.mxu0 0.0
  %385 = vmatprep.subr.mxu0 0.0
  %386 = vmatpush2.xpose.msra.mxu0 0.0
  %387 = vmatprep.subr.mxu0 0.0
  %388 = vmatpush2.xpose.msra.mxu0 0.0
  %389 = vmatprep.subr.mxu0 0.0
  %390 = vmatpush2.xpose.msra.mxu0 0.0
  %391 = vmatprep.subr.mxu0 0.0
  %392 = vmatpush2.xpose.msra.mxu0 0.0
  %393 = vmatprep.subr.mxu0 0.0
  %394 = vmatpush2.xpose.msra.mxu0 0.0
  %395 = vmatprep.subr.mxu0 0.0
  %396 = vmatpush2.xpose.msra.mxu0 0.0
  %397 = vmatprep.subr.mxu0 0.0
  %398 = vmatpush2.xpose.msra.mxu0 0.0
  %399 = vmatprep.subr.mxu0 0.0
  %400 = vmatpush2.xpose.msra.mxu0 0.0
  %401 = vmatprep.subr.mxu0 0.0
  %402 = vmatpush2.xpose.msra.mxu0 0.0
  %403 = vmatprep.mubr.f32.mxu0 0.0
  %404 = vmatmul.mubr.f32.gmra.mxu0 %v334
  %v405 = vpop.f32.mrf.mxu0
  %v406 = vadd.f32 %v331, %v405
  %v407 = vpop.f32.mrf.mxu0
  %408 = vdwg.mxu0
  %v409 = vsel %vm332, %v406, -inf
  %410 = vmax.xlane.f32.xlu0 %v409
  %v411 = vpop.xlane.xlu0 %410
  %v412 = vsub.f32 %v406, %v411
  %v413 = vmul.f32 %v412, 1.442695
  %v414 = vpow.pop %v413
  %v415 = vsel %vm332, %v414, 0.0
  %416 = vadd.xlane.f32.xlu0 %v415
  %v417 = vpop.xlane.xlu0 %416
  %v418 = vrcp.pop %v417
  %v419 = vmul.f32 %v414, %v418
  %v421 = vsel %vm332, %v419, 0
  %423 = vmatprep.subr.mxu0 0.0
  %424 = vmatpush1.msra.mxu0 0.0
  %425 = vmatprep.subr.mxu0 0.0
  %426 = vmatpush1.msra.mxu0 0.0
  %427 = vmatprep.subr.mxu0 0.0
  %428 = vmatpush1.msra.mxu0 0.0
  %429 = vmatprep.subr.mxu0 0.0
  %430 = vmatpush1.msra.mxu0 0.0
  %431 = vmatprep.subr.mxu0 0.0
  %432 = vmatpush1.msra.mxu0 0.0
  %433 = vmatprep.subr.mxu0 0.0
  %434 = vmatpush1.msra.mxu0 0.0
  %435 = vmatprep.subr.mxu0 0.0
  %436 = vmatpush1.msra.mxu0 0.0
  %437 = vmatprep.subr.mxu0 0.0
  %438 = vmatpush1.msra.mxu0 0.0
  %439 = vmatprep.subr.mxu0 0.0
  %440 = vmatpush1.msra.mxu0 0.0
  %441 = vmatprep.subr.mxu0 0.0
  %442 = vmatpush1.msra.mxu0 0.0
  %443 = vmatprep.subr.mxu0 0.0
  %444 = vmatpush1.msra.mxu0 0.0
  %445 = vmatprep.subr.mxu0 0.0
  %446 = vmatpush1.msra.mxu0 0.0
  %447 = vmatprep.subr.mxu0 0.0
  %448 = vmatpush1.msra.mxu0 0.0
  %449 = vmatprep.subr.mxu0 0.0
  %450 = vmatpush1.msra.mxu0 0.0
  %451 = vmatprep.subr.mxu0 0.0
  %452 = vmatpush1.msra.mxu0 0.0
  %453 = vmatprep.subr.mxu0 0.0
  %454 = vmatpush1.msra.mxu0 %v229
  %455 = vmatprep.subr.mxu0 0.0
  %456 = vmatpush2.msra.mxu0 0.0
  %457 = vmatprep.subr.mxu0 0.0
  %458 = vmatpush2.msra.mxu0 0.0
  %459 = vmatprep.subr.mxu0 0.0
  %460 = vmatpush2.msra.mxu0 0.0
  %461 = vmatprep.subr.mxu0 0.0
  %462 = vmatpush2.msra.mxu0 0.0
  %463 = vmatprep.subr.mxu0 0.0
  %464 = vmatpush2.msra.mxu0 0.0
  %465 = vmatprep.subr.mxu0 0.0
  %466 = vmatpush2.msra.mxu0 0.0
  %467 = vmatprep.subr.mxu0 0.0
  %468 = vmatpush2.msra.mxu0 0.0
  %469 = vmatprep.subr.mxu0 0.0
  %470 = vmatpush2.msra.mxu0 0.0
  %471 = vmatprep.subr.mxu0 0.0
  %472 = vmatpush2.msra.mxu0 0.0
  %473 = vmatprep.subr.mxu0 0.0
  %474 = vmatpush2.msra.mxu0 0.0
  %475 = vmatprep.subr.mxu0 0.0
  %476 = vmatpush2.msra.mxu0 0.0
  %477 = vmatprep.subr.mxu0 0.0
  %478 = vmatpush2.msra.mxu0 0.0
  %479 = vmatprep.subr.mxu0 0.0
  %480 = vmatpush2.msra.mxu0 0.0
  %481 = vmatprep.subr.mxu0 0.0
  %482 = vmatpush2.msra.mxu0 0.0
  %483 = vmatprep.subr.mxu0 0.0
  %484 = vmatpush2.msra.mxu0 0.0
  %485 = vmatprep.subr.mxu0 0.0
  %486 = vmatpush2.msra.mxu0 0.0
  %487 = vmatprep.mubr.f32.mxu0 0.0
  %488 = vmatmul.mubr.f32.gmra.mxu0 %v421
  %v489 = vpop.f32.mrf.mxu0
  %v490 = vadd.f32 0.0, %v489
  %v491 = vpop.f32.mrf.mxu0
  %492 = vdwg.mxu0
  %v493 = vld [vmem:[%s6] sm:$0xff]
  %494 = vrot.lane.b32.xlu0 %v322, 120
  %v495 = vpop.permute.xlu0 %494
  %496 = vrot.lane.b32.xlu0 %v328, 120
  %v497 = vpop.permute.xlu0 %496
  %v498 = vsel %vm332, %v495, 0
  %v500 = vsel %vm332, %v497, 0
  %502 = vmatprep.subr.mxu0 0.0
  %503 = vmatpush1.xpose.msra.mxu0 0.0
  %504 = vmatprep.subr.mxu0 0.0
  %505 = vmatpush1.xpose.msra.mxu0 0.0
  %506 = vmatprep.subr.mxu0 0.0
  %507 = vmatpush1.xpose.msra.mxu0 0.0
  %508 = vmatprep.subr.mxu0 0.0
  %509 = vmatpush1.xpose.msra.mxu0 0.0
  %510 = vmatprep.subr.mxu0 0.0
  %511 = vmatpush1.xpose.msra.mxu0 0.0
  %512 = vmatprep.subr.mxu0 0.0
  %513 = vmatpush1.xpose.msra.mxu0 0.0
  %514 = vmatprep.subr.mxu0 0.0
  %515 = vmatpush1.xpose.msra.mxu0 0.0
  %516 = vmatprep.subr.mxu0 0.0
  %517 = vmatpush1.xpose.msra.mxu0 0.0
  %518 = vmatprep.subr.mxu0 0.0
  %519 = vmatpush1.xpose.msra.mxu0 0.0
  %520 = vmatprep.subr.mxu0 0.0
  %521 = vmatpush1.xpose.msra.mxu0 0.0
  %522 = vmatprep.subr.mxu0 0.0
  %523 = vmatpush1.xpose.msra.mxu0 0.0
  %524 = vmatprep.subr.mxu0 0.0
  %525 = vmatpush1.xpose.msra.mxu0 0.0
  %526 = vmatprep.subr.mxu0 0.0
  %527 = vmatpush1.xpose.msra.mxu0 0.0
  %528 = vmatprep.subr.mxu0 0.0
  %529 = vmatpush1.xpose.msra.mxu0 0.0
  %530 = vmatprep.subr.mxu0 0.0
  %531 = vmatpush1.xpose.msra.mxu0 0.0
  %532 = vmatprep.subr.mxu0 0.0
  %533 = vmatpush1.xpose.msra.mxu0 %v500
  %534 = vmatprep.subr.mxu0 0.0
  %535 = vmatpush2.xpose.msra.mxu0 0.0
  %536 = vmatprep.subr.mxu0 0.0
  %537 = vmatpush2.xpose.msra.mxu0 0.0
  %538 = vmatprep.subr.mxu0 0.0
  %539 = vmatpush2.xpose.msra.mxu0 0.0
  %540 = vmatprep.subr.mxu0 0.0
  %541 = vmatpush2.xpose.msra.mxu0 0.0
  %542 = vmatprep.subr.mxu0 0.0
  %543 = vmatpush2.xpose.msra.mxu0 0.0
  %544 = vmatprep.subr.mxu0 0.0
  %545 = vmatpush2.xpose.msra.mxu0 0.0
  %546 = vmatprep.subr.mxu0 0.0
  %547 = vmatpush2.xpose.msra.mxu0 0.0
  %548 = vmatprep.subr.mxu0 0.0
  %549 = vmatpush2.xpose.msra.mxu0 0.0
  %550 = vmatprep.subr.mxu0 0.0
  %551 = vmatpush2.xpose.msra.mxu0 0.0
  %552 = vmatprep.subr.mxu0 0.0
  %553 = vmatpush2.xpose.msra.mxu0 0.0
  %554 = vmatprep.subr.mxu0 0.0
  %555 = vmatpush2.xpose.msra.mxu0 0.0
  %556 = vmatprep.subr.mxu0 0.0
  %557 = vmatpush2.xpose.msra.mxu0 0.0
  %558 = vmatprep.subr.mxu0 0.0
  %559 = vmatpush2.xpose.msra.mxu0 0.0
  %560 = vmatprep.subr.mxu0 0.0
  %561 = vmatpush2.xpose.msra.mxu0 0.0
  %562 = vmatprep.subr.mxu0 0.0
  %563 = vmatpush2.xpose.msra.mxu0 0.0
  %564 = vmatprep.subr.mxu0 0.0
  %565 = vmatpush2.xpose.msra.mxu0 0.0
  %566 = vmatprep.mubr.f32.mxu0 0.0
  %567 = vmatmul.mubr.f32.gmra.mxu0 %v498
  %v568 = vpop.f32.mrf.mxu0
  %v569 = vadd.f32 %v331, %v568
  %v570 = vpop.f32.mrf.mxu0
  %571 = vdwg.mxu0
  %v572 = vsel %vm332, %v569, -inf
  %573 = vmax.xlane.f32.xlu0 %v572
  %v574 = vpop.xlane.xlu0 %573
  %v575 = vsub.f32 %v569, %v574
  %v576 = vmul.f32 %v575, 1.442695
  %v577 = vpow.pop %v576
  %v578 = vsel %vm332, %v577, 0.0
  %579 = vadd.xlane.f32.xlu0 %v578
  %v580 = vpop.xlane.xlu0 %579
  %v581 = vrcp.pop %v580
  %v582 = vmul.f32 %v577, %v581
  %584 = vrot.lane.b32.xlu0 %v229, 120
  %v585 = vpop.permute.xlu0 %584
  %v588 = vsel %vm332, %v582, 0
  %590 = vmatprep.subr.mxu0 0.0
  %591 = vmatpush1.msra.mxu0 0.0
  %592 = vmatprep.subr.mxu0 0.0
  %593 = vmatpush1.msra.mxu0 0.0
  %594 = vmatprep.subr.mxu0 0.0
  %595 = vmatpush1.msra.mxu0 0.0
  %596 = vmatprep.subr.mxu0 0.0
  %597 = vmatpush1.msra.mxu0 0.0
  %598 = vmatprep.subr.mxu0 0.0
  %599 = vmatpush1.msra.mxu0 0.0
  %600 = vmatprep.subr.mxu0 0.0
  %601 = vmatpush1.msra.mxu0 0.0
  %602 = vmatprep.subr.mxu0 0.0
  %603 = vmatpush1.msra.mxu0 0.0
  %604 = vmatprep.subr.mxu0 0.0
  %605 = vmatpush1.msra.mxu0 0.0
  %606 = vmatprep.subr.mxu0 0.0
  %607 = vmatpush1.msra.mxu0 0.0
  %608 = vmatprep.subr.mxu0 0.0
  %609 = vmatpush1.msra.mxu0 0.0
  %610 = vmatprep.subr.mxu0 0.0
  %611 = vmatpush1.msra.mxu0 0.0
  %612 = vmatprep.subr.mxu0 0.0
  %613 = vmatpush1.msra.mxu0 0.0
  %614 = vmatprep.subr.mxu0 0.0
  %615 = vmatpush1.msra.mxu0 0.0
  %616 = vmatprep.subr.mxu0 0.0
  %617 = vmatpush1.msra.mxu0 0.0
  %618 = vmatprep.subr.mxu0 0.0
  %619 = vmatpush1.msra.mxu0 0.0
  %620 = vmatprep.subr.mxu0 0.0
  %621 = vmatpush1.msra.mxu0 %v585
  %622 = vmatprep.subr.mxu0 0.0
  %623 = vmatpush2.msra.mxu0 0.0
  %624 = vmatprep.subr.mxu0 0.0
  %625 = vmatpush2.msra.mxu0 0.0
  %626 = vmatprep.subr.mxu0 0.0
  %627 = vmatpush2.msra.mxu0 0.0
  %628 = vmatprep.subr.mxu0 0.0
  %629 = vmatpush2.msra.mxu0 0.0
  %630 = vmatprep.subr.mxu0 0.0
  %631 = vmatpush2.msra.mxu0 0.0
  %632 = vmatprep.subr.mxu0 0.0
  %633 = vmatpush2.msra.mxu0 0.0
  %634 = vmatprep.subr.mxu0 0.0
  %635 = vmatpush2.msra.mxu0 0.0
  %636 = vmatprep.subr.mxu0 0.0
  %637 = vmatpush2.msra.mxu0 0.0
  %638 = vmatprep.subr.mxu0 0.0
  %639 = vmatpush2.msra.mxu0 0.0
  %640 = vmatprep.subr.mxu0 0.0
  %641 = vmatpush2.msra.mxu0 0.0
  %642 = vmatprep.subr.mxu0 0.0
  %643 = vmatpush2.msra.mxu0 0.0
  %644 = vmatprep.subr.mxu0 0.0
  %645 = vmatpush2.msra.mxu0 0.0
  %646 = vmatprep.subr.mxu0 0.0
  %647 = vmatpush2.msra.mxu0 0.0
  %648 = vmatprep.subr.mxu0 0.0
  %649 = vmatpush2.msra.mxu0 0.0
  %650 = vmatprep.subr.mxu0 0.0
  %651 = vmatpush2.msra.mxu0 0.0
  %652 = vmatprep.subr.mxu0 0.0
  %653 = vmatpush2.msra.mxu0 0.0
  %654 = vmatprep.mubr.f32.mxu0 0.0
  %655 = vmatmul.mubr.f32.gmra.mxu0 %v588
  %v656 = vpop.f32.mrf.mxu0
  %v657 = vadd.f32 0.0, %v656
  %v658 = vpop.f32.mrf.mxu0
  %659 = vdwg.mxu0
  %v660 = vld [vmem:[%s6 + $0x8] sm:$0xff]
  %v662 = vsel %vm332, %v657, 0
  %664 = vmatprep.subr.mxu0 0.0
  %665 = vmatpush1.msra.mxu0 0.0
  %666 = vmatprep.subr.mxu0 0.0
  %667 = vmatpush1.msra.mxu0 0.0
  %668 = vmatprep.subr.mxu0 0.0
  %669 = vmatpush1.msra.mxu0 0.0
  %670 = vmatprep.subr.mxu0 0.0
  %671 = vmatpush1.msra.mxu0 0.0
  %672 = vmatprep.subr.mxu0 0.0
  %673 = vmatpush1.msra.mxu0 0.0
  %674 = vmatprep.subr.mxu0 0.0
  %675 = vmatpush1.msra.mxu0 0.0
  %676 = vmatprep.subr.mxu0 0.0
  %677 = vmatpush1.msra.mxu0 0.0
  %678 = vmatprep.subr.mxu0 0.0
  %679 = vmatpush1.msra.mxu0 0.0
  %680 = vmatprep.subr.mxu0 0.0
  %681 = vmatpush1.msra.mxu0 0.0
  %682 = vmatprep.subr.mxu0 0.0
  %683 = vmatpush1.msra.mxu0 0.0
  %684 = vmatprep.subr.mxu0 0.0
  %685 = vmatpush1.msra.mxu0 0.0
  %686 = vmatprep.subr.mxu0 0.0
  %687 = vmatpush1.msra.mxu0 0.0
  %688 = vmatprep.subr.mxu0 0.0
  %689 = vmatpush1.msra.mxu0 0.0
  %690 = vmatprep.subr.mxu0 0.0
  %691 = vmatpush1.msra.mxu0 0.0
  %692 = vmatprep.subr.mxu0 0.0
  %693 = vmatpush1.msra.mxu0 0.0
  %694 = vmatprep.subr.mxu0 0.0
  %695 = vmatpush1.msra.mxu0 %v660
  %696 = vmatprep.subr.mxu0 0.0
  %697 = vmatpush2.msra.mxu0 0.0
  %698 = vmatprep.subr.mxu0 0.0
  %699 = vmatpush2.msra.mxu0 0.0
  %700 = vmatprep.subr.mxu0 0.0
  %701 = vmatpush2.msra.mxu0 0.0
  %702 = vmatprep.subr.mxu0 0.0
  %703 = vmatpush2.msra.mxu0 0.0
  %704 = vmatprep.subr.mxu0 0.0
  %705 = vmatpush2.msra.mxu0 0.0
  %706 = vmatprep.subr.mxu0 0.0
  %707 = vmatpush2.msra.mxu0 0.0
  %708 = vmatprep.subr.mxu0 0.0
  %709 = vmatpush2.msra.mxu0 0.0
  %710 = vmatprep.subr.mxu0 0.0
  %711 = vmatpush2.msra.mxu0 0.0
  %712 = vmatprep.subr.mxu0 0.0
  %713 = vmatpush2.msra.mxu0 0.0
  %714 = vmatprep.subr.mxu0 0.0
  %715 = vmatpush2.msra.mxu0 0.0
  %716 = vmatprep.subr.mxu0 0.0
  %717 = vmatpush2.msra.mxu0 0.0
  %718 = vmatprep.subr.mxu0 0.0
  %719 = vmatpush2.msra.mxu0 0.0
  %720 = vmatprep.subr.mxu0 0.0
  %721 = vmatpush2.msra.mxu0 0.0
  %722 = vmatprep.subr.mxu0 0.0
  %723 = vmatpush2.msra.mxu0 0.0
  %724 = vmatprep.subr.mxu0 0.0
  %725 = vmatpush2.msra.mxu0 0.0
  %726 = vmatprep.subr.mxu0 0.0
  %727 = vmatpush2.msra.mxu0 0.0
  %728 = vmatprep.mubr.f32.mxu0 0.0
  %729 = vmatmul.mubr.f32.gmra.mxu0 %v662
  %v730 = vpop.f32.mrf.mxu0
  %v731 = vadd.f32 0.0, %v730
  %v732 = vpop.f32.mrf.mxu0
  %733 = vdwg.mxu0
  %v735 = vsel %vm332, %v490, 0
  %737 = vmatprep.subr.mxu0 0.0
  %738 = vmatpush1.msra.mxu0 0.0
  %739 = vmatprep.subr.mxu0 0.0
  %740 = vmatpush1.msra.mxu0 0.0
  %741 = vmatprep.subr.mxu0 0.0
  %742 = vmatpush1.msra.mxu0 0.0
  %743 = vmatprep.subr.mxu0 0.0
  %744 = vmatpush1.msra.mxu0 0.0
  %745 = vmatprep.subr.mxu0 0.0
  %746 = vmatpush1.msra.mxu0 0.0
  %747 = vmatprep.subr.mxu0 0.0
  %748 = vmatpush1.msra.mxu0 0.0
  %749 = vmatprep.subr.mxu0 0.0
  %750 = vmatpush1.msra.mxu0 0.0
  %751 = vmatprep.subr.mxu0 0.0
  %752 = vmatpush1.msra.mxu0 0.0
  %753 = vmatprep.subr.mxu0 0.0
  %754 = vmatpush1.msra.mxu0 0.0
  %755 = vmatprep.subr.mxu0 0.0
  %756 = vmatpush1.msra.mxu0 0.0
  %757 = vmatprep.subr.mxu0 0.0
  %758 = vmatpush1.msra.mxu0 0.0
  %759 = vmatprep.subr.mxu0 0.0
  %760 = vmatpush1.msra.mxu0 0.0
  %761 = vmatprep.subr.mxu0 0.0
  %762 = vmatpush1.msra.mxu0 0.0
  %763 = vmatprep.subr.mxu0 0.0
  %764 = vmatpush1.msra.mxu0 0.0
  %765 = vmatprep.subr.mxu0 0.0
  %766 = vmatpush1.msra.mxu0 0.0
  %767 = vmatprep.subr.mxu0 0.0
  %768 = vmatpush1.msra.mxu0 %v493
  %769 = vmatprep.subr.mxu0 0.0
  %770 = vmatpush2.msra.mxu0 0.0
  %771 = vmatprep.subr.mxu0 0.0
  %772 = vmatpush2.msra.mxu0 0.0
  %773 = vmatprep.subr.mxu0 0.0
  %774 = vmatpush2.msra.mxu0 0.0
  %775 = vmatprep.subr.mxu0 0.0
  %776 = vmatpush2.msra.mxu0 0.0
  %777 = vmatprep.subr.mxu0 0.0
  %778 = vmatpush2.msra.mxu0 0.0
  %779 = vmatprep.subr.mxu0 0.0
  %780 = vmatpush2.msra.mxu0 0.0
  %781 = vmatprep.subr.mxu0 0.0
  %782 = vmatpush2.msra.mxu0 0.0
  %783 = vmatprep.subr.mxu0 0.0
  %784 = vmatpush2.msra.mxu0 0.0
  %785 = vmatprep.subr.mxu0 0.0
  %786 = vmatpush2.msra.mxu0 0.0
  %787 = vmatprep.subr.mxu0 0.0
  %788 = vmatpush2.msra.mxu0 0.0
  %789 = vmatprep.subr.mxu0 0.0
  %790 = vmatpush2.msra.mxu0 0.0
  %791 = vmatprep.subr.mxu0 0.0
  %792 = vmatpush2.msra.mxu0 0.0
  %793 = vmatprep.subr.mxu0 0.0
  %794 = vmatpush2.msra.mxu0 0.0
  %795 = vmatprep.subr.mxu0 0.0
  %796 = vmatpush2.msra.mxu0 0.0
  %797 = vmatprep.subr.mxu0 0.0
  %798 = vmatpush2.msra.mxu0 0.0
  %799 = vmatprep.subr.mxu0 0.0
  %800 = vmatpush2.msra.mxu0 0.0
  %801 = vmatprep.mubr.f32.mxu0 0.0
  %802 = vmatmul.mubr.f32.gmra.mxu0 %v735
  %v803 = vpop.f32.mrf.mxu0
  %v804 = vadd.f32 %v731, %v803
  %v805 = vpop.f32.mrf.mxu0
  %806 = vdwg.mxu0
  %807 = vrot.lane.b32.xlu0 %v322, 112
  %v808 = vpop.permute.xlu0 %807
  %809 = vrot.lane.b32.xlu0 %v328, 112
  %v810 = vpop.permute.xlu0 %809
  %v811 = vsel %vm332, %v808, 0
  %v813 = vsel %vm332, %v810, 0
  %815 = vmatprep.subr.mxu0 0.0
  %816 = vmatpush1.xpose.msra.mxu0 0.0
  %817 = vmatprep.subr.mxu0 0.0
  %818 = vmatpush1.xpose.msra.mxu0 0.0
  %819 = vmatprep.subr.mxu0 0.0
  %820 = vmatpush1.xpose.msra.mxu0 0.0
  %821 = vmatprep.subr.mxu0 0.0
  %822 = vmatpush1.xpose.msra.mxu0 0.0
  %823 = vmatprep.subr.mxu0 0.0
  %824 = vmatpush1.xpose.msra.mxu0 0.0
  %825 = vmatprep.subr.mxu0 0.0
  %826 = vmatpush1.xpose.msra.mxu0 0.0
  %827 = vmatprep.subr.mxu0 0.0
  %828 = vmatpush1.xpose.msra.mxu0 0.0
  %829 = vmatprep.subr.mxu0 0.0
  %830 = vmatpush1.xpose.msra.mxu0 0.0
  %831 = vmatprep.subr.mxu0 0.0
  %832 = vmatpush1.xpose.msra.mxu0 0.0
  %833 = vmatprep.subr.mxu0 0.0
  %834 = vmatpush1.xpose.msra.mxu0 0.0
  %835 = vmatprep.subr.mxu0 0.0
  %836 = vmatpush1.xpose.msra.mxu0 0.0
  %837 = vmatprep.subr.mxu0 0.0
  %838 = vmatpush1.xpose.msra.mxu0 0.0
  %839 = vmatprep.subr.mxu0 0.0
  %840 = vmatpush1.xpose.msra.mxu0 0.0
  %841 = vmatprep.subr.mxu0 0.0
  %842 = vmatpush1.xpose.msra.mxu0 0.0
  %843 = vmatprep.subr.mxu0 0.0
  %844 = vmatpush1.xpose.msra.mxu0 0.0
  %845 = vmatprep.subr.mxu0 0.0
  %846 = vmatpush1.xpose.msra.mxu0 %v813
  %847 = vmatprep.subr.mxu0 0.0
  %848 = vmatpush2.xpose.msra.mxu0 0.0
  %849 = vmatprep.subr.mxu0 0.0
  %850 = vmatpush2.xpose.msra.mxu0 0.0
  %851 = vmatprep.subr.mxu0 0.0
  %852 = vmatpush2.xpose.msra.mxu0 0.0
  %853 = vmatprep.subr.mxu0 0.0
  %854 = vmatpush2.xpose.msra.mxu0 0.0
  %855 = vmatprep.subr.mxu0 0.0
  %856 = vmatpush2.xpose.msra.mxu0 0.0
  %857 = vmatprep.subr.mxu0 0.0
  %858 = vmatpush2.xpose.msra.mxu0 0.0
  %859 = vmatprep.subr.mxu0 0.0
  %860 = vmatpush2.xpose.msra.mxu0 0.0
  %861 = vmatprep.subr.mxu0 0.0
  %862 = vmatpush2.xpose.msra.mxu0 0.0
  %863 = vmatprep.subr.mxu0 0.0
  %864 = vmatpush2.xpose.msra.mxu0 0.0
  %865 = vmatprep.subr.mxu0 0.0
  %866 = vmatpush2.xpose.msra.mxu0 0.0
  %867 = vmatprep.subr.mxu0 0.0
  %868 = vmatpush2.xpose.msra.mxu0 0.0
  %869 = vmatprep.subr.mxu0 0.0
  %870 = vmatpush2.xpose.msra.mxu0 0.0
  %871 = vmatprep.subr.mxu0 0.0
  %872 = vmatpush2.xpose.msra.mxu0 0.0
  %873 = vmatprep.subr.mxu0 0.0
  %874 = vmatpush2.xpose.msra.mxu0 0.0
  %875 = vmatprep.subr.mxu0 0.0
  %876 = vmatpush2.xpose.msra.mxu0 0.0
  %877 = vmatprep.subr.mxu0 0.0
  %878 = vmatpush2.xpose.msra.mxu0 0.0
  %879 = vmatprep.mubr.f32.mxu0 0.0
  %880 = vmatmul.mubr.f32.gmra.mxu0 %v811
  %v881 = vpop.f32.mrf.mxu0
  %v882 = vadd.f32 %v331, %v881
  %v883 = vpop.f32.mrf.mxu0
  %884 = vdwg.mxu0
  %v885 = vsel %vm332, %v882, -inf
  %886 = vmax.xlane.f32.xlu0 %v885
  %v887 = vpop.xlane.xlu0 %886
  %v888 = vsub.f32 %v882, %v887
  %v889 = vmul.f32 %v888, 1.442695
  %v890 = vpow.pop %v889
  %v891 = vsel %vm332, %v890, 0.0
  %892 = vadd.xlane.f32.xlu0 %v891
  %v893 = vpop.xlane.xlu0 %892
  %v894 = vrcp.pop %v893
  %v895 = vmul.f32 %v890, %v894
  %896 = vrot.lane.b32.xlu0 %v229, 112
  %v897 = vpop.permute.xlu0 %896
  %v900 = vsel %vm332, %v895, 0
  %902 = vmatprep.subr.mxu0 0.0
  %903 = vmatpush1.msra.mxu0 0.0
  %904 = vmatprep.subr.mxu0 0.0
  %905 = vmatpush1.msra.mxu0 0.0
  %906 = vmatprep.subr.mxu0 0.0
  %907 = vmatpush1.msra.mxu0 0.0
  %908 = vmatprep.subr.mxu0 0.0
  %909 = vmatpush1.msra.mxu0 0.0
  %910 = vmatprep.subr.mxu0 0.0
  %911 = vmatpush1.msra.mxu0 0.0
  %912 = vmatprep.subr.mxu0 0.0
  %913 = vmatpush1.msra.mxu0 0.0
  %914 = vmatprep.subr.mxu0 0.0
  %915 = vmatpush1.msra.mxu0 0.0
  %916 = vmatprep.subr.mxu0 0.0
  %917 = vmatpush1.msra.mxu0 0.0
  %918 = vmatprep.subr.mxu0 0.0
  %919 = vmatpush1.msra.mxu0 0.0
  %920 = vmatprep.subr.mxu0 0.0
  %921 = vmatpush1.msra.mxu0 0.0
  %922 = vmatprep.subr.mxu0 0.0
  %923 = vmatpush1.msra.mxu0 0.0
  %924 = vmatprep.subr.mxu0 0.0
  %925 = vmatpush1.msra.mxu0 0.0
  %926 = vmatprep.subr.mxu0 0.0
  %927 = vmatpush1.msra.mxu0 0.0
  %928 = vmatprep.subr.mxu0 0.0
  %929 = vmatpush1.msra.mxu0 0.0
  %930 = vmatprep.subr.mxu0 0.0
  %931 = vmatpush1.msra.mxu0 0.0
  %932 = vmatprep.subr.mxu0 0.0
  %933 = vmatpush1.msra.mxu0 %v897
  %934 = vmatprep.subr.mxu0 0.0
  %935 = vmatpush2.msra.mxu0 0.0
  %936 = vmatprep.subr.mxu0 0.0
  %937 = vmatpush2.msra.mxu0 0.0
  %938 = vmatprep.subr.mxu0 0.0
  %939 = vmatpush2.msra.mxu0 0.0
  %940 = vmatprep.subr.mxu0 0.0
  %941 = vmatpush2.msra.mxu0 0.0
  %942 = vmatprep.subr.mxu0 0.0
  %943 = vmatpush2.msra.mxu0 0.0
  %944 = vmatprep.subr.mxu0 0.0
  %945 = vmatpush2.msra.mxu0 0.0
  %946 = vmatprep.subr.mxu0 0.0
  %947 = vmatpush2.msra.mxu0 0.0
  %948 = vmatprep.subr.mxu0 0.0
  %949 = vmatpush2.msra.mxu0 0.0
  %950 = vmatprep.subr.mxu0 0.0
  %951 = vmatpush2.msra.mxu0 0.0
  %952 = vmatprep.subr.mxu0 0.0
  %953 = vmatpush2.msra.mxu0 0.0
  %954 = vmatprep.subr.mxu0 0.0
  %955 = vmatpush2.msra.mxu0 0.0
  %956 = vmatprep.subr.mxu0 0.0
  %957 = vmatpush2.msra.mxu0 0.0
  %958 = vmatprep.subr.mxu0 0.0
  %959 = vmatpush2.msra.mxu0 0.0
  %960 = vmatprep.subr.mxu0 0.0
  %961 = vmatpush2.msra.mxu0 0.0
  %962 = vmatprep.subr.mxu0 0.0
  %963 = vmatpush2.msra.mxu0 0.0
  %964 = vmatprep.subr.mxu0 0.0
  %965 = vmatpush2.msra.mxu0 0.0
  %966 = vmatprep.mubr.f32.mxu0 0.0
  %967 = vmatmul.mubr.f32.gmra.mxu0 %v900
  %v968 = vpop.f32.mrf.mxu0
  %v969 = vadd.f32 0.0, %v968
  %v970 = vpop.f32.mrf.mxu0
  %971 = vdwg.mxu0
  %v972 = vld [vmem:[%s6 + $0x10] sm:$0xff]
  %v974 = vsel %vm332, %v969, 0
  %976 = vmatprep.subr.mxu0 0.0
  %977 = vmatpush1.msra.mxu0 0.0
  %978 = vmatprep.subr.mxu0 0.0
  %979 = vmatpush1.msra.mxu0 0.0
  %980 = vmatprep.subr.mxu0 0.0
  %981 = vmatpush1.msra.mxu0 0.0
  %982 = vmatprep.subr.mxu0 0.0
  %983 = vmatpush1.msra.mxu0 0.0
  %984 = vmatprep.subr.mxu0 0.0
  %985 = vmatpush1.msra.mxu0 0.0
  %986 = vmatprep.subr.mxu0 0.0
  %987 = vmatpush1.msra.mxu0 0.0
  %988 = vmatprep.subr.mxu0 0.0
  %989 = vmatpush1.msra.mxu0 0.0
  %990 = vmatprep.subr.mxu0 0.0
  %991 = vmatpush1.msra.mxu0 0.0
  %992 = vmatprep.subr.mxu0 0.0
  %993 = vmatpush1.msra.mxu0 0.0
  %994 = vmatprep.subr.mxu0 0.0
  %995 = vmatpush1.msra.mxu0 0.0
  %996 = vmatprep.subr.mxu0 0.0
  %997 = vmatpush1.msra.mxu0 0.0
  %998 = vmatprep.subr.mxu0 0.0
  %999 = vmatpush1.msra.mxu0 0.0
  %1000 = vmatprep.subr.mxu0 0.0
  %1001 = vmatpush1.msra.mxu0 0.0
  %1002 = vmatprep.subr.mxu0 0.0
  %1003 = vmatpush1.msra.mxu0 0.0
  %1004 = vmatprep.subr.mxu0 0.0
  %1005 = vmatpush1.msra.mxu0 0.0
  %1006 = vmatprep.subr.mxu0 0.0
  %1007 = vmatpush1.msra.mxu0 %v972
  %1008 = vmatprep.subr.mxu0 0.0
  %1009 = vmatpush2.msra.mxu0 0.0
  %1010 = vmatprep.subr.mxu0 0.0
  %1011 = vmatpush2.msra.mxu0 0.0
  %1012 = vmatprep.subr.mxu0 0.0
  %1013 = vmatpush2.msra.mxu0 0.0
  %1014 = vmatprep.subr.mxu0 0.0
  %1015 = vmatpush2.msra.mxu0 0.0
  %1016 = vmatprep.subr.mxu0 0.0
  %1017 = vmatpush2.msra.mxu0 0.0
  %1018 = vmatprep.subr.mxu0 0.0
  %1019 = vmatpush2.msra.mxu0 0.0
  %1020 = vmatprep.subr.mxu0 0.0
  %1021 = vmatpush2.msra.mxu0 0.0
  %1022 = vmatprep.subr.mxu0 0.0
  %1023 = vmatpush2.msra.mxu0 0.0
  %1024 = vmatprep.subr.mxu0 0.0
  %1025 = vmatpush2.msra.mxu0 0.0
  %1026 = vmatprep.subr.mxu0 0.0
  %1027 = vmatpush2.msra.mxu0 0.0
  %1028 = vmatprep.subr.mxu0 0.0
  %1029 = vmatpush2.msra.mxu0 0.0
  %1030 = vmatprep.subr.mxu0 0.0
  %1031 = vmatpush2.msra.mxu0 0.0
  %1032 = vmatprep.subr.mxu0 0.0
  %1033 = vmatpush2.msra.mxu0 0.0
  %1034 = vmatprep.subr.mxu0 0.0
  %1035 = vmatpush2.msra.mxu0 0.0
  %1036 = vmatprep.subr.mxu0 0.0
  %1037 = vmatpush2.msra.mxu0 0.0
  %1038 = vmatprep.subr.mxu0 0.0
  %1039 = vmatpush2.msra.mxu0 0.0
  %1040 = vmatprep.mubr.f32.mxu0 0.0
  %1041 = vmatmul.mubr.f32.gmra.mxu0 %v974
  %v1042 = vpop.f32.mrf.mxu0
  %v1043 = vadd.f32 0.0, %v1042
  %v1044 = vpop.f32.mrf.mxu0
  %1045 = vdwg.mxu0
  %v1046 = vadd.f32 %v804, %v1043
  %1047 = vrot.lane.b32.xlu0 %v322, 104
  %v1048 = vpop.permute.xlu0 %1047
  %1049 = vrot.lane.b32.xlu0 %v328, 104
  %v1050 = vpop.permute.xlu0 %1049
  %v1051 = vsel %vm332, %v1048, 0
  %v1053 = vsel %vm332, %v1050, 0
  %1055 = vmatprep.subr.mxu0 0.0
  %1056 = vmatpush1.xpose.msra.mxu0 0.0
  %1057 = vmatprep.subr.mxu0 0.0
  %1058 = vmatpush1.xpose.msra.mxu0 0.0
  %1059 = vmatprep.subr.mxu0 0.0
  %1060 = vmatpush1.xpose.msra.mxu0 0.0
  %1061 = vmatprep.subr.mxu0 0.0
  %1062 = vmatpush1.xpose.msra.mxu0 0.0
  %1063 = vmatprep.subr.mxu0 0.0
  %1064 = vmatpush1.xpose.msra.mxu0 0.0
  %1065 = vmatprep.subr.mxu0 0.0
  %1066 = vmatpush1.xpose.msra.mxu0 0.0
  %1067 = vmatprep.subr.mxu0 0.0
  %1068 = vmatpush1.xpose.msra.mxu0 0.0
  %1069 = vmatprep.subr.mxu0 0.0
  %1070 = vmatpush1.xpose.msra.mxu0 0.0
  %1071 = vmatprep.subr.mxu0 0.0
  %1072 = vmatpush1.xpose.msra.mxu0 0.0
  %1073 = vmatprep.subr.mxu0 0.0
  %1074 = vmatpush1.xpose.msra.mxu0 0.0
  %1075 = vmatprep.subr.mxu0 0.0
  %1076 = vmatpush1.xpose.msra.mxu0 0.0
  %1077 = vmatprep.subr.mxu0 0.0
  %1078 = vmatpush1.xpose.msra.mxu0 0.0
  %1079 = vmatprep.subr.mxu0 0.0
  %1080 = vmatpush1.xpose.msra.mxu0 0.0
  %1081 = vmatprep.subr.mxu0 0.0
  %1082 = vmatpush1.xpose.msra.mxu0 0.0
  %1083 = vmatprep.subr.mxu0 0.0
  %1084 = vmatpush1.xpose.msra.mxu0 0.0
  %1085 = vmatprep.subr.mxu0 0.0
  %1086 = vmatpush1.xpose.msra.mxu0 %v1053
  %1087 = vmatprep.subr.mxu0 0.0
  %1088 = vmatpush2.xpose.msra.mxu0 0.0
  %1089 = vmatprep.subr.mxu0 0.0
  %1090 = vmatpush2.xpose.msra.mxu0 0.0
  %1091 = vmatprep.subr.mxu0 0.0
  %1092 = vmatpush2.xpose.msra.mxu0 0.0
  %1093 = vmatprep.subr.mxu0 0.0
  %1094 = vmatpush2.xpose.msra.mxu0 0.0
  %1095 = vmatprep.subr.mxu0 0.0
  %1096 = vmatpush2.xpose.msra.mxu0 0.0
  %1097 = vmatprep.subr.mxu0 0.0
  %1098 = vmatpush2.xpose.msra.mxu0 0.0
  %1099 = vmatprep.subr.mxu0 0.0
  %1100 = vmatpush2.xpose.msra.mxu0 0.0
  %1101 = vmatprep.subr.mxu0 0.0
  %1102 = vmatpush2.xpose.msra.mxu0 0.0
  %1103 = vmatprep.subr.mxu0 0.0
  %1104 = vmatpush2.xpose.msra.mxu0 0.0
  %1105 = vmatprep.subr.mxu0 0.0
  %1106 = vmatpush2.xpose.msra.mxu0 0.0
  %1107 = vmatprep.subr.mxu0 0.0
  %1108 = vmatpush2.xpose.msra.mxu0 0.0
  %1109 = vmatprep.subr.mxu0 0.0
  %1110 = vmatpush2.xpose.msra.mxu0 0.0
  %1111 = vmatprep.subr.mxu0 0.0
  %1112 = vmatpush2.xpose.msra.mxu0 0.0
  %1113 = vmatprep.subr.mxu0 0.0
  %1114 = vmatpush2.xpose.msra.mxu0 0.0
  %1115 = vmatprep.subr.mxu0 0.0
  %1116 = vmatpush2.xpose.msra.mxu0 0.0
  %1117 = vmatprep.subr.mxu0 0.0
  %1118 = vmatpush2.xpose.msra.mxu0 0.0
  %1119 = vmatprep.mubr.f32.mxu0 0.0
  %1120 = vmatmul.mubr.f32.gmra.mxu0 %v1051
  %v1121 = vpop.f32.mrf.mxu0
  %v1122 = vadd.f32 %v331, %v1121
  %v1123 = vpop.f32.mrf.mxu0
  %1124 = vdwg.mxu0
  %v1125 = vsel %vm332, %v1122, -inf
  %1126 = vmax.xlane.f32.xlu0 %v1125
  %v1127 = vpop.xlane.xlu0 %1126
  %v1128 = vsub.f32 %v1122, %v1127
  %v1129 = vmul.f32 %v1128, 1.442695
  %v1130 = vpow.pop %v1129
  %v1131 = vsel %vm332, %v1130, 0.0
  %1132 = vadd.xlane.f32.xlu0 %v1131
  %v1133 = vpop.xlane.xlu0 %1132
  %v1134 = vrcp.pop %v1133
  %v1135 = vmul.f32 %v1130, %v1134
  %1136 = vrot.lane.b32.xlu0 %v229, 104
  %v1137 = vpop.permute.xlu0 %1136
  %v1140 = vsel %vm332, %v1135, 0
  %1142 = vmatprep.subr.mxu0 0.0
  %1143 = vmatpush1.msra.mxu0 0.0
  %1144 = vmatprep.subr.mxu0 0.0
  %1145 = vmatpush1.msra.mxu0 0.0
  %1146 = vmatprep.subr.mxu0 0.0
  %1147 = vmatpush1.msra.mxu0 0.0
  %1148 = vmatprep.subr.mxu0 0.0
  %1149 = vmatpush1.msra.mxu0 0.0
  %1150 = vmatprep.subr.mxu0 0.0
  %1151 = vmatpush1.msra.mxu0 0.0
  %1152 = vmatprep.subr.mxu0 0.0
  %1153 = vmatpush1.msra.mxu0 0.0
  %1154 = vmatprep.subr.mxu0 0.0
  %1155 = vmatpush1.msra.mxu0 0.0
  %1156 = vmatprep.subr.mxu0 0.0
  %1157 = vmatpush1.msra.mxu0 0.0
  %1158 = vmatprep.subr.mxu0 0.0
  %1159 = vmatpush1.msra.mxu0 0.0
  %1160 = vmatprep.subr.mxu0 0.0
  %1161 = vmatpush1.msra.mxu0 0.0
  %1162 = vmatprep.subr.mxu0 0.0
  %1163 = vmatpush1.msra.mxu0 0.0
  %1164 = vmatprep.subr.mxu0 0.0
  %1165 = vmatpush1.msra.mxu0 0.0
  %1166 = vmatprep.subr.mxu0 0.0
  %1167 = vmatpush1.msra.mxu0 0.0
  %1168 = vmatprep.subr.mxu0 0.0
  %1169 = vmatpush1.msra.mxu0 0.0
  %1170 = vmatprep.subr.mxu0 0.0
  %1171 = vmatpush1.msra.mxu0 0.0
  %1172 = vmatprep.subr.mxu0 0.0
  %1173 = vmatpush1.msra.mxu0 %v1137
  %1174 = vmatprep.subr.mxu0 0.0
  %1175 = vmatpush2.msra.mxu0 0.0
  %1176 = vmatprep.subr.mxu0 0.0
  %1177 = vmatpush2.msra.mxu0 0.0
  %1178 = vmatprep.subr.mxu0 0.0
  %1179 = vmatpush2.msra.mxu0 0.0
  %1180 = vmatprep.subr.mxu0 0.0
  %1181 = vmatpush2.msra.mxu0 0.0
  %1182 = vmatprep.subr.mxu0 0.0
  %1183 = vmatpush2.msra.mxu0 0.0
  %1184 = vmatprep.subr.mxu0 0.0
  %1185 = vmatpush2.msra.mxu0 0.0
  %1186 = vmatprep.subr.mxu0 0.0
  %1187 = vmatpush2.msra.mxu0 0.0
  %1188 = vmatprep.subr.mxu0 0.0
  %1189 = vmatpush2.msra.mxu0 0.0
  %1190 = vmatprep.subr.mxu0 0.0
  %1191 = vmatpush2.msra.mxu0 0.0
  %1192 = vmatprep.subr.mxu0 0.0
  %1193 = vmatpush2.msra.mxu0 0.0
  %1194 = vmatprep.subr.mxu0 0.0
  %1195 = vmatpush2.msra.mxu0 0.0
  %1196 = vmatprep.subr.mxu0 0.0
  %1197 = vmatpush2.msra.mxu0 0.0
  %1198 = vmatprep.subr.mxu0 0.0
  %1199 = vmatpush2.msra.mxu0 0.0
  %1200 = vmatprep.subr.mxu0 0.0
  %1201 = vmatpush2.msra.mxu0 0.0
  %1202 = vmatprep.subr.mxu0 0.0
  %1203 = vmatpush2.msra.mxu0 0.0
  %1204 = vmatprep.subr.mxu0 0.0
  %1205 = vmatpush2.msra.mxu0 0.0
  %1206 = vmatprep.mubr.f32.mxu0 0.0
  %1207 = vmatmul.mubr.f32.gmra.mxu0 %v1140
  %v1208 = vpop.f32.mrf.mxu0
  %v1209 = vadd.f32 0.0, %v1208
  %v1210 = vpop.f32.mrf.mxu0
  %1211 = vdwg.mxu0
  %v1212 = vld [vmem:[%s6 + $0x18] sm:$0xff]
  %v1214 = vsel %vm332, %v1209, 0
  %1216 = vmatprep.subr.mxu0 0.0
  %1217 = vmatpush1.msra.mxu0 0.0
  %1218 = vmatprep.subr.mxu0 0.0
  %1219 = vmatpush1.msra.mxu0 0.0
  %1220 = vmatprep.subr.mxu0 0.0
  %1221 = vmatpush1.msra.mxu0 0.0
  %1222 = vmatprep.subr.mxu0 0.0
  %1223 = vmatpush1.msra.mxu0 0.0
  %1224 = vmatprep.subr.mxu0 0.0
  %1225 = vmatpush1.msra.mxu0 0.0
  %1226 = vmatprep.subr.mxu0 0.0
  %1227 = vmatpush1.msra.mxu0 0.0
  %1228 = vmatprep.subr.mxu0 0.0
  %1229 = vmatpush1.msra.mxu0 0.0
  %1230 = vmatprep.subr.mxu0 0.0
  %1231 = vmatpush1.msra.mxu0 0.0
  %1232 = vmatprep.subr.mxu0 0.0
  %1233 = vmatpush1.msra.mxu0 0.0
  %1234 = vmatprep.subr.mxu0 0.0
  %1235 = vmatpush1.msra.mxu0 0.0
  %1236 = vmatprep.subr.mxu0 0.0
  %1237 = vmatpush1.msra.mxu0 0.0
  %1238 = vmatprep.subr.mxu0 0.0
  %1239 = vmatpush1.msra.mxu0 0.0
  %1240 = vmatprep.subr.mxu0 0.0
  %1241 = vmatpush1.msra.mxu0 0.0
  %1242 = vmatprep.subr.mxu0 0.0
  %1243 = vmatpush1.msra.mxu0 0.0
  %1244 = vmatprep.subr.mxu0 0.0
  %1245 = vmatpush1.msra.mxu0 0.0
  %1246 = vmatprep.subr.mxu0 0.0
  %1247 = vmatpush1.msra.mxu0 %v1212
  %1248 = vmatprep.subr.mxu0 0.0
  %1249 = vmatpush2.msra.mxu0 0.0
  %1250 = vmatprep.subr.mxu0 0.0
  %1251 = vmatpush2.msra.mxu0 0.0
  %1252 = vmatprep.subr.mxu0 0.0
  %1253 = vmatpush2.msra.mxu0 0.0
  %1254 = vmatprep.subr.mxu0 0.0
  %1255 = vmatpush2.msra.mxu0 0.0
  %1256 = vmatprep.subr.mxu0 0.0
  %1257 = vmatpush2.msra.mxu0 0.0
  %1258 = vmatprep.subr.mxu0 0.0
  %1259 = vmatpush2.msra.mxu0 0.0
  %1260 = vmatprep.subr.mxu0 0.0
  %1261 = vmatpush2.msra.mxu0 0.0
  %1262 = vmatprep.subr.mxu0 0.0
  %1263 = vmatpush2.msra.mxu0 0.0
  %1264 = vmatprep.subr.mxu0 0.0
  %1265 = vmatpush2.msra.mxu0 0.0
  %1266 = vmatprep.subr.mxu0 0.0
  %1267 = vmatpush2.msra.mxu0 0.0
  %1268 = vmatprep.subr.mxu0 0.0
  %1269 = vmatpush2.msra.mxu0 0.0
  %1270 = vmatprep.subr.mxu0 0.0
  %1271 = vmatpush2.msra.mxu0 0.0
  %1272 = vmatprep.subr.mxu0 0.0
  %1273 = vmatpush2.msra.mxu0 0.0
  %1274 = vmatprep.subr.mxu0 0.0
  %1275 = vmatpush2.msra.mxu0 0.0
  %1276 = vmatprep.subr.mxu0 0.0
  %1277 = vmatpush2.msra.mxu0 0.0
  %1278 = vmatprep.subr.mxu0 0.0
  %1279 = vmatpush2.msra.mxu0 0.0
  %1280 = vmatprep.mubr.f32.mxu0 0.0
  %1281 = vmatmul.mubr.f32.gmra.mxu0 %v1214
  %v1282 = vpop.f32.mrf.mxu0
  %v1283 = vadd.f32 0.0, %v1282
  %v1284 = vpop.f32.mrf.mxu0
  %1285 = vdwg.mxu0
  %v1286 = vadd.f32 %v1046, %v1283
  %1287 = vrot.lane.b32.xlu0 %v322, 96
  %v1288 = vpop.permute.xlu0 %1287
  %1289 = vrot.lane.b32.xlu0 %v328, 96
  %v1290 = vpop.permute.xlu0 %1289
  %v1291 = vsel %vm332, %v1288, 0
  %v1293 = vsel %vm332, %v1290, 0
  %1295 = vmatprep.subr.mxu0 0.0
  %1296 = vmatpush1.xpose.msra.mxu0 0.0
  %1297 = vmatprep.subr.mxu0 0.0
  %1298 = vmatpush1.xpose.msra.mxu0 0.0
  %1299 = vmatprep.subr.mxu0 0.0
  %1300 = vmatpush1.xpose.msra.mxu0 0.0
  %1301 = vmatprep.subr.mxu0 0.0
  %1302 = vmatpush1.xpose.msra.mxu0 0.0
  %1303 = vmatprep.subr.mxu0 0.0
  %1304 = vmatpush1.xpose.msra.mxu0 0.0
  %1305 = vmatprep.subr.mxu0 0.0
  %1306 = vmatpush1.xpose.msra.mxu0 0.0
  %1307 = vmatprep.subr.mxu0 0.0
  %1308 = vmatpush1.xpose.msra.mxu0 0.0
  %1309 = vmatprep.subr.mxu0 0.0
  %1310 = vmatpush1.xpose.msra.mxu0 0.0
  %1311 = vmatprep.subr.mxu0 0.0
  %1312 = vmatpush1.xpose.msra.mxu0 0.0
  %1313 = vmatprep.subr.mxu0 0.0
  %1314 = vmatpush1.xpose.msra.mxu0 0.0
  %1315 = vmatprep.subr.mxu0 0.0
  %1316 = vmatpush1.xpose.msra.mxu0 0.0
  %1317 = vmatprep.subr.mxu0 0.0
  %1318 = vmatpush1.xpose.msra.mxu0 0.0
  %1319 = vmatprep.subr.mxu0 0.0
  %1320 = vmatpush1.xpose.msra.mxu0 0.0
  %1321 = vmatprep.subr.mxu0 0.0
  %1322 = vmatpush1.xpose.msra.mxu0 0.0
  %1323 = vmatprep.subr.mxu0 0.0
  %1324 = vmatpush1.xpose.msra.mxu0 0.0
  %1325 = vmatprep.subr.mxu0 0.0
  %1326 = vmatpush1.xpose.msra.mxu0 %v1293
  %1327 = vmatprep.subr.mxu0 0.0
  %1328 = vmatpush2.xpose.msra.mxu0 0.0
  %1329 = vmatprep.subr.mxu0 0.0
  %1330 = vmatpush2.xpose.msra.mxu0 0.0
  %1331 = vmatprep.subr.mxu0 0.0
  %1332 = vmatpush2.xpose.msra.mxu0 0.0
  %1333 = vmatprep.subr.mxu0 0.0
  %1334 = vmatpush2.xpose.msra.mxu0 0.0
  %1335 = vmatprep.subr.mxu0 0.0
  %1336 = vmatpush2.xpose.msra.mxu0 0.0
  %1337 = vmatprep.subr.mxu0 0.0
  %1338 = vmatpush2.xpose.msra.mxu0 0.0
  %1339 = vmatprep.subr.mxu0 0.0
  %1340 = vmatpush2.xpose.msra.mxu0 0.0
  %1341 = vmatprep.subr.mxu0 0.0
  %1342 = vmatpush2.xpose.msra.mxu0 0.0
  %1343 = vmatprep.subr.mxu0 0.0
  %1344 = vmatpush2.xpose.msra.mxu0 0.0
  %1345 = vmatprep.subr.mxu0 0.0
  %1346 = vmatpush2.xpose.msra.mxu0 0.0
  %1347 = vmatprep.subr.mxu0 0.0
  %1348 = vmatpush2.xpose.msra.mxu0 0.0
  %1349 = vmatprep.subr.mxu0 0.0
  %1350 = vmatpush2.xpose.msra.mxu0 0.0
  %1351 = vmatprep.subr.mxu0 0.0
  %1352 = vmatpush2.xpose.msra.mxu0 0.0
  %1353 = vmatprep.subr.mxu0 0.0
  %1354 = vmatpush2.xpose.msra.mxu0 0.0
  %1355 = vmatprep.subr.mxu0 0.0
  %1356 = vmatpush2.xpose.msra.mxu0 0.0
  %1357 = vmatprep.subr.mxu0 0.0
  %1358 = vmatpush2.xpose.msra.mxu0 0.0
  %1359 = vmatprep.mubr.f32.mxu0 0.0
  %1360 = vmatmul.mubr.f32.gmra.mxu0 %v1291
  %v1361 = vpop.f32.mrf.mxu0
  %v1362 = vadd.f32 %v331, %v1361
  %v1363 = vpop.f32.mrf.mxu0
  %1364 = vdwg.mxu0
  %v1365 = vsel %vm332, %v1362, -inf
  %1366 = vmax.xlane.f32.xlu0 %v1365
  %v1367 = vpop.xlane.xlu0 %1366
  %v1368 = vsub.f32 %v1362, %v1367
  %v1369 = vmul.f32 %v1368, 1.442695
  %v1370 = vpow.pop %v1369
  %v1371 = vsel %vm332, %v1370, 0.0
  %1372 = vadd.xlane.f32.xlu0 %v1371
  %v1373 = vpop.xlane.xlu0 %1372
  %v1374 = vrcp.pop %v1373
  %v1375 = vmul.f32 %v1370, %v1374
  %1376 = vrot.lane.b32.xlu0 %v229, 96
  %v1377 = vpop.permute.xlu0 %1376
  %v1380 = vsel %vm332, %v1375, 0
  %1382 = vmatprep.subr.mxu0 0.0
  %1383 = vmatpush1.msra.mxu0 0.0
  %1384 = vmatprep.subr.mxu0 0.0
  %1385 = vmatpush1.msra.mxu0 0.0
  %1386 = vmatprep.subr.mxu0 0.0
  %1387 = vmatpush1.msra.mxu0 0.0
  %1388 = vmatprep.subr.mxu0 0.0
  %1389 = vmatpush1.msra.mxu0 0.0
  %1390 = vmatprep.subr.mxu0 0.0
  %1391 = vmatpush1.msra.mxu0 0.0
  %1392 = vmatprep.subr.mxu0 0.0
  %1393 = vmatpush1.msra.mxu0 0.0
  %1394 = vmatprep.subr.mxu0 0.0
  %1395 = vmatpush1.msra.mxu0 0.0
  %1396 = vmatprep.subr.mxu0 0.0
  %1397 = vmatpush1.msra.mxu0 0.0
  %1398 = vmatprep.subr.mxu0 0.0
  %1399 = vmatpush1.msra.mxu0 0.0
  %1400 = vmatprep.subr.mxu0 0.0
  %1401 = vmatpush1.msra.mxu0 0.0
  %1402 = vmatprep.subr.mxu0 0.0
  %1403 = vmatpush1.msra.mxu0 0.0
  %1404 = vmatprep.subr.mxu0 0.0
  %1405 = vmatpush1.msra.mxu0 0.0
  %1406 = vmatprep.subr.mxu0 0.0
  %1407 = vmatpush1.msra.mxu0 0.0
  %1408 = vmatprep.subr.mxu0 0.0
  %1409 = vmatpush1.msra.mxu0 0.0
  %1410 = vmatprep.subr.mxu0 0.0
  %1411 = vmatpush1.msra.mxu0 0.0
  %1412 = vmatprep.subr.mxu0 0.0
  %1413 = vmatpush1.msra.mxu0 %v1377
  %1414 = vmatprep.subr.mxu0 0.0
  %1415 = vmatpush2.msra.mxu0 0.0
  %1416 = vmatprep.subr.mxu0 0.0
  %1417 = vmatpush2.msra.mxu0 0.0
  %1418 = vmatprep.subr.mxu0 0.0
  %1419 = vmatpush2.msra.mxu0 0.0
  %1420 = vmatprep.subr.mxu0 0.0
  %1421 = vmatpush2.msra.mxu0 0.0
  %1422 = vmatprep.subr.mxu0 0.0
  %1423 = vmatpush2.msra.mxu0 0.0
  %1424 = vmatprep.subr.mxu0 0.0
  %1425 = vmatpush2.msra.mxu0 0.0
  %1426 = vmatprep.subr.mxu0 0.0
  %1427 = vmatpush2.msra.mxu0 0.0
  %1428 = vmatprep.subr.mxu0 0.0
  %1429 = vmatpush2.msra.mxu0 0.0
  %1430 = vmatprep.subr.mxu0 0.0
  %1431 = vmatpush2.msra.mxu0 0.0
  %1432 = vmatprep.subr.mxu0 0.0
  %1433 = vmatpush2.msra.mxu0 0.0
  %1434 = vmatprep.subr.mxu0 0.0
  %1435 = vmatpush2.msra.mxu0 0.0
  %1436 = vmatprep.subr.mxu0 0.0
  %1437 = vmatpush2.msra.mxu0 0.0
  %1438 = vmatprep.subr.mxu0 0.0
  %1439 = vmatpush2.msra.mxu0 0.0
  %1440 = vmatprep.subr.mxu0 0.0
  %1441 = vmatpush2.msra.mxu0 0.0
  %1442 = vmatprep.subr.mxu0 0.0
  %1443 = vmatpush2.msra.mxu0 0.0
  %1444 = vmatprep.subr.mxu0 0.0
  %1445 = vmatpush2.msra.mxu0 0.0
  %1446 = vmatprep.mubr.f32.mxu0 0.0
  %1447 = vmatmul.mubr.f32.gmra.mxu0 %v1380
  %v1448 = vpop.f32.mrf.mxu0
  %v1449 = vadd.f32 0.0, %v1448
  %v1450 = vpop.f32.mrf.mxu0
  %1451 = vdwg.mxu0
  %v1452 = vld [vmem:[%s6 + $0x20] sm:$0xff]
  %v1454 = vsel %vm332, %v1449, 0
  %1456 = vmatprep.subr.mxu0 0.0
  %1457 = vmatpush1.msra.mxu0 0.0
  %1458 = vmatprep.subr.mxu0 0.0
  %1459 = vmatpush1.msra.mxu0 0.0
  %1460 = vmatprep.subr.mxu0 0.0
  %1461 = vmatpush1.msra.mxu0 0.0
  %1462 = vmatprep.subr.mxu0 0.0
  %1463 = vmatpush1.msra.mxu0 0.0
  %1464 = vmatprep.subr.mxu0 0.0
  %1465 = vmatpush1.msra.mxu0 0.0
  %1466 = vmatprep.subr.mxu0 0.0
  %1467 = vmatpush1.msra.mxu0 0.0
  %1468 = vmatprep.subr.mxu0 0.0
  %1469 = vmatpush1.msra.mxu0 0.0
  %1470 = vmatprep.subr.mxu0 0.0
  %1471 = vmatpush1.msra.mxu0 0.0
  %1472 = vmatprep.subr.mxu0 0.0
  %1473 = vmatpush1.msra.mxu0 0.0
  %1474 = vmatprep.subr.mxu0 0.0
  %1475 = vmatpush1.msra.mxu0 0.0
  %1476 = vmatprep.subr.mxu0 0.0
  %1477 = vmatpush1.msra.mxu0 0.0
  %1478 = vmatprep.subr.mxu0 0.0
  %1479 = vmatpush1.msra.mxu0 0.0
  %1480 = vmatprep.subr.mxu0 0.0
  %1481 = vmatpush1.msra.mxu0 0.0
  %1482 = vmatprep.subr.mxu0 0.0
  %1483 = vmatpush1.msra.mxu0 0.0
  %1484 = vmatprep.subr.mxu0 0.0
  %1485 = vmatpush1.msra.mxu0 0.0
  %1486 = vmatprep.subr.mxu0 0.0
  %1487 = vmatpush1.msra.mxu0 %v1452
  %1488 = vmatprep.subr.mxu0 0.0
  %1489 = vmatpush2.msra.mxu0 0.0
  %1490 = vmatprep.subr.mxu0 0.0
  %1491 = vmatpush2.msra.mxu0 0.0
  %1492 = vmatprep.subr.mxu0 0.0
  %1493 = vmatpush2.msra.mxu0 0.0
  %1494 = vmatprep.subr.mxu0 0.0
  %1495 = vmatpush2.msra.mxu0 0.0
  %1496 = vmatprep.subr.mxu0 0.0
  %1497 = vmatpush2.msra.mxu0 0.0
  %1498 = vmatprep.subr.mxu0 0.0
  %1499 = vmatpush2.msra.mxu0 0.0
  %1500 = vmatprep.subr.mxu0 0.0
  %1501 = vmatpush2.msra.mxu0 0.0
  %1502 = vmatprep.subr.mxu0 0.0
  %1503 = vmatpush2.msra.mxu0 0.0
  %1504 = vmatprep.subr.mxu0 0.0
  %1505 = vmatpush2.msra.mxu0 0.0
  %1506 = vmatprep.subr.mxu0 0.0
  %1507 = vmatpush2.msra.mxu0 0.0
  %1508 = vmatprep.subr.mxu0 0.0
  %1509 = vmatpush2.msra.mxu0 0.0
  %1510 = vmatprep.subr.mxu0 0.0
  %1511 = vmatpush2.msra.mxu0 0.0
  %1512 = vmatprep.subr.mxu0 0.0
  %1513 = vmatpush2.msra.mxu0 0.0
  %1514 = vmatprep.subr.mxu0 0.0
  %1515 = vmatpush2.msra.mxu0 0.0
  %1516 = vmatprep.subr.mxu0 0.0
  %1517 = vmatpush2.msra.mxu0 0.0
  %1518 = vmatprep.subr.mxu0 0.0
  %1519 = vmatpush2.msra.mxu0 0.0
  %1520 = vmatprep.mubr.f32.mxu0 0.0
  %1521 = vmatmul.mubr.f32.gmra.mxu0 %v1454
  %v1522 = vpop.f32.mrf.mxu0
  %v1523 = vadd.f32 0.0, %v1522
  %v1524 = vpop.f32.mrf.mxu0
  %1525 = vdwg.mxu0
  %v1526 = vadd.f32 %v1286, %v1523
  %v1528 = vlaneseq
  %v1529 = vshrl.u32 %v1528, 7
  %v1530 = vsub.s32 0, %v1529
  %v1531 = vrot.slane %v330, %v1530
  %v1533 = vadd.f32 %v1526, %v1531
  %1534 = vst [vmem:[%s8] sm:$0xff] %v1533
  %s1535 = scalar_lea.vmem %s5, 8
  %v1536 = vld [vmem:[%s1535] sm:$0xff]
  %v1538 = vsel %vm332, %v323, 0
  %v1541 = vsel %vm332, %v329, 0
  %1543 = vmatprep.subr.mxu0 0.0
  %1544 = vmatpush1.xpose.msra.mxu0 0.0
  %1545 = vmatprep.subr.mxu0 0.0
  %1546 = vmatpush1.xpose.msra.mxu0 0.0
  %1547 = vmatprep.subr.mxu0 0.0
  %1548 = vmatpush1.xpose.msra.mxu0 0.0
  %1549 = vmatprep.subr.mxu0 0.0
  %1550 = vmatpush1.xpose.msra.mxu0 0.0
  %1551 = vmatprep.subr.mxu0 0.0
  %1552 = vmatpush1.xpose.msra.mxu0 0.0
  %1553 = vmatprep.subr.mxu0 0.0
  %1554 = vmatpush1.xpose.msra.mxu0 0.0
  %1555 = vmatprep.subr.mxu0 0.0
  %1556 = vmatpush1.xpose.msra.mxu0 0.0
  %1557 = vmatprep.subr.mxu0 0.0
  %1558 = vmatpush1.xpose.msra.mxu0 0.0
  %1559 = vmatprep.subr.mxu0 0.0
  %1560 = vmatpush1.xpose.msra.mxu0 0.0
  %1561 = vmatprep.subr.mxu0 0.0
  %1562 = vmatpush1.xpose.msra.mxu0 0.0
  %1563 = vmatprep.subr.mxu0 0.0
  %1564 = vmatpush1.xpose.msra.mxu0 0.0
  %1565 = vmatprep.subr.mxu0 0.0
  %1566 = vmatpush1.xpose.msra.mxu0 0.0
  %1567 = vmatprep.subr.mxu0 0.0
  %1568 = vmatpush1.xpose.msra.mxu0 0.0
  %1569 = vmatprep.subr.mxu0 0.0
  %1570 = vmatpush1.xpose.msra.mxu0 0.0
  %1571 = vmatprep.subr.mxu0 0.0
  %1572 = vmatpush1.xpose.msra.mxu0 0.0
  %1573 = vmatprep.subr.mxu0 0.0
  %1574 = vmatpush1.xpose.msra.mxu0 %v1541
  %1575 = vmatprep.subr.mxu0 0.0
  %1576 = vmatpush2.xpose.msra.mxu0 0.0
  %1577 = vmatprep.subr.mxu0 0.0
  %1578 = vmatpush2.xpose.msra.mxu0 0.0
  %1579 = vmatprep.subr.mxu0 0.0
  %1580 = vmatpush2.xpose.msra.mxu0 0.0
  %1581 = vmatprep.subr.mxu0 0.0
  %1582 = vmatpush2.xpose.msra.mxu0 0.0
  %1583 = vmatprep.subr.mxu0 0.0
  %1584 = vmatpush2.xpose.msra.mxu0 0.0
  %1585 = vmatprep.subr.mxu0 0.0
  %1586 = vmatpush2.xpose.msra.mxu0 0.0
  %1587 = vmatprep.subr.mxu0 0.0
  %1588 = vmatpush2.xpose.msra.mxu0 0.0
  %1589 = vmatprep.subr.mxu0 0.0
  %1590 = vmatpush2.xpose.msra.mxu0 0.0
  %1591 = vmatprep.subr.mxu0 0.0
  %1592 = vmatpush2.xpose.msra.mxu0 0.0
  %1593 = vmatprep.subr.mxu0 0.0
  %1594 = vmatpush2.xpose.msra.mxu0 0.0
  %1595 = vmatprep.subr.mxu0 0.0
  %1596 = vmatpush2.xpose.msra.mxu0 0.0
  %1597 = vmatprep.subr.mxu0 0.0
  %1598 = vmatpush2.xpose.msra.mxu0 0.0
  %1599 = vmatprep.subr.mxu0 0.0
  %1600 = vmatpush2.xpose.msra.mxu0 0.0
  %1601 = vmatprep.subr.mxu0 0.0
  %1602 = vmatpush2.xpose.msra.mxu0 0.0
  %1603 = vmatprep.subr.mxu0 0.0
  %1604 = vmatpush2.xpose.msra.mxu0 0.0
  %1605 = vmatprep.subr.mxu0 0.0
  %1606 = vmatpush2.xpose.msra.mxu0 0.0
  %1607 = vmatprep.mubr.f32.mxu0 0.0
  %1608 = vmatmul.mubr.f32.gmra.mxu0 %v1538
  %v1609 = vpop.f32.mrf.mxu0
  %v1610 = vadd.f32 %v1536, %v1609
  %v1611 = vpop.f32.mrf.mxu0
  %1612 = vdwg.mxu0
  %v1613 = vsel %vm332, %v1610, -inf
  %1614 = vmax.xlane.f32.xlu0 %v1613
  %v1615 = vpop.xlane.xlu0 %1614
  %v1616 = vsub.f32 %v1610, %v1615
  %v1617 = vmul.f32 %v1616, 1.442695
  %v1618 = vpow.pop %v1617
  %v1619 = vsel %vm332, %v1618, 0.0
  %1620 = vadd.xlane.f32.xlu0 %v1619
  %v1621 = vpop.xlane.xlu0 %1620
  %v1622 = vrcp.pop %v1621
  %v1623 = vmul.f32 %v1618, %v1622
  %v1625 = vsel %vm332, %v1623, 0
  %1627 = vmatprep.subr.mxu0 0.0
  %1628 = vmatpush1.msra.mxu0 0.0
  %1629 = vmatprep.subr.mxu0 0.0
  %1630 = vmatpush1.msra.mxu0 0.0
  %1631 = vmatprep.subr.mxu0 0.0
  %1632 = vmatpush1.msra.mxu0 0.0
  %1633 = vmatprep.subr.mxu0 0.0
  %1634 = vmatpush1.msra.mxu0 0.0
  %1635 = vmatprep.subr.mxu0 0.0
  %1636 = vmatpush1.msra.mxu0 0.0
  %1637 = vmatprep.subr.mxu0 0.0
  %1638 = vmatpush1.msra.mxu0 0.0
  %1639 = vmatprep.subr.mxu0 0.0
  %1640 = vmatpush1.msra.mxu0 0.0
  %1641 = vmatprep.subr.mxu0 0.0
  %1642 = vmatpush1.msra.mxu0 0.0
  %1643 = vmatprep.subr.mxu0 0.0
  %1644 = vmatpush1.msra.mxu0 0.0
  %1645 = vmatprep.subr.mxu0 0.0
  %1646 = vmatpush1.msra.mxu0 0.0
  %1647 = vmatprep.subr.mxu0 0.0
  %1648 = vmatpush1.msra.mxu0 0.0
  %1649 = vmatprep.subr.mxu0 0.0
  %1650 = vmatpush1.msra.mxu0 0.0
  %1651 = vmatprep.subr.mxu0 0.0
  %1652 = vmatpush1.msra.mxu0 0.0
  %1653 = vmatprep.subr.mxu0 0.0
  %1654 = vmatpush1.msra.mxu0 0.0
  %1655 = vmatprep.subr.mxu0 0.0
  %1656 = vmatpush1.msra.mxu0 0.0
  %1657 = vmatprep.subr.mxu0 0.0
  %1658 = vmatpush1.msra.mxu0 %v235
  %1659 = vmatprep.subr.mxu0 0.0
  %1660 = vmatpush2.msra.mxu0 0.0
  %1661 = vmatprep.subr.mxu0 0.0
  %1662 = vmatpush2.msra.mxu0 0.0
  %1663 = vmatprep.subr.mxu0 0.0
  %1664 = vmatpush2.msra.mxu0 0.0
  %1665 = vmatprep.subr.mxu0 0.0
  %1666 = vmatpush2.msra.mxu0 0.0
  %1667 = vmatprep.subr.mxu0 0.0
  %1668 = vmatpush2.msra.mxu0 0.0
  %1669 = vmatprep.subr.mxu0 0.0
  %1670 = vmatpush2.msra.mxu0 0.0
  %1671 = vmatprep.subr.mxu0 0.0
  %1672 = vmatpush2.msra.mxu0 0.0
  %1673 = vmatprep.subr.mxu0 0.0
  %1674 = vmatpush2.msra.mxu0 0.0
  %1675 = vmatprep.subr.mxu0 0.0
  %1676 = vmatpush2.msra.mxu0 0.0
  %1677 = vmatprep.subr.mxu0 0.0
  %1678 = vmatpush2.msra.mxu0 0.0
  %1679 = vmatprep.subr.mxu0 0.0
  %1680 = vmatpush2.msra.mxu0 0.0
  %1681 = vmatprep.subr.mxu0 0.0
  %1682 = vmatpush2.msra.mxu0 0.0
  %1683 = vmatprep.subr.mxu0 0.0
  %1684 = vmatpush2.msra.mxu0 0.0
  %1685 = vmatprep.subr.mxu0 0.0
  %1686 = vmatpush2.msra.mxu0 0.0
  %1687 = vmatprep.subr.mxu0 0.0
  %1688 = vmatpush2.msra.mxu0 0.0
  %1689 = vmatprep.subr.mxu0 0.0
  %1690 = vmatpush2.msra.mxu0 0.0
  %1691 = vmatprep.mubr.f32.mxu0 0.0
  %1692 = vmatmul.mubr.f32.gmra.mxu0 %v1625
  %v1693 = vpop.f32.mrf.mxu0
  %v1694 = vadd.f32 0.0, %v1693
  %v1695 = vpop.f32.mrf.mxu0
  %1696 = vdwg.mxu0
  %v1697 = vld [vmem:[%s6] sm:$0xff]
  %1698 = vrot.lane.b32.xlu0 %v323, 120
  %v1699 = vpop.permute.xlu0 %1698
  %1700 = vrot.lane.b32.xlu0 %v329, 120
  %v1701 = vpop.permute.xlu0 %1700
  %v1702 = vsel %vm332, %v1699, 0
  %v1704 = vsel %vm332, %v1701, 0
  %1706 = vmatprep.subr.mxu0 0.0
  %1707 = vmatpush1.xpose.msra.mxu0 0.0
  %1708 = vmatprep.subr.mxu0 0.0
  %1709 = vmatpush1.xpose.msra.mxu0 0.0
  %1710 = vmatprep.subr.mxu0 0.0
  %1711 = vmatpush1.xpose.msra.mxu0 0.0
  %1712 = vmatprep.subr.mxu0 0.0
  %1713 = vmatpush1.xpose.msra.mxu0 0.0
  %1714 = vmatprep.subr.mxu0 0.0
  %1715 = vmatpush1.xpose.msra.mxu0 0.0
  %1716 = vmatprep.subr.mxu0 0.0
  %1717 = vmatpush1.xpose.msra.mxu0 0.0
  %1718 = vmatprep.subr.mxu0 0.0
  %1719 = vmatpush1.xpose.msra.mxu0 0.0
  %1720 = vmatprep.subr.mxu0 0.0
  %1721 = vmatpush1.xpose.msra.mxu0 0.0
  %1722 = vmatprep.subr.mxu0 0.0
  %1723 = vmatpush1.xpose.msra.mxu0 0.0
  %1724 = vmatprep.subr.mxu0 0.0
  %1725 = vmatpush1.xpose.msra.mxu0 0.0
  %1726 = vmatprep.subr.mxu0 0.0
  %1727 = vmatpush1.xpose.msra.mxu0 0.0
  %1728 = vmatprep.subr.mxu0 0.0
  %1729 = vmatpush1.xpose.msra.mxu0 0.0
  %1730 = vmatprep.subr.mxu0 0.0
  %1731 = vmatpush1.xpose.msra.mxu0 0.0
  %1732 = vmatprep.subr.mxu0 0.0
  %1733 = vmatpush1.xpose.msra.mxu0 0.0
  %1734 = vmatprep.subr.mxu0 0.0
  %1735 = vmatpush1.xpose.msra.mxu0 0.0
  %1736 = vmatprep.subr.mxu0 0.0
  %1737 = vmatpush1.xpose.msra.mxu0 %v1704
  %1738 = vmatprep.subr.mxu0 0.0
  %1739 = vmatpush2.xpose.msra.mxu0 0.0
  %1740 = vmatprep.subr.mxu0 0.0
  %1741 = vmatpush2.xpose.msra.mxu0 0.0
  %1742 = vmatprep.subr.mxu0 0.0
  %1743 = vmatpush2.xpose.msra.mxu0 0.0
  %1744 = vmatprep.subr.mxu0 0.0
  %1745 = vmatpush2.xpose.msra.mxu0 0.0
  %1746 = vmatprep.subr.mxu0 0.0
  %1747 = vmatpush2.xpose.msra.mxu0 0.0
  %1748 = vmatprep.subr.mxu0 0.0
  %1749 = vmatpush2.xpose.msra.mxu0 0.0
  %1750 = vmatprep.subr.mxu0 0.0
  %1751 = vmatpush2.xpose.msra.mxu0 0.0
  %1752 = vmatprep.subr.mxu0 0.0
  %1753 = vmatpush2.xpose.msra.mxu0 0.0
  %1754 = vmatprep.subr.mxu0 0.0
  %1755 = vmatpush2.xpose.msra.mxu0 0.0
  %1756 = vmatprep.subr.mxu0 0.0
  %1757 = vmatpush2.xpose.msra.mxu0 0.0
  %1758 = vmatprep.subr.mxu0 0.0
  %1759 = vmatpush2.xpose.msra.mxu0 0.0
  %1760 = vmatprep.subr.mxu0 0.0
  %1761 = vmatpush2.xpose.msra.mxu0 0.0
  %1762 = vmatprep.subr.mxu0 0.0
  %1763 = vmatpush2.xpose.msra.mxu0 0.0
  %1764 = vmatprep.subr.mxu0 0.0
  %1765 = vmatpush2.xpose.msra.mxu0 0.0
  %1766 = vmatprep.subr.mxu0 0.0
  %1767 = vmatpush2.xpose.msra.mxu0 0.0
  %1768 = vmatprep.subr.mxu0 0.0
  %1769 = vmatpush2.xpose.msra.mxu0 0.0
  %1770 = vmatprep.mubr.f32.mxu0 0.0
  %1771 = vmatmul.mubr.f32.gmra.mxu0 %v1702
  %v1772 = vpop.f32.mrf.mxu0
  %v1773 = vadd.f32 %v1536, %v1772
  %v1774 = vpop.f32.mrf.mxu0
  %1775 = vdwg.mxu0
  %v1776 = vsel %vm332, %v1773, -inf
  %1777 = vmax.xlane.f32.xlu0 %v1776
  %v1778 = vpop.xlane.xlu0 %1777
  %v1779 = vsub.f32 %v1773, %v1778
  %v1780 = vmul.f32 %v1779, 1.442695
  %v1781 = vpow.pop %v1780
  %v1782 = vsel %vm332, %v1781, 0.0
  %1783 = vadd.xlane.f32.xlu0 %v1782
  %v1784 = vpop.xlane.xlu0 %1783
  %v1785 = vrcp.pop %v1784
  %v1786 = vmul.f32 %v1781, %v1785
  %1788 = vrot.lane.b32.xlu0 %v235, 120
  %v1789 = vpop.permute.xlu0 %1788
  %v1792 = vsel %vm332, %v1786, 0
  %1794 = vmatprep.subr.mxu0 0.0
  %1795 = vmatpush1.msra.mxu0 0.0
  %1796 = vmatprep.subr.mxu0 0.0
  %1797 = vmatpush1.msra.mxu0 0.0
  %1798 = vmatprep.subr.mxu0 0.0
  %1799 = vmatpush1.msra.mxu0 0.0
  %1800 = vmatprep.subr.mxu0 0.0
  %1801 = vmatpush1.msra.mxu0 0.0
  %1802 = vmatprep.subr.mxu0 0.0
  %1803 = vmatpush1.msra.mxu0 0.0
  %1804 = vmatprep.subr.mxu0 0.0
  %1805 = vmatpush1.msra.mxu0 0.0
  %1806 = vmatprep.subr.mxu0 0.0
  %1807 = vmatpush1.msra.mxu0 0.0
  %1808 = vmatprep.subr.mxu0 0.0
  %1809 = vmatpush1.msra.mxu0 0.0
  %1810 = vmatprep.subr.mxu0 0.0
  %1811 = vmatpush1.msra.mxu0 0.0
  %1812 = vmatprep.subr.mxu0 0.0
  %1813 = vmatpush1.msra.mxu0 0.0
  %1814 = vmatprep.subr.mxu0 0.0
  %1815 = vmatpush1.msra.mxu0 0.0
  %1816 = vmatprep.subr.mxu0 0.0
  %1817 = vmatpush1.msra.mxu0 0.0
  %1818 = vmatprep.subr.mxu0 0.0
  %1819 = vmatpush1.msra.mxu0 0.0
  %1820 = vmatprep.subr.mxu0 0.0
  %1821 = vmatpush1.msra.mxu0 0.0
  %1822 = vmatprep.subr.mxu0 0.0
  %1823 = vmatpush1.msra.mxu0 0.0
  %1824 = vmatprep.subr.mxu0 0.0
  %1825 = vmatpush1.msra.mxu0 %v1789
  %1826 = vmatprep.subr.mxu0 0.0
  %1827 = vmatpush2.msra.mxu0 0.0
  %1828 = vmatprep.subr.mxu0 0.0
  %1829 = vmatpush2.msra.mxu0 0.0
  %1830 = vmatprep.subr.mxu0 0.0
  %1831 = vmatpush2.msra.mxu0 0.0
  %1832 = vmatprep.subr.mxu0 0.0
  %1833 = vmatpush2.msra.mxu0 0.0
  %1834 = vmatprep.subr.mxu0 0.0
  %1835 = vmatpush2.msra.mxu0 0.0
  %1836 = vmatprep.subr.mxu0 0.0
  %1837 = vmatpush2.msra.mxu0 0.0
  %1838 = vmatprep.subr.mxu0 0.0
  %1839 = vmatpush2.msra.mxu0 0.0
  %1840 = vmatprep.subr.mxu0 0.0
  %1841 = vmatpush2.msra.mxu0 0.0
  %1842 = vmatprep.subr.mxu0 0.0
  %1843 = vmatpush2.msra.mxu0 0.0
  %1844 = vmatprep.subr.mxu0 0.0
  %1845 = vmatpush2.msra.mxu0 0.0
  %1846 = vmatprep.subr.mxu0 0.0
  %1847 = vmatpush2.msra.mxu0 0.0
  %1848 = vmatprep.subr.mxu0 0.0
  %1849 = vmatpush2.msra.mxu0 0.0
  %1850 = vmatprep.subr.mxu0 0.0
  %1851 = vmatpush2.msra.mxu0 0.0
  %1852 = vmatprep.subr.mxu0 0.0
  %1853 = vmatpush2.msra.mxu0 0.0
  %1854 = vmatprep.subr.mxu0 0.0
  %1855 = vmatpush2.msra.mxu0 0.0
  %1856 = vmatprep.subr.mxu0 0.0
  %1857 = vmatpush2.msra.mxu0 0.0
  %1858 = vmatprep.mubr.f32.mxu0 0.0
  %1859 = vmatmul.mubr.f32.gmra.mxu0 %v1792
  %v1860 = vpop.f32.mrf.mxu0
  %v1861 = vadd.f32 0.0, %v1860
  %v1862 = vpop.f32.mrf.mxu0
  %1863 = vdwg.mxu0
  %v1864 = vld [vmem:[%s6 + $0x8] sm:$0xff]
  %v1866 = vsel %vm332, %v1861, 0
  %1868 = vmatprep.subr.mxu0 0.0
  %1869 = vmatpush1.msra.mxu0 0.0
  %1870 = vmatprep.subr.mxu0 0.0
  %1871 = vmatpush1.msra.mxu0 0.0
  %1872 = vmatprep.subr.mxu0 0.0
  %1873 = vmatpush1.msra.mxu0 0.0
  %1874 = vmatprep.subr.mxu0 0.0
  %1875 = vmatpush1.msra.mxu0 0.0
  %1876 = vmatprep.subr.mxu0 0.0
  %1877 = vmatpush1.msra.mxu0 0.0
  %1878 = vmatprep.subr.mxu0 0.0
  %1879 = vmatpush1.msra.mxu0 0.0
  %1880 = vmatprep.subr.mxu0 0.0
  %1881 = vmatpush1.msra.mxu0 0.0
  %1882 = vmatprep.subr.mxu0 0.0
  %1883 = vmatpush1.msra.mxu0 0.0
  %1884 = vmatprep.subr.mxu0 0.0
  %1885 = vmatpush1.msra.mxu0 0.0
  %1886 = vmatprep.subr.mxu0 0.0
  %1887 = vmatpush1.msra.mxu0 0.0
  %1888 = vmatprep.subr.mxu0 0.0
  %1889 = vmatpush1.msra.mxu0 0.0
  %1890 = vmatprep.subr.mxu0 0.0
  %1891 = vmatpush1.msra.mxu0 0.0
  %1892 = vmatprep.subr.mxu0 0.0
  %1893 = vmatpush1.msra.mxu0 0.0
  %1894 = vmatprep.subr.mxu0 0.0
  %1895 = vmatpush1.msra.mxu0 0.0
  %1896 = vmatprep.subr.mxu0 0.0
  %1897 = vmatpush1.msra.mxu0 0.0
  %1898 = vmatprep.subr.mxu0 0.0
  %1899 = vmatpush1.msra.mxu0 %v1864
  %1900 = vmatprep.subr.mxu0 0.0
  %1901 = vmatpush2.msra.mxu0 0.0
  %1902 = vmatprep.subr.mxu0 0.0
  %1903 = vmatpush2.msra.mxu0 0.0
  %1904 = vmatprep.subr.mxu0 0.0
  %1905 = vmatpush2.msra.mxu0 0.0
  %1906 = vmatprep.subr.mxu0 0.0
  %1907 = vmatpush2.msra.mxu0 0.0
  %1908 = vmatprep.subr.mxu0 0.0
  %1909 = vmatpush2.msra.mxu0 0.0
  %1910 = vmatprep.subr.mxu0 0.0
  %1911 = vmatpush2.msra.mxu0 0.0
  %1912 = vmatprep.subr.mxu0 0.0
  %1913 = vmatpush2.msra.mxu0 0.0
  %1914 = vmatprep.subr.mxu0 0.0
  %1915 = vmatpush2.msra.mxu0 0.0
  %1916 = vmatprep.subr.mxu0 0.0
  %1917 = vmatpush2.msra.mxu0 0.0
  %1918 = vmatprep.subr.mxu0 0.0
  %1919 = vmatpush2.msra.mxu0 0.0
  %1920 = vmatprep.subr.mxu0 0.0
  %1921 = vmatpush2.msra.mxu0 0.0
  %1922 = vmatprep.subr.mxu0 0.0
  %1923 = vmatpush2.msra.mxu0 0.0
  %1924 = vmatprep.subr.mxu0 0.0
  %1925 = vmatpush2.msra.mxu0 0.0
  %1926 = vmatprep.subr.mxu0 0.0
  %1927 = vmatpush2.msra.mxu0 0.0
  %1928 = vmatprep.subr.mxu0 0.0
  %1929 = vmatpush2.msra.mxu0 0.0
  %1930 = vmatprep.subr.mxu0 0.0
  %1931 = vmatpush2.msra.mxu0 0.0
  %1932 = vmatprep.mubr.f32.mxu0 0.0
  %1933 = vmatmul.mubr.f32.gmra.mxu0 %v1866
  %v1934 = vpop.f32.mrf.mxu0
  %v1935 = vadd.f32 0.0, %v1934
  %v1936 = vpop.f32.mrf.mxu0
  %1937 = vdwg.mxu0
  %v1939 = vsel %vm332, %v1694, 0
  %1941 = vmatprep.subr.mxu0 0.0
  %1942 = vmatpush1.msra.mxu0 0.0
  %1943 = vmatprep.subr.mxu0 0.0
  %1944 = vmatpush1.msra.mxu0 0.0
  %1945 = vmatprep.subr.mxu0 0.0
  %1946 = vmatpush1.msra.mxu0 0.0
  %1947 = vmatprep.subr.mxu0 0.0
  %1948 = vmatpush1.msra.mxu0 0.0
  %1949 = vmatprep.subr.mxu0 0.0
  %1950 = vmatpush1.msra.mxu0 0.0
  %1951 = vmatprep.subr.mxu0 0.0
  %1952 = vmatpush1.msra.mxu0 0.0
  %1953 = vmatprep.subr.mxu0 0.0
  %1954 = vmatpush1.msra.mxu0 0.0
  %1955 = vmatprep.subr.mxu0 0.0
  %1956 = vmatpush1.msra.mxu0 0.0
  %1957 = vmatprep.subr.mxu0 0.0
  %1958 = vmatpush1.msra.mxu0 0.0
  %1959 = vmatprep.subr.mxu0 0.0
  %1960 = vmatpush1.msra.mxu0 0.0
  %1961 = vmatprep.subr.mxu0 0.0
  %1962 = vmatpush1.msra.mxu0 0.0
  %1963 = vmatprep.subr.mxu0 0.0
  %1964 = vmatpush1.msra.mxu0 0.0
  %1965 = vmatprep.subr.mxu0 0.0
  %1966 = vmatpush1.msra.mxu0 0.0
  %1967 = vmatprep.subr.mxu0 0.0
  %1968 = vmatpush1.msra.mxu0 0.0
  %1969 = vmatprep.subr.mxu0 0.0
  %1970 = vmatpush1.msra.mxu0 0.0
  %1971 = vmatprep.subr.mxu0 0.0
  %1972 = vmatpush1.msra.mxu0 %v1697
  %1973 = vmatprep.subr.mxu0 0.0
  %1974 = vmatpush2.msra.mxu0 0.0
  %1975 = vmatprep.subr.mxu0 0.0
  %1976 = vmatpush2.msra.mxu0 0.0
  %1977 = vmatprep.subr.mxu0 0.0
  %1978 = vmatpush2.msra.mxu0 0.0
  %1979 = vmatprep.subr.mxu0 0.0
  %1980 = vmatpush2.msra.mxu0 0.0
  %1981 = vmatprep.subr.mxu0 0.0
  %1982 = vmatpush2.msra.mxu0 0.0
  %1983 = vmatprep.subr.mxu0 0.0
  %1984 = vmatpush2.msra.mxu0 0.0
  %1985 = vmatprep.subr.mxu0 0.0
  %1986 = vmatpush2.msra.mxu0 0.0
  %1987 = vmatprep.subr.mxu0 0.0
  %1988 = vmatpush2.msra.mxu0 0.0
  %1989 = vmatprep.subr.mxu0 0.0
  %1990 = vmatpush2.msra.mxu0 0.0
  %1991 = vmatprep.subr.mxu0 0.0
  %1992 = vmatpush2.msra.mxu0 0.0
  %1993 = vmatprep.subr.mxu0 0.0
  %1994 = vmatpush2.msra.mxu0 0.0
  %1995 = vmatprep.subr.mxu0 0.0
  %1996 = vmatpush2.msra.mxu0 0.0
  %1997 = vmatprep.subr.mxu0 0.0
  %1998 = vmatpush2.msra.mxu0 0.0
  %1999 = vmatprep.subr.mxu0 0.0
  %2000 = vmatpush2.msra.mxu0 0.0
  %2001 = vmatprep.subr.mxu0 0.0
  %2002 = vmatpush2.msra.mxu0 0.0
  %2003 = vmatprep.subr.mxu0 0.0
  %2004 = vmatpush2.msra.mxu0 0.0
  %2005 = vmatprep.mubr.f32.mxu0 0.0
  %2006 = vmatmul.mubr.f32.gmra.mxu0 %v1939
  %v2007 = vpop.f32.mrf.mxu0
  %v2008 = vadd.f32 %v1935, %v2007
  %v2009 = vpop.f32.mrf.mxu0
  %2010 = vdwg.mxu0
  %2011 = vrot.lane.b32.xlu0 %v323, 112
  %v2012 = vpop.permute.xlu0 %2011
  %2013 = vrot.lane.b32.xlu0 %v329, 112
  %v2014 = vpop.permute.xlu0 %2013
  %v2015 = vsel %vm332, %v2012, 0
  %v2017 = vsel %vm332, %v2014, 0
  %2019 = vmatprep.subr.mxu0 0.0
  %2020 = vmatpush1.xpose.msra.mxu0 0.0
  %2021 = vmatprep.subr.mxu0 0.0
  %2022 = vmatpush1.xpose.msra.mxu0 0.0
  %2023 = vmatprep.subr.mxu0 0.0
  %2024 = vmatpush1.xpose.msra.mxu0 0.0
  %2025 = vmatprep.subr.mxu0 0.0
  %2026 = vmatpush1.xpose.msra.mxu0 0.0
  %2027 = vmatprep.subr.mxu0 0.0
  %2028 = vmatpush1.xpose.msra.mxu0 0.0
  %2029 = vmatprep.subr.mxu0 0.0
  %2030 = vmatpush1.xpose.msra.mxu0 0.0
  %2031 = vmatprep.subr.mxu0 0.0
  %2032 = vmatpush1.xpose.msra.mxu0 0.0
  %2033 = vmatprep.subr.mxu0 0.0
  %2034 = vmatpush1.xpose.msra.mxu0 0.0
  %2035 = vmatprep.subr.mxu0 0.0
  %2036 = vmatpush1.xpose.msra.mxu0 0.0
  %2037 = vmatprep.subr.mxu0 0.0
  %2038 = vmatpush1.xpose.msra.mxu0 0.0
  %2039 = vmatprep.subr.mxu0 0.0
  %2040 = vmatpush1.xpose.msra.mxu0 0.0
  %2041 = vmatprep.subr.mxu0 0.0
  %2042 = vmatpush1.xpose.msra.mxu0 0.0
  %2043 = vmatprep.subr.mxu0 0.0
  %2044 = vmatpush1.xpose.msra.mxu0 0.0
  %2045 = vmatprep.subr.mxu0 0.0
  %2046 = vmatpush1.xpose.msra.mxu0 0.0
  %2047 = vmatprep.subr.mxu0 0.0
  %2048 = vmatpush1.xpose.msra.mxu0 0.0
  %2049 = vmatprep.subr.mxu0 0.0
  %2050 = vmatpush1.xpose.msra.mxu0 %v2017
  %2051 = vmatprep.subr.mxu0 0.0
  %2052 = vmatpush2.xpose.msra.mxu0 0.0
  %2053 = vmatprep.subr.mxu0 0.0
  %2054 = vmatpush2.xpose.msra.mxu0 0.0
  %2055 = vmatprep.subr.mxu0 0.0
  %2056 = vmatpush2.xpose.msra.mxu0 0.0
  %2057 = vmatprep.subr.mxu0 0.0
  %2058 = vmatpush2.xpose.msra.mxu0 0.0
  %2059 = vmatprep.subr.mxu0 0.0
  %2060 = vmatpush2.xpose.msra.mxu0 0.0
  %2061 = vmatprep.subr.mxu0 0.0
  %2062 = vmatpush2.xpose.msra.mxu0 0.0
  %2063 = vmatprep.subr.mxu0 0.0
  %2064 = vmatpush2.xpose.msra.mxu0 0.0
  %2065 = vmatprep.subr.mxu0 0.0
  %2066 = vmatpush2.xpose.msra.mxu0 0.0
  %2067 = vmatprep.subr.mxu0 0.0
  %2068 = vmatpush2.xpose.msra.mxu0 0.0
  %2069 = vmatprep.subr.mxu0 0.0
  %2070 = vmatpush2.xpose.msra.mxu0 0.0
  %2071 = vmatprep.subr.mxu0 0.0
  %2072 = vmatpush2.xpose.msra.mxu0 0.0
  %2073 = vmatprep.subr.mxu0 0.0
  %2074 = vmatpush2.xpose.msra.mxu0 0.0
  %2075 = vmatprep.subr.mxu0 0.0
  %2076 = vmatpush2.xpose.msra.mxu0 0.0
  %2077 = vmatprep.subr.mxu0 0.0
  %2078 = vmatpush2.xpose.msra.mxu0 0.0
  %2079 = vmatprep.subr.mxu0 0.0
  %2080 = vmatpush2.xpose.msra.mxu0 0.0
  %2081 = vmatprep.subr.mxu0 0.0
  %2082 = vmatpush2.xpose.msra.mxu0 0.0
  %2083 = vmatprep.mubr.f32.mxu0 0.0
  %2084 = vmatmul.mubr.f32.gmra.mxu0 %v2015
  %v2085 = vpop.f32.mrf.mxu0
  %v2086 = vadd.f32 %v1536, %v2085
  %v2087 = vpop.f32.mrf.mxu0
  %2088 = vdwg.mxu0
  %v2089 = vsel %vm332, %v2086, -inf
  %2090 = vmax.xlane.f32.xlu0 %v2089
  %v2091 = vpop.xlane.xlu0 %2090
  %v2092 = vsub.f32 %v2086, %v2091
  %v2093 = vmul.f32 %v2092, 1.442695
  %v2094 = vpow.pop %v2093
  %v2095 = vsel %vm332, %v2094, 0.0
  %2096 = vadd.xlane.f32.xlu0 %v2095
  %v2097 = vpop.xlane.xlu0 %2096
  %v2098 = vrcp.pop %v2097
  %v2099 = vmul.f32 %v2094, %v2098
  %2100 = vrot.lane.b32.xlu0 %v235, 112
  %v2101 = vpop.permute.xlu0 %2100
  %v2104 = vsel %vm332, %v2099, 0
  %2106 = vmatprep.subr.mxu0 0.0
  %2107 = vmatpush1.msra.mxu0 0.0
  %2108 = vmatprep.subr.mxu0 0.0
  %2109 = vmatpush1.msra.mxu0 0.0
  %2110 = vmatprep.subr.mxu0 0.0
  %2111 = vmatpush1.msra.mxu0 0.0
  %2112 = vmatprep.subr.mxu0 0.0
  %2113 = vmatpush1.msra.mxu0 0.0
  %2114 = vmatprep.subr.mxu0 0.0
  %2115 = vmatpush1.msra.mxu0 0.0
  %2116 = vmatprep.subr.mxu0 0.0
  %2117 = vmatpush1.msra.mxu0 0.0
  %2118 = vmatprep.subr.mxu0 0.0
  %2119 = vmatpush1.msra.mxu0 0.0
  %2120 = vmatprep.subr.mxu0 0.0
  %2121 = vmatpush1.msra.mxu0 0.0
  %2122 = vmatprep.subr.mxu0 0.0
  %2123 = vmatpush1.msra.mxu0 0.0
  %2124 = vmatprep.subr.mxu0 0.0
  %2125 = vmatpush1.msra.mxu0 0.0
  %2126 = vmatprep.subr.mxu0 0.0
  %2127 = vmatpush1.msra.mxu0 0.0
  %2128 = vmatprep.subr.mxu0 0.0
  %2129 = vmatpush1.msra.mxu0 0.0
  %2130 = vmatprep.subr.mxu0 0.0
  %2131 = vmatpush1.msra.mxu0 0.0
  %2132 = vmatprep.subr.mxu0 0.0
  %2133 = vmatpush1.msra.mxu0 0.0
  %2134 = vmatprep.subr.mxu0 0.0
  %2135 = vmatpush1.msra.mxu0 0.0
  %2136 = vmatprep.subr.mxu0 0.0
  %2137 = vmatpush1.msra.mxu0 %v2101
  %2138 = vmatprep.subr.mxu0 0.0
  %2139 = vmatpush2.msra.mxu0 0.0
  %2140 = vmatprep.subr.mxu0 0.0
  %2141 = vmatpush2.msra.mxu0 0.0
  %2142 = vmatprep.subr.mxu0 0.0
  %2143 = vmatpush2.msra.mxu0 0.0
  %2144 = vmatprep.subr.mxu0 0.0
  %2145 = vmatpush2.msra.mxu0 0.0
  %2146 = vmatprep.subr.mxu0 0.0
  %2147 = vmatpush2.msra.mxu0 0.0
  %2148 = vmatprep.subr.mxu0 0.0
  %2149 = vmatpush2.msra.mxu0 0.0
  %2150 = vmatprep.subr.mxu0 0.0
  %2151 = vmatpush2.msra.mxu0 0.0
  %2152 = vmatprep.subr.mxu0 0.0
  %2153 = vmatpush2.msra.mxu0 0.0
  %2154 = vmatprep.subr.mxu0 0.0
  %2155 = vmatpush2.msra.mxu0 0.0
  %2156 = vmatprep.subr.mxu0 0.0
  %2157 = vmatpush2.msra.mxu0 0.0
  %2158 = vmatprep.subr.mxu0 0.0
  %2159 = vmatpush2.msra.mxu0 0.0
  %2160 = vmatprep.subr.mxu0 0.0
  %2161 = vmatpush2.msra.mxu0 0.0
  %2162 = vmatprep.subr.mxu0 0.0
  %2163 = vmatpush2.msra.mxu0 0.0
  %2164 = vmatprep.subr.mxu0 0.0
  %2165 = vmatpush2.msra.mxu0 0.0
  %2166 = vmatprep.subr.mxu0 0.0
  %2167 = vmatpush2.msra.mxu0 0.0
  %2168 = vmatprep.subr.mxu0 0.0
  %2169 = vmatpush2.msra.mxu0 0.0
  %2170 = vmatprep.mubr.f32.mxu0 0.0
  %2171 = vmatmul.mubr.f32.gmra.mxu0 %v2104
  %v2172 = vpop.f32.mrf.mxu0
  %v2173 = vadd.f32 0.0, %v2172
  %v2174 = vpop.f32.mrf.mxu0
  %2175 = vdwg.mxu0
  %v2176 = vld [vmem:[%s6 + $0x10] sm:$0xff]
  %v2178 = vsel %vm332, %v2173, 0
  %2180 = vmatprep.subr.mxu0 0.0
  %2181 = vmatpush1.msra.mxu0 0.0
  %2182 = vmatprep.subr.mxu0 0.0
  %2183 = vmatpush1.msra.mxu0 0.0
  %2184 = vmatprep.subr.mxu0 0.0
  %2185 = vmatpush1.msra.mxu0 0.0
  %2186 = vmatprep.subr.mxu0 0.0
  %2187 = vmatpush1.msra.mxu0 0.0
  %2188 = vmatprep.subr.mxu0 0.0
  %2189 = vmatpush1.msra.mxu0 0.0
  %2190 = vmatprep.subr.mxu0 0.0
  %2191 = vmatpush1.msra.mxu0 0.0
  %2192 = vmatprep.subr.mxu0 0.0
  %2193 = vmatpush1.msra.mxu0 0.0
  %2194 = vmatprep.subr.mxu0 0.0
  %2195 = vmatpush1.msra.mxu0 0.0
  %2196 = vmatprep.subr.mxu0 0.0
  %2197 = vmatpush1.msra.mxu0 0.0
  %2198 = vmatprep.subr.mxu0 0.0
  %2199 = vmatpush1.msra.mxu0 0.0
  %2200 = vmatprep.subr.mxu0 0.0
  %2201 = vmatpush1.msra.mxu0 0.0
  %2202 = vmatprep.subr.mxu0 0.0
  %2203 = vmatpush1.msra.mxu0 0.0
  %2204 = vmatprep.subr.mxu0 0.0
  %2205 = vmatpush1.msra.mxu0 0.0
  %2206 = vmatprep.subr.mxu0 0.0
  %2207 = vmatpush1.msra.mxu0 0.0
  %2208 = vmatprep.subr.mxu0 0.0
  %2209 = vmatpush1.msra.mxu0 0.0
  %2210 = vmatprep.subr.mxu0 0.0
  %2211 = vmatpush1.msra.mxu0 %v2176
  %2212 = vmatprep.subr.mxu0 0.0
  %2213 = vmatpush2.msra.mxu0 0.0
  %2214 = vmatprep.subr.mxu0 0.0
  %2215 = vmatpush2.msra.mxu0 0.0
  %2216 = vmatprep.subr.mxu0 0.0
  %2217 = vmatpush2.msra.mxu0 0.0
  %2218 = vmatprep.subr.mxu0 0.0
  %2219 = vmatpush2.msra.mxu0 0.0
  %2220 = vmatprep.subr.mxu0 0.0
  %2221 = vmatpush2.msra.mxu0 0.0
  %2222 = vmatprep.subr.mxu0 0.0
  %2223 = vmatpush2.msra.mxu0 0.0
  %2224 = vmatprep.subr.mxu0 0.0
  %2225 = vmatpush2.msra.mxu0 0.0
  %2226 = vmatprep.subr.mxu0 0.0
  %2227 = vmatpush2.msra.mxu0 0.0
  %2228 = vmatprep.subr.mxu0 0.0
  %2229 = vmatpush2.msra.mxu0 0.0
  %2230 = vmatprep.subr.mxu0 0.0
  %2231 = vmatpush2.msra.mxu0 0.0
  %2232 = vmatprep.subr.mxu0 0.0
  %2233 = vmatpush2.msra.mxu0 0.0
  %2234 = vmatprep.subr.mxu0 0.0
  %2235 = vmatpush2.msra.mxu0 0.0
  %2236 = vmatprep.subr.mxu0 0.0
  %2237 = vmatpush2.msra.mxu0 0.0
  %2238 = vmatprep.subr.mxu0 0.0
  %2239 = vmatpush2.msra.mxu0 0.0
  %2240 = vmatprep.subr.mxu0 0.0
  %2241 = vmatpush2.msra.mxu0 0.0
  %2242 = vmatprep.subr.mxu0 0.0
  %2243 = vmatpush2.msra.mxu0 0.0
  %2244 = vmatprep.mubr.f32.mxu0 0.0
  %2245 = vmatmul.mubr.f32.gmra.mxu0 %v2178
  %v2246 = vpop.f32.mrf.mxu0
  %v2247 = vadd.f32 0.0, %v2246
  %v2248 = vpop.f32.mrf.mxu0
  %2249 = vdwg.mxu0
  %v2250 = vadd.f32 %v2008, %v2247
  %2251 = vrot.lane.b32.xlu0 %v323, 104
  %v2252 = vpop.permute.xlu0 %2251
  %2253 = vrot.lane.b32.xlu0 %v329, 104
  %v2254 = vpop.permute.xlu0 %2253
  %v2255 = vsel %vm332, %v2252, 0
  %v2257 = vsel %vm332, %v2254, 0
  %2259 = vmatprep.subr.mxu0 0.0
  %2260 = vmatpush1.xpose.msra.mxu0 0.0
  %2261 = vmatprep.subr.mxu0 0.0
  %2262 = vmatpush1.xpose.msra.mxu0 0.0
  %2263 = vmatprep.subr.mxu0 0.0
  %2264 = vmatpush1.xpose.msra.mxu0 0.0
  %2265 = vmatprep.subr.mxu0 0.0
  %2266 = vmatpush1.xpose.msra.mxu0 0.0
  %2267 = vmatprep.subr.mxu0 0.0
  %2268 = vmatpush1.xpose.msra.mxu0 0.0
  %2269 = vmatprep.subr.mxu0 0.0
  %2270 = vmatpush1.xpose.msra.mxu0 0.0
  %2271 = vmatprep.subr.mxu0 0.0
  %2272 = vmatpush1.xpose.msra.mxu0 0.0
  %2273 = vmatprep.subr.mxu0 0.0
  %2274 = vmatpush1.xpose.msra.mxu0 0.0
  %2275 = vmatprep.subr.mxu0 0.0
  %2276 = vmatpush1.xpose.msra.mxu0 0.0
  %2277 = vmatprep.subr.mxu0 0.0
  %2278 = vmatpush1.xpose.msra.mxu0 0.0
  %2279 = vmatprep.subr.mxu0 0.0
  %2280 = vmatpush1.xpose.msra.mxu0 0.0
  %2281 = vmatprep.subr.mxu0 0.0
  %2282 = vmatpush1.xpose.msra.mxu0 0.0
  %2283 = vmatprep.subr.mxu0 0.0
  %2284 = vmatpush1.xpose.msra.mxu0 0.0
  %2285 = vmatprep.subr.mxu0 0.0
  %2286 = vmatpush1.xpose.msra.mxu0 0.0
  %2287 = vmatprep.subr.mxu0 0.0
  %2288 = vmatpush1.xpose.msra.mxu0 0.0
  %2289 = vmatprep.subr.mxu0 0.0
  %2290 = vmatpush1.xpose.msra.mxu0 %v2257
  %2291 = vmatprep.subr.mxu0 0.0
  %2292 = vmatpush2.xpose.msra.mxu0 0.0
  %2293 = vmatprep.subr.mxu0 0.0
  %2294 = vmatpush2.xpose.msra.mxu0 0.0
  %2295 = vmatprep.subr.mxu0 0.0
  %2296 = vmatpush2.xpose.msra.mxu0 0.0
  %2297 = vmatprep.subr.mxu0 0.0
  %2298 = vmatpush2.xpose.msra.mxu0 0.0
  %2299 = vmatprep.subr.mxu0 0.0
  %2300 = vmatpush2.xpose.msra.mxu0 0.0
  %2301 = vmatprep.subr.mxu0 0.0
  %2302 = vmatpush2.xpose.msra.mxu0 0.0
  %2303 = vmatprep.subr.mxu0 0.0
  %2304 = vmatpush2.xpose.msra.mxu0 0.0
  %2305 = vmatprep.subr.mxu0 0.0
  %2306 = vmatpush2.xpose.msra.mxu0 0.0
  %2307 = vmatprep.subr.mxu0 0.0
  %2308 = vmatpush2.xpose.msra.mxu0 0.0
  %2309 = vmatprep.subr.mxu0 0.0
  %2310 = vmatpush2.xpose.msra.mxu0 0.0
  %2311 = vmatprep.subr.mxu0 0.0
  %2312 = vmatpush2.xpose.msra.mxu0 0.0
  %2313 = vmatprep.subr.mxu0 0.0
  %2314 = vmatpush2.xpose.msra.mxu0 0.0
  %2315 = vmatprep.subr.mxu0 0.0
  %2316 = vmatpush2.xpose.msra.mxu0 0.0
  %2317 = vmatprep.subr.mxu0 0.0
  %2318 = vmatpush2.xpose.msra.mxu0 0.0
  %2319 = vmatprep.subr.mxu0 0.0
  %2320 = vmatpush2.xpose.msra.mxu0 0.0
  %2321 = vmatprep.subr.mxu0 0.0
  %2322 = vmatpush2.xpose.msra.mxu0 0.0
  %2323 = vmatprep.mubr.f32.mxu0 0.0
  %2324 = vmatmul.mubr.f32.gmra.mxu0 %v2255
  %v2325 = vpop.f32.mrf.mxu0
  %v2326 = vadd.f32 %v1536, %v2325
  %v2327 = vpop.f32.mrf.mxu0
  %2328 = vdwg.mxu0
  %v2329 = vsel %vm332, %v2326, -inf
  %2330 = vmax.xlane.f32.xlu0 %v2329
  %v2331 = vpop.xlane.xlu0 %2330
  %v2332 = vsub.f32 %v2326, %v2331
  %v2333 = vmul.f32 %v2332, 1.442695
  %v2334 = vpow.pop %v2333
  %v2335 = vsel %vm332, %v2334, 0.0
  %2336 = vadd.xlane.f32.xlu0 %v2335
  %v2337 = vpop.xlane.xlu0 %2336
  %v2338 = vrcp.pop %v2337
  %v2339 = vmul.f32 %v2334, %v2338
  %2340 = vrot.lane.b32.xlu0 %v235, 104
  %v2341 = vpop.permute.xlu0 %2340
  %v2344 = vsel %vm332, %v2339, 0
  %2346 = vmatprep.subr.mxu0 0.0
  %2347 = vmatpush1.msra.mxu0 0.0
  %2348 = vmatprep.subr.mxu0 0.0
  %2349 = vmatpush1.msra.mxu0 0.0
  %2350 = vmatprep.subr.mxu0 0.0
  %2351 = vmatpush1.msra.mxu0 0.0
  %2352 = vmatprep.subr.mxu0 0.0
  %2353 = vmatpush1.msra.mxu0 0.0
  %2354 = vmatprep.subr.mxu0 0.0
  %2355 = vmatpush1.msra.mxu0 0.0
  %2356 = vmatprep.subr.mxu0 0.0
  %2357 = vmatpush1.msra.mxu0 0.0
  %2358 = vmatprep.subr.mxu0 0.0
  %2359 = vmatpush1.msra.mxu0 0.0
  %2360 = vmatprep.subr.mxu0 0.0
  %2361 = vmatpush1.msra.mxu0 0.0
  %2362 = vmatprep.subr.mxu0 0.0
  %2363 = vmatpush1.msra.mxu0 0.0
  %2364 = vmatprep.subr.mxu0 0.0
  %2365 = vmatpush1.msra.mxu0 0.0
  %2366 = vmatprep.subr.mxu0 0.0
  %2367 = vmatpush1.msra.mxu0 0.0
  %2368 = vmatprep.subr.mxu0 0.0
  %2369 = vmatpush1.msra.mxu0 0.0
  %2370 = vmatprep.subr.mxu0 0.0
  %2371 = vmatpush1.msra.mxu0 0.0
  %2372 = vmatprep.subr.mxu0 0.0
  %2373 = vmatpush1.msra.mxu0 0.0
  %2374 = vmatprep.subr.mxu0 0.0
  %2375 = vmatpush1.msra.mxu0 0.0
  %2376 = vmatprep.subr.mxu0 0.0
  %2377 = vmatpush1.msra.mxu0 %v2341
  %2378 = vmatprep.subr.mxu0 0.0
  %2379 = vmatpush2.msra.mxu0 0.0
  %2380 = vmatprep.subr.mxu0 0.0
  %2381 = vmatpush2.msra.mxu0 0.0
  %2382 = vmatprep.subr.mxu0 0.0
  %2383 = vmatpush2.msra.mxu0 0.0
  %2384 = vmatprep.subr.mxu0 0.0
  %2385 = vmatpush2.msra.mxu0 0.0
  %2386 = vmatprep.subr.mxu0 0.0
  %2387 = vmatpush2.msra.mxu0 0.0
  %2388 = vmatprep.subr.mxu0 0.0
  %2389 = vmatpush2.msra.mxu0 0.0
  %2390 = vmatprep.subr.mxu0 0.0
  %2391 = vmatpush2.msra.mxu0 0.0
  %2392 = vmatprep.subr.mxu0 0.0
  %2393 = vmatpush2.msra.mxu0 0.0
  %2394 = vmatprep.subr.mxu0 0.0
  %2395 = vmatpush2.msra.mxu0 0.0
  %2396 = vmatprep.subr.mxu0 0.0
  %2397 = vmatpush2.msra.mxu0 0.0
  %2398 = vmatprep.subr.mxu0 0.0
  %2399 = vmatpush2.msra.mxu0 0.0
  %2400 = vmatprep.subr.mxu0 0.0
  %2401 = vmatpush2.msra.mxu0 0.0
  %2402 = vmatprep.subr.mxu0 0.0
  %2403 = vmatpush2.msra.mxu0 0.0
  %2404 = vmatprep.subr.mxu0 0.0
  %2405 = vmatpush2.msra.mxu0 0.0
  %2406 = vmatprep.subr.mxu0 0.0
  %2407 = vmatpush2.msra.mxu0 0.0
  %2408 = vmatprep.subr.mxu0 0.0
  %2409 = vmatpush2.msra.mxu0 0.0
  %2410 = vmatprep.mubr.f32.mxu0 0.0
  %2411 = vmatmul.mubr.f32.gmra.mxu0 %v2344
  %v2412 = vpop.f32.mrf.mxu0
  %v2413 = vadd.f32 0.0, %v2412
  %v2414 = vpop.f32.mrf.mxu0
  %2415 = vdwg.mxu0
  %v2416 = vld [vmem:[%s6 + $0x18] sm:$0xff]
  %v2418 = vsel %vm332, %v2413, 0
  %2420 = vmatprep.subr.mxu0 0.0
  %2421 = vmatpush1.msra.mxu0 0.0
  %2422 = vmatprep.subr.mxu0 0.0
  %2423 = vmatpush1.msra.mxu0 0.0
  %2424 = vmatprep.subr.mxu0 0.0
  %2425 = vmatpush1.msra.mxu0 0.0
  %2426 = vmatprep.subr.mxu0 0.0
  %2427 = vmatpush1.msra.mxu0 0.0
  %2428 = vmatprep.subr.mxu0 0.0
  %2429 = vmatpush1.msra.mxu0 0.0
  %2430 = vmatprep.subr.mxu0 0.0
  %2431 = vmatpush1.msra.mxu0 0.0
  %2432 = vmatprep.subr.mxu0 0.0
  %2433 = vmatpush1.msra.mxu0 0.0
  %2434 = vmatprep.subr.mxu0 0.0
  %2435 = vmatpush1.msra.mxu0 0.0
  %2436 = vmatprep.subr.mxu0 0.0
  %2437 = vmatpush1.msra.mxu0 0.0
  %2438 = vmatprep.subr.mxu0 0.0
  %2439 = vmatpush1.msra.mxu0 0.0
  %2440 = vmatprep.subr.mxu0 0.0
  %2441 = vmatpush1.msra.mxu0 0.0
  %2442 = vmatprep.subr.mxu0 0.0
  %2443 = vmatpush1.msra.mxu0 0.0
  %2444 = vmatprep.subr.mxu0 0.0
  %2445 = vmatpush1.msra.mxu0 0.0
  %2446 = vmatprep.subr.mxu0 0.0
  %2447 = vmatpush1.msra.mxu0 0.0
  %2448 = vmatprep.subr.mxu0 0.0
  %2449 = vmatpush1.msra.mxu0 0.0
  %2450 = vmatprep.subr.mxu0 0.0
  %2451 = vmatpush1.msra.mxu0 %v2416
  %2452 = vmatprep.subr.mxu0 0.0
  %2453 = vmatpush2.msra.mxu0 0.0
  %2454 = vmatprep.subr.mxu0 0.0
  %2455 = vmatpush2.msra.mxu0 0.0
  %2456 = vmatprep.subr.mxu0 0.0
  %2457 = vmatpush2.msra.mxu0 0.0
  %2458 = vmatprep.subr.mxu0 0.0
  %2459 = vmatpush2.msra.mxu0 0.0
  %2460 = vmatprep.subr.mxu0 0.0
  %2461 = vmatpush2.msra.mxu0 0.0
  %2462 = vmatprep.subr.mxu0 0.0
  %2463 = vmatpush2.msra.mxu0 0.0
  %2464 = vmatprep.subr.mxu0 0.0
  %2465 = vmatpush2.msra.mxu0 0.0
  %2466 = vmatprep.subr.mxu0 0.0
  %2467 = vmatpush2.msra.mxu0 0.0
  %2468 = vmatprep.subr.mxu0 0.0
  %2469 = vmatpush2.msra.mxu0 0.0
  %2470 = vmatprep.subr.mxu0 0.0
  %2471 = vmatpush2.msra.mxu0 0.0
  %2472 = vmatprep.subr.mxu0 0.0
  %2473 = vmatpush2.msra.mxu0 0.0
  %2474 = vmatprep.subr.mxu0 0.0
  %2475 = vmatpush2.msra.mxu0 0.0
  %2476 = vmatprep.subr.mxu0 0.0
  %2477 = vmatpush2.msra.mxu0 0.0
  %2478 = vmatprep.subr.mxu0 0.0
  %2479 = vmatpush2.msra.mxu0 0.0
  %2480 = vmatprep.subr.mxu0 0.0
  %2481 = vmatpush2.msra.mxu0 0.0
  %2482 = vmatprep.subr.mxu0 0.0
  %2483 = vmatpush2.msra.mxu0 0.0
  %2484 = vmatprep.mubr.f32.mxu0 0.0
  %2485 = vmatmul.mubr.f32.gmra.mxu0 %v2418
  %v2486 = vpop.f32.mrf.mxu0
  %v2487 = vadd.f32 0.0, %v2486
  %v2488 = vpop.f32.mrf.mxu0
  %2489 = vdwg.mxu0
  %v2490 = vadd.f32 %v2250, %v2487
  %2491 = vrot.lane.b32.xlu0 %v323, 96
  %v2492 = vpop.permute.xlu0 %2491
  %2493 = vrot.lane.b32.xlu0 %v329, 96
  %v2494 = vpop.permute.xlu0 %2493
  %v2495 = vsel %vm332, %v2492, 0
  %v2497 = vsel %vm332, %v2494, 0
  %2499 = vmatprep.subr.mxu0 0.0
  %2500 = vmatpush1.xpose.msra.mxu0 0.0
  %2501 = vmatprep.subr.mxu0 0.0
  %2502 = vmatpush1.xpose.msra.mxu0 0.0
  %2503 = vmatprep.subr.mxu0 0.0
  %2504 = vmatpush1.xpose.msra.mxu0 0.0
  %2505 = vmatprep.subr.mxu0 0.0
  %2506 = vmatpush1.xpose.msra.mxu0 0.0
  %2507 = vmatprep.subr.mxu0 0.0
  %2508 = vmatpush1.xpose.msra.mxu0 0.0
  %2509 = vmatprep.subr.mxu0 0.0
  %2510 = vmatpush1.xpose.msra.mxu0 0.0
  %2511 = vmatprep.subr.mxu0 0.0
  %2512 = vmatpush1.xpose.msra.mxu0 0.0
  %2513 = vmatprep.subr.mxu0 0.0
  %2514 = vmatpush1.xpose.msra.mxu0 0.0
  %2515 = vmatprep.subr.mxu0 0.0
  %2516 = vmatpush1.xpose.msra.mxu0 0.0
  %2517 = vmatprep.subr.mxu0 0.0
  %2518 = vmatpush1.xpose.msra.mxu0 0.0
  %2519 = vmatprep.subr.mxu0 0.0
  %2520 = vmatpush1.xpose.msra.mxu0 0.0
  %2521 = vmatprep.subr.mxu0 0.0
  %2522 = vmatpush1.xpose.msra.mxu0 0.0
  %2523 = vmatprep.subr.mxu0 0.0
  %2524 = vmatpush1.xpose.msra.mxu0 0.0
  %2525 = vmatprep.subr.mxu0 0.0
  %2526 = vmatpush1.xpose.msra.mxu0 0.0
  %2527 = vmatprep.subr.mxu0 0.0
  %2528 = vmatpush1.xpose.msra.mxu0 0.0
  %2529 = vmatprep.subr.mxu0 0.0
  %2530 = vmatpush1.xpose.msra.mxu0 %v2497
  %2531 = vmatprep.subr.mxu0 0.0
  %2532 = vmatpush2.xpose.msra.mxu0 0.0
  %2533 = vmatprep.subr.mxu0 0.0
  %2534 = vmatpush2.xpose.msra.mxu0 0.0
  %2535 = vmatprep.subr.mxu0 0.0
  %2536 = vmatpush2.xpose.msra.mxu0 0.0
  %2537 = vmatprep.subr.mxu0 0.0
  %2538 = vmatpush2.xpose.msra.mxu0 0.0
  %2539 = vmatprep.subr.mxu0 0.0
  %2540 = vmatpush2.xpose.msra.mxu0 0.0
  %2541 = vmatprep.subr.mxu0 0.0
  %2542 = vmatpush2.xpose.msra.mxu0 0.0
  %2543 = vmatprep.subr.mxu0 0.0
  %2544 = vmatpush2.xpose.msra.mxu0 0.0
  %2545 = vmatprep.subr.mxu0 0.0
  %2546 = vmatpush2.xpose.msra.mxu0 0.0
  %2547 = vmatprep.subr.mxu0 0.0
  %2548 = vmatpush2.xpose.msra.mxu0 0.0
  %2549 = vmatprep.subr.mxu0 0.0
  %2550 = vmatpush2.xpose.msra.mxu0 0.0
  %2551 = vmatprep.subr.mxu0 0.0
  %2552 = vmatpush2.xpose.msra.mxu0 0.0
  %2553 = vmatprep.subr.mxu0 0.0
  %2554 = vmatpush2.xpose.msra.mxu0 0.0
  %2555 = vmatprep.subr.mxu0 0.0
  %2556 = vmatpush2.xpose.msra.mxu0 0.0
  %2557 = vmatprep.subr.mxu0 0.0
  %2558 = vmatpush2.xpose.msra.mxu0 0.0
  %2559 = vmatprep.subr.mxu0 0.0
  %2560 = vmatpush2.xpose.msra.mxu0 0.0
  %2561 = vmatprep.subr.mxu0 0.0
  %2562 = vmatpush2.xpose.msra.mxu0 0.0
  %2563 = vmatprep.mubr.f32.mxu0 0.0
  %2564 = vmatmul.mubr.f32.gmra.mxu0 %v2495
  %v2565 = vpop.f32.mrf.mxu0
  %v2566 = vadd.f32 %v1536, %v2565
  %v2567 = vpop.f32.mrf.mxu0
  %2568 = vdwg.mxu0
  %v2569 = vsel %vm332, %v2566, -inf
  %2570 = vmax.xlane.f32.xlu0 %v2569
  %v2571 = vpop.xlane.xlu0 %2570
  %v2572 = vsub.f32 %v2566, %v2571
  %v2573 = vmul.f32 %v2572, 1.442695
  %v2574 = vpow.pop %v2573
  %v2575 = vsel %vm332, %v2574, 0.0
  %2576 = vadd.xlane.f32.xlu0 %v2575
  %v2577 = vpop.xlane.xlu0 %2576
  %v2578 = vrcp.pop %v2577
  %v2579 = vmul.f32 %v2574, %v2578
  %2580 = vrot.lane.b32.xlu0 %v235, 96
  %v2581 = vpop.permute.xlu0 %2580
  %v2584 = vsel %vm332, %v2579, 0
  %2586 = vmatprep.subr.mxu0 0.0
  %2587 = vmatpush1.msra.mxu0 0.0
  %2588 = vmatprep.subr.mxu0 0.0
  %2589 = vmatpush1.msra.mxu0 0.0
  %2590 = vmatprep.subr.mxu0 0.0
  %2591 = vmatpush1.msra.mxu0 0.0
  %2592 = vmatprep.subr.mxu0 0.0
  %2593 = vmatpush1.msra.mxu0 0.0
  %2594 = vmatprep.subr.mxu0 0.0
  %2595 = vmatpush1.msra.mxu0 0.0
  %2596 = vmatprep.subr.mxu0 0.0
  %2597 = vmatpush1.msra.mxu0 0.0
  %2598 = vmatprep.subr.mxu0 0.0
  %2599 = vmatpush1.msra.mxu0 0.0
  %2600 = vmatprep.subr.mxu0 0.0
  %2601 = vmatpush1.msra.mxu0 0.0
  %2602 = vmatprep.subr.mxu0 0.0
  %2603 = vmatpush1.msra.mxu0 0.0
  %2604 = vmatprep.subr.mxu0 0.0
  %2605 = vmatpush1.msra.mxu0 0.0
  %2606 = vmatprep.subr.mxu0 0.0
  %2607 = vmatpush1.msra.mxu0 0.0
  %2608 = vmatprep.subr.mxu0 0.0
  %2609 = vmatpush1.msra.mxu0 0.0
  %2610 = vmatprep.subr.mxu0 0.0
  %2611 = vmatpush1.msra.mxu0 0.0
  %2612 = vmatprep.subr.mxu0 0.0
  %2613 = vmatpush1.msra.mxu0 0.0
  %2614 = vmatprep.subr.mxu0 0.0
  %2615 = vmatpush1.msra.mxu0 0.0
  %2616 = vmatprep.subr.mxu0 0.0
  %2617 = vmatpush1.msra.mxu0 %v2581
  %2618 = vmatprep.subr.mxu0 0.0
  %2619 = vmatpush2.msra.mxu0 0.0
  %2620 = vmatprep.subr.mxu0 0.0
  %2621 = vmatpush2.msra.mxu0 0.0
  %2622 = vmatprep.subr.mxu0 0.0
  %2623 = vmatpush2.msra.mxu0 0.0
  %2624 = vmatprep.subr.mxu0 0.0
  %2625 = vmatpush2.msra.mxu0 0.0
  %2626 = vmatprep.subr.mxu0 0.0
  %2627 = vmatpush2.msra.mxu0 0.0
  %2628 = vmatprep.subr.mxu0 0.0
  %2629 = vmatpush2.msra.mxu0 0.0
  %2630 = vmatprep.subr.mxu0 0.0
  %2631 = vmatpush2.msra.mxu0 0.0
  %2632 = vmatprep.subr.mxu0 0.0
  %2633 = vmatpush2.msra.mxu0 0.0
  %2634 = vmatprep.subr.mxu0 0.0
  %2635 = vmatpush2.msra.mxu0 0.0
  %2636 = vmatprep.subr.mxu0 0.0
  %2637 = vmatpush2.msra.mxu0 0.0
  %2638 = vmatprep.subr.mxu0 0.0
  %2639 = vmatpush2.msra.mxu0 0.0
  %2640 = vmatprep.subr.mxu0 0.0
  %2641 = vmatpush2.msra.mxu0 0.0
  %2642 = vmatprep.subr.mxu0 0.0
  %2643 = vmatpush2.msra.mxu0 0.0
  %2644 = vmatprep.subr.mxu0 0.0
  %2645 = vmatpush2.msra.mxu0 0.0
  %2646 = vmatprep.subr.mxu0 0.0
  %2647 = vmatpush2.msra.mxu0 0.0
  %2648 = vmatprep.subr.mxu0 0.0
  %2649 = vmatpush2.msra.mxu0 0.0
  %2650 = vmatprep.mubr.f32.mxu0 0.0
  %2651 = vmatmul.mubr.f32.gmra.mxu0 %v2584
  %v2652 = vpop.f32.mrf.mxu0
  %v2653 = vadd.f32 0.0, %v2652
  %v2654 = vpop.f32.mrf.mxu0
  %2655 = vdwg.mxu0
  %v2656 = vld [vmem:[%s6 + $0x20] sm:$0xff]
  %v2658 = vsel %vm332, %v2653, 0
  %2660 = vmatprep.subr.mxu0 0.0
  %2661 = vmatpush1.msra.mxu0 0.0
  %2662 = vmatprep.subr.mxu0 0.0
  %2663 = vmatpush1.msra.mxu0 0.0
  %2664 = vmatprep.subr.mxu0 0.0
  %2665 = vmatpush1.msra.mxu0 0.0
  %2666 = vmatprep.subr.mxu0 0.0
  %2667 = vmatpush1.msra.mxu0 0.0
  %2668 = vmatprep.subr.mxu0 0.0
  %2669 = vmatpush1.msra.mxu0 0.0
  %2670 = vmatprep.subr.mxu0 0.0
  %2671 = vmatpush1.msra.mxu0 0.0
  %2672 = vmatprep.subr.mxu0 0.0
  %2673 = vmatpush1.msra.mxu0 0.0
  %2674 = vmatprep.subr.mxu0 0.0
  %2675 = vmatpush1.msra.mxu0 0.0
  %2676 = vmatprep.subr.mxu0 0.0
  %2677 = vmatpush1.msra.mxu0 0.0
  %2678 = vmatprep.subr.mxu0 0.0
  %2679 = vmatpush1.msra.mxu0 0.0
  %2680 = vmatprep.subr.mxu0 0.0
  %2681 = vmatpush1.msra.mxu0 0.0
  %2682 = vmatprep.subr.mxu0 0.0
  %2683 = vmatpush1.msra.mxu0 0.0
  %2684 = vmatprep.subr.mxu0 0.0
  %2685 = vmatpush1.msra.mxu0 0.0
  %2686 = vmatprep.subr.mxu0 0.0
  %2687 = vmatpush1.msra.mxu0 0.0
  %2688 = vmatprep.subr.mxu0 0.0
  %2689 = vmatpush1.msra.mxu0 0.0
  %2690 = vmatprep.subr.mxu0 0.0
  %2691 = vmatpush1.msra.mxu0 %v2656
  %2692 = vmatprep.subr.mxu0 0.0
  %2693 = vmatpush2.msra.mxu0 0.0
  %2694 = vmatprep.subr.mxu0 0.0
  %2695 = vmatpush2.msra.mxu0 0.0
  %2696 = vmatprep.subr.mxu0 0.0
  %2697 = vmatpush2.msra.mxu0 0.0
  %2698 = vmatprep.subr.mxu0 0.0
  %2699 = vmatpush2.msra.mxu0 0.0
  %2700 = vmatprep.subr.mxu0 0.0
  %2701 = vmatpush2.msra.mxu0 0.0
  %2702 = vmatprep.subr.mxu0 0.0
  %2703 = vmatpush2.msra.mxu0 0.0
  %2704 = vmatprep.subr.mxu0 0.0
  %2705 = vmatpush2.msra.mxu0 0.0
  %2706 = vmatprep.subr.mxu0 0.0
  %2707 = vmatpush2.msra.mxu0 0.0
  %2708 = vmatprep.subr.mxu0 0.0
  %2709 = vmatpush2.msra.mxu0 0.0
  %2710 = vmatprep.subr.mxu0 0.0
  %2711 = vmatpush2.msra.mxu0 0.0
  %2712 = vmatprep.subr.mxu0 0.0
  %2713 = vmatpush2.msra.mxu0 0.0
  %2714 = vmatprep.subr.mxu0 0.0
  %2715 = vmatpush2.msra.mxu0 0.0
  %2716 = vmatprep.subr.mxu0 0.0
  %2717 = vmatpush2.msra.mxu0 0.0
  %2718 = vmatprep.subr.mxu0 0.0
  %2719 = vmatpush2.msra.mxu0 0.0
  %2720 = vmatprep.subr.mxu0 0.0
  %2721 = vmatpush2.msra.mxu0 0.0
  %2722 = vmatprep.subr.mxu0 0.0
  %2723 = vmatpush2.msra.mxu0 0.0
  %2724 = vmatprep.mubr.f32.mxu0 0.0
  %2725 = vmatmul.mubr.f32.gmra.mxu0 %v2658
  %v2726 = vpop.f32.mrf.mxu0
  %v2727 = vadd.f32 0.0, %v2726
  %v2728 = vpop.f32.mrf.mxu0
  %2729 = vdwg.mxu0
  %v2730 = vadd.f32 %v2490, %v2727
  %v2731 = vadd.f32 %v2730, %v1531
  %2732 = vst [vmem:[%s8 + $0x8] sm:$0xff] %v2731
  // Predicated region
  $region34: #{chatglm_attention_forward.1} parent=0 // pred_check
    _
  $region35: #{chatglm_attention_forward.1} parent=0 // pred_check_branch
    %2734 = sbr.rel (0) target = $region37
  $region36: #{chatglm_attention_forward.1} parent=0 // pred_region
    _
  $region37: #{chatglm_attention_forward.1} parent=0 // pred_fallthru
    _
  // Predicated region
  $region38: #{chatglm_attention_forward.1} parent=0 // pred_check
    _
  $region39: #{chatglm_attention_forward.1} parent=0 // pred_check_branch
    %2736 = sbr.rel (0) target = $region41
  $region40: #{chatglm_attention_forward.1} parent=0 // pred_region
    _
  $region41: #{chatglm_attention_forward.1} parent=0 // pred_fallthru
    _

</llo_original>
